<compile_context>
chip_gen: v7x
topology: tpu7x:2x2x1
jax: 0.10.0
libtpu: 0.0.40
codegen_flags: <defaults>
</compile_context>

<pallas_src>
import math

import jax
import jax.numpy as jnp
from jax.experimental import pallas as pl
from jax.experimental.pallas import tpu as pltpu

# ----------------------------- config (small BERT) -----------------------------
B = 2          # batch
S = 8          # sequence length
H = 32         # hidden size
NH = 4         # num attention heads
DH = H // NH   # head dim
FF = 64        # intermediate (feed-forward) size
L = 2          # num encoder layers
VOCAB = 100
MAXPOS = 16
NTYPE = 2
NUM_CLASSES = 3
LN_EPS = 1e-12
TOK = B * S
OUT_PAD = 128                      # lane-dense padded classifier output width
ATT_SCALE = 1.0 / math.sqrt(DH)
SLAB_W = 128                       # lane width of both parameter slabs

# weight-slab row layout (bf16): per layer [wqk | wvo | w1 | w2], then pool_w, fc_w
LAYER_W_ROWS = 3 * H + FF          # 32 + 32 + 32 + 64 = 160
W_POOL_ROW = L * LAYER_W_ROWS      # 320
W_FC_ROW = W_POOL_ROW + H          # 352
W_ROWS = W_FC_ROW + H              # 384

# bias/LN-slab row layout (f32): emb_ln_g, emb_ln_b, per layer 8 rows, pool_b, fc_b
LAYER_B_ROWS = 8
B_POOL_ROW = 2 + L * LAYER_B_ROWS  # 18
B_FC_ROW = B_POOL_ROW + 1          # 19
B_ROWS = B_FC_ROW + 1              # 20


# ----------------------------- in-kernel helpers -----------------------------
def _ln(x, g, b):
    # LayerNorm in f32
    mu = jnp.mean(x, axis=-1, keepdims=True)
    var = jnp.mean((x - mu) * (x - mu), axis=-1, keepdims=True)
    return (x - mu) * jax.lax.rsqrt(var + LN_EPS) * g + b


def _mm(x_f32, w_bf16):
    # bf16 MXU inputs, f32 accumulation
    return jnp.dot(x_f32.astype(jnp.bfloat16), w_bf16,
                   preferred_element_type=jnp.float32)


# ----------------------------- fused forward kernel -----------------------------
def _bert_kernel(emb_ref, mask_ref, w_ref, b_ref, out_ref):
    f32 = jnp.float32
    bf16 = jnp.bfloat16

    # --- embedding LayerNorm ---
    h = _ln(emb_ref[...], b_ref[0:1, :H], b_ref[1:2, :H])            # (TOK, H) f32

    # --- additive key mask, broadcast ONCE to full (B, S, S) (hoisted out of loops) ---
    # NOTE: a fully-masked row degrades to a uniform distribution over padded keys
    # (max-subtraction prevents NaN), matching the reference behavior for this input.
    bias_bss = jnp.broadcast_to(
        ((1.0 - mask_ref[...]) * (-1e9))[:, None, :], (B, S, S))     # (B, S, S) f32

    # --- encoder layers (unrolled; weights carved from the packed slabs) ---
    for l in range(L):
        wb = l * LAYER_W_ROWS
        bb = 2 + l * LAYER_B_ROWS

        wqk = w_ref[wb          : wb + H,        0:2 * H]            # (H, 2H)  bf16 (Q pre-scaled)
        wvo = w_ref[wb + H      : wb + 2 * H,    0:NH * H]           # (H, NH*H) bf16 (Wv_h @ Wo_h per head)
        w1 = w_ref[wb + 2 * H   : wb + 3 * H,    0:FF]               # (H, FF)  bf16
        w2 = w_ref[wb + 3 * H   : wb + 3 * H + FF, 0:H]              # (FF, H)  bf16

        bqk = b_ref[bb     : bb + 1, 0:2 * H]                        # (1, 2H)  f32
        b_attn = b_ref[bb + 1: bb + 2, 0:H]                          # (1, H)   f32  (bv@Wo + bo)
        ln1g = b_ref[bb + 2: bb + 3, 0:H]
        ln1b = b_ref[bb + 3: bb + 4, 0:H]
        b1 = b_ref[bb + 4: bb + 5, 0:FF]
        b2 = b_ref[bb + 5: bb + 6, 0:H]
        ln2g = b_ref[bb + 6: bb + 7, 0:H]
        ln2b = b_ref[bb + 7: bb + 8, 0:H]

        # fused Q/K projection (scale folded into Wq/bq) and wide fused V*Wo projection
        qk = _mm(h, wqk) + bqk                                       # (TOK, 2H) f32
        vo_all = _mm(h, wvo)                                         # (TOK, NH*H=128) f32

        # multi-head attention; per-head contributions accumulate directly in H width
        attn = jnp.zeros((B, S, H), f32)
        for hd in range(NH):
            q = qk[:, hd * DH:(hd + 1) * DH].reshape(B, S, DH)
            k = qk[:, H + hd * DH:H + (hd + 1) * DH].reshape(B, S, DH)
            vo = vo_all[:, hd * H:(hd + 1) * H].reshape(B, S, H)

            s = jnp.einsum('bqd,bkd->bqk', q.astype(bf16), k.astype(bf16),
                           preferred_element_type=f32)               # (B, S, S)
            s = s + bias_bss
            m = jnp.max(s, axis=-1, keepdims=True)
            p = jnp.exp(s - m)
            p = p * pl.reciprocal(jnp.sum(p, axis=-1, keepdims=True), approx=True)

            attn = attn + jnp.einsum('bqk,bkh->bqh', p.astype(bf16), vo.astype(bf16),
                                     preferred_element_type=f32)     # (B, S, H)
        attn = attn.reshape(TOK, H) + b_attn

        # residual + LayerNorm
        h = _ln(h + attn, ln1g, ln1b)

        # feed-forward: gelu(x W1 + b1) W2 + b2, residual + LayerNorm
        ff = _mm(h, w1) + b1                                         # (TOK, FF)
        ff = 0.5 * ff * (1.0 + jax.lax.erf(ff * 0.7071067811865475))  # exact gelu, f32
        ff = _mm(ff, w2) + b2                                        # (TOK, H)
        h = _ln(h + ff, ln2g, ln2b)

    # --- BERT pooler (CLS token) + classifier, lane-padded output ---
    cls = h.reshape(B, S, H)[:, 0, :]                                # (B, H)
    pool_w = w_ref[W_POOL_ROW:W_POOL_ROW + H, 0:H]
    fc_w = w_ref[W_FC_ROW:W_FC_ROW + H, 0:OUT_PAD]
    pool_b = b_ref[B_POOL_ROW:B_POOL_ROW + 1, 0:H]
    fc_b = b_ref[B_FC_ROW:B_FC_ROW + 1, 0:OUT_PAD]

    pooled = jnp.tanh(_mm(cls, pool_w) + pool_b)                     # (B, H)
    logits = _mm(pooled, fc_w) + fc_b                                # (B, OUT_PAD)
    out_ref[...] = logits.astype(out_ref.dtype)


# ----------------------------- wrapper -----------------------------
_MACS = (L * (TOK * H * 2 * H            # qk projection
              + TOK * H * NH * H         # fused V*Wo projection
              + NH * (B * S * S * DH + B * S * S * H)   # scores + p@vo
              + 2 * TOK * H * FF)        # feed-forward
         + B * H * H + B * H * OUT_PAD)  # pooler + classifier
_COST = pl.CostEstimate(
    flops=2 * _MACS,
    transcendentals=L * (NH * B * S * S + TOK * FF) + B * H,
    bytes_accessed=(TOK * H * 4 + B * S * 4
                    + W_ROWS * SLAB_W * 2 + B_ROWS * SLAB_W * 4
                    + B * OUT_PAD * 4),
)


def bert_forward(params, context, mask):
    # embeddings (gathers are plain-JAX glue outside the kernel)
    tok = jnp.take(params["word_emb"], context, axis=0)              # (B, S, H)
    pos = params["pos_emb"][:S][None, :, :]                          # (1, S, H)
    typ = params["type_emb"][0][None, None, :]                       # token_type_ids = 0
    emb = (tok + pos + typ).reshape(TOK, H).astype(jnp.float32)
    maskf = mask.astype(jnp.float32)                                 # (B, S)

    out = pl.pallas_call(
        _bert_kernel,
        out_shape=jax.ShapeDtypeStruct((B, OUT_PAD), jnp.float32),
        in_specs=[pl.BlockSpec(memory_space=pltpu.MemorySpace.VMEM)] * 4,
        out_specs=pl.BlockSpec(memory_space=pltpu.MemorySpace.VMEM),
        cost_estimate=_COST,
    )(emb, maskf, params["wslab"], params["bslab"])
    return out[:, :NUM_CLASSES]


# ----------------------------- parameter init -----------------------------
def init_params(key):
    def nrm(k, shape):
        return 0.02 * jax.random.normal(k, shape, dtype=jnp.float32)

    keys = iter(jax.random.split(key, 64))
    p = {
        "word_emb": nrm(next(keys), (VOCAB, H)),
        "pos_emb": nrm(next(keys), (MAXPOS, H)),
        "type_emb": nrm(next(keys), (NTYPE, H)),
        "emb_ln_g": jnp.ones((H,), jnp.float32),
        "emb_ln_b": jnp.zeros((H,), jnp.float32),
        "layers": [],
        "pool_w": nrm(next(keys), (H, H)),
        "pool_b": jnp.zeros((H,), jnp.float32),
        "fc_w": nrm(next(keys), (H, NUM_CLASSES)),
        "fc_b": jnp.zeros((NUM_CLASSES,), jnp.float32),
    }
    for _ in range(L):
        p["layers"].append({
            "wq": nrm(next(keys), (H, H)), "bq": jnp.zeros((H,), jnp.float32),
            "wk": nrm(next(keys), (H, H)), "bk": jnp.zeros((H,), jnp.float32),
            "wv": nrm(next(keys), (H, H)), "bv": jnp.zeros((H,), jnp.float32),
            "wo": nrm(next(keys), (H, H)), "bo": jnp.zeros((H,), jnp.float32),
            "ln1_g": jnp.ones((H,), jnp.float32), "ln1_b": jnp.zeros((H,), jnp.float32),
            "w1": nrm(next(keys), (H, FF)), "b1": jnp.zeros((FF,), jnp.float32),
            "w2": nrm(next(keys), (FF, H)), "b2": jnp.zeros((H,), jnp.float32),
            "ln2_g": jnp.ones((H,), jnp.float32), "ln2_b": jnp.zeros((H,), jnp.float32),
        })
    return p


def prepare_params(raw):
    """Pack all weights into one bf16 slab and all bias/LN vectors into one f32 slab.

    Folds: attention scale into Wq/bq, Wo into Wv (per head W_vo = Wv_h @ Wo_h),
    and bv@Wo + bo into a single attention output bias.
    """
    wslab = jnp.zeros((W_ROWS, SLAB_W), jnp.float32)
    bslab = jnp.zeros((B_ROWS, SLAB_W), jnp.float32)

    bslab = bslab.at[0, :H].set(raw["emb_ln_g"])
    bslab = bslab.at[1, :H].set(raw["emb_ln_b"])

    for l, lyr in enumerate(raw["layers"]):
        wb = l * LAYER_W_ROWS
        bb = 2 + l * LAYER_B_ROWS

        wqk = jnp.concatenate([lyr["wq"] * ATT_SCALE, lyr["wk"]], axis=1)        # (H, 2H)
        wvo = jnp.concatenate(
            [lyr["wv"][:, hd * DH:(hd + 1) * DH] @ lyr["wo"][hd * DH:(hd + 1) * DH, :]
             for hd in range(NH)], axis=1)                                       # (H, NH*H)

        wslab = wslab.at[wb:wb + H, :2 * H].set(wqk)
        wslab = wslab.at[wb + H:wb + 2 * H, :NH * H].set(wvo)
        wslab = wslab.at[wb + 2 * H:wb + 3 * H, :FF].set(lyr["w1"])
        wslab = wslab.at[wb + 3 * H:wb + 3 * H + FF, :H].set(lyr["w2"])

        bslab = bslab.at[bb + 0, :2 * H].set(
            jnp.concatenate([lyr["bq"] * ATT_SCALE, lyr["bk"]]))
        bslab = bslab.at[bb + 1, :H].set(lyr["bo"] + lyr["bv"] @ lyr["wo"])      # bv@Wo + bo
        bslab = bslab.at[bb + 2, :H].set(lyr["ln1_g"])
        bslab = bslab.at[bb + 3, :H].set(lyr["ln1_b"])
        bslab = bslab.at[bb + 4, :FF].set(lyr["b1"])
        bslab = bslab.at[bb + 5, :H].set(lyr["b2"])
        bslab = bslab.at[bb + 6, :H].set(lyr["ln2_g"])
        bslab = bslab.at[bb + 7, :H].set(lyr["ln2_b"])

    wslab = wslab.at[W_POOL_ROW:W_POOL_ROW + H, :H].set(raw["pool_w"])
    wslab = wslab.at[W_FC_ROW:W_FC_ROW + H, :NUM_CLASSES].set(raw["fc_w"])
    bslab = bslab.at[B_POOL_ROW, :H].set(raw["pool_b"])
    bslab = bslab.at[B_FC_ROW, :NUM_CLASSES].set(raw["fc_b"])

    return {
        "word_emb": raw["word_emb"],
        "pos_emb": raw["pos_emb"],
        "type_emb": raw["type_emb"],
        "wslab": wslab.astype(jnp.bfloat16),   # (384, 128) bf16  ~96 KiB
        "bslab": bslab,                        # (20, 128)  f32   ~10 KiB
    }


# ----------------------------- main -----------------------------
if __name__ == "__main__":
    key = jax.random.PRNGKey(0)
    kp, kc, km = jax.random.split(key, 3)
    raw = init_params(kp)
    params = prepare_params(raw)

    context = jax.random.randint(kc, (B, S), 0, VOCAB, dtype=jnp.int32)
    token_type = jnp.zeros((B, S), dtype=jnp.int32)  # x[1], unused by the module
    mask = jnp.ones((B, S), dtype=jnp.int32).at[1, S - 3:].set(0)   # pad last 3 tokens of batch 1
    x = (context, token_type, mask)

    fwd = jax.jit(lambda ctx, m: bert_forward(params, ctx, m))
    out = fwd(x[0], x[2])
    jax.block_until_ready(out)
    assert out.shape == (B, NUM_CLASSES)
    print("KERNEL_OK")
</pallas_src>

<mosaic_0001>
module attributes {stable_mosaic.version = 11 : i64} {
  func.func @_bert_kernel(%arg0: memref<16x32xf32, #tpu.memory_space<vmem>>, %arg1: memref<2x8xf32, #tpu.memory_space<vmem>>, %arg2: memref<384x128xbf16, #tpu.memory_space<vmem>>, %arg3: memref<20x128xf32, #tpu.memory_space<vmem>>, %arg4: memref<2x128xf32, #tpu.memory_space<vmem>>) attributes {dimension_semantics = [], scalar_prefetch = 0 : i64, scratch_operands = 0 : i64, tpu.core_type = #tpu.core_type<tc>} {
    %c0 = arith.constant 0 : index
    %c0_0 = arith.constant 0 : index
    %0 = vector.load %arg0[%c0, %c0_0] : memref<16x32xf32, #tpu.memory_space<vmem>>, vector<16x32xf32>
    %c0_1 = arith.constant 0 : index
    %c0_2 = arith.constant 0 : index
    %1 = vector.load %arg3[%c0_1, %c0_2] : memref<20x128xf32, #tpu.memory_space<vmem>>, vector<1x32xf32>
    %c1 = arith.constant 1 : index
    %c0_3 = arith.constant 0 : index
    %2 = vector.load %arg3[%c1, %c0_3] : memref<20x128xf32, #tpu.memory_space<vmem>>, vector<1x32xf32>
    %cst = arith.constant dense<0.000000e+00> : vector<16xf32>
    %3 = vector.multi_reduction <add>, %0, %cst [1] : vector<16x32xf32> to vector<16xf32>
    %4 = vector.shape_cast %3 : vector<16xf32> to vector<16x1xf32>
    %cst_4 = arith.constant 3.200000e+01 : f32
    %5 = vector.broadcast %cst_4 : f32 to vector<16x1xf32>
    %6 = arith.divf %4, %5 : vector<16x1xf32>
    %7 = vector.broadcast %6 : vector<16x1xf32> to vector<16x32xf32>
    %8 = arith.subf %0, %7 : vector<16x32xf32>
    %9 = vector.broadcast %6 : vector<16x1xf32> to vector<16x32xf32>
    %10 = arith.subf %0, %9 : vector<16x32xf32>
    %11 = arith.mulf %8, %10 : vector<16x32xf32>
    %cst_5 = arith.constant dense<0.000000e+00> : vector<16xf32>
    %12 = vector.multi_reduction <add>, %11, %cst_5 [1] : vector<16x32xf32> to vector<16xf32>
    %13 = vector.shape_cast %12 : vector<16xf32> to vector<16x1xf32>
    %cst_6 = arith.constant 3.200000e+01 : f32
    %14 = vector.broadcast %cst_6 : f32 to vector<16x1xf32>
    %15 = arith.divf %13, %14 : vector<16x1xf32>
    %16 = vector.broadcast %6 : vector<16x1xf32> to vector<16x32xf32>
    %17 = arith.subf %0, %16 : vector<16x32xf32>
    %cst_7 = arith.constant 9.99999996E-13 : f32
    %18 = vector.broadcast %cst_7 : f32 to vector<16x1xf32>
    %19 = arith.addf %15, %18 : vector<16x1xf32>
    %20 = math.rsqrt %19 : vector<16x1xf32>
    %21 = vector.broadcast %20 : vector<16x1xf32> to vector<16x32xf32>
    %22 = arith.mulf %17, %21 : vector<16x32xf32>
    %23 = vector.broadcast %1 : vector<1x32xf32> to vector<16x32xf32>
    %24 = arith.mulf %22, %23 : vector<16x32xf32>
    %25 = vector.broadcast %2 : vector<1x32xf32> to vector<16x32xf32>
    %26 = arith.addf %24, %25 : vector<16x32xf32>
    %c0_8 = arith.constant 0 : index
    %c0_9 = arith.constant 0 : index
    %27 = vector.load %arg1[%c0_8, %c0_9] : memref<2x8xf32, #tpu.memory_space<vmem>>, vector<2x8xf32>
    %cst_10 = arith.constant 1.000000e+00 : f32
    %28 = vector.broadcast %cst_10 : f32 to vector<2x8xf32>
    %29 = arith.subf %28, %27 : vector<2x8xf32>
    %cst_11 = arith.constant -1.000000e+09 : f32
    %30 = vector.broadcast %cst_11 : f32 to vector<2x8xf32>
    %31 = arith.mulf %29, %30 : vector<2x8xf32>
    %32 = vector.shape_cast %31 : vector<2x8xf32> to vector<2x1x8xf32>
    %33 = vector.shape_cast %32 : vector<2x1x8xf32> to vector<2x1x8xf32>
    %34 = vector.broadcast %33 : vector<2x1x8xf32> to vector<2x8x8xf32>
    %c0_12 = arith.constant 0 : index
    %c0_13 = arith.constant 0 : index
    %35 = vector.load %arg2[%c0_12, %c0_13] : memref<384x128xbf16, #tpu.memory_space<vmem>>, vector<32x64xbf16>
    %c32 = arith.constant 32 : index
    %c0_14 = arith.constant 0 : index
    %36 = vector.load %arg2[%c32, %c0_14] : memref<384x128xbf16, #tpu.memory_space<vmem>>, vector<32x128xbf16>
    %c64 = arith.constant 64 : index
    %c0_15 = arith.constant 0 : index
    %37 = vector.load %arg2[%c64, %c0_15] : memref<384x128xbf16, #tpu.memory_space<vmem>>, vector<32x64xbf16>
    %c96 = arith.constant 96 : index
    %c0_16 = arith.constant 0 : index
    %38 = vector.load %arg2[%c96, %c0_16] : memref<384x128xbf16, #tpu.memory_space<vmem>>, vector<64x32xbf16>
    %c2 = arith.constant 2 : index
    %c0_17 = arith.constant 0 : index
    %39 = vector.load %arg3[%c2, %c0_17] : memref<20x128xf32, #tpu.memory_space<vmem>>, vector<1x64xf32>
    %c3 = arith.constant 3 : index
    %c0_18 = arith.constant 0 : index
    %40 = vector.load %arg3[%c3, %c0_18] : memref<20x128xf32, #tpu.memory_space<vmem>>, vector<1x32xf32>
    %c4 = arith.constant 4 : index
    %c0_19 = arith.constant 0 : index
    %41 = vector.load %arg3[%c4, %c0_19] : memref<20x128xf32, #tpu.memory_space<vmem>>, vector<1x32xf32>
    %c5 = arith.constant 5 : index
    %c0_20 = arith.constant 0 : index
    %42 = vector.load %arg3[%c5, %c0_20] : memref<20x128xf32, #tpu.memory_space<vmem>>, vector<1x32xf32>
    %c6 = arith.constant 6 : index
    %c0_21 = arith.constant 0 : index
    %43 = vector.load %arg3[%c6, %c0_21] : memref<20x128xf32, #tpu.memory_space<vmem>>, vector<1x64xf32>
    %c7 = arith.constant 7 : index
    %c0_22 = arith.constant 0 : index
    %44 = vector.load %arg3[%c7, %c0_22] : memref<20x128xf32, #tpu.memory_space<vmem>>, vector<1x32xf32>
    %c8 = arith.constant 8 : index
    %c0_23 = arith.constant 0 : index
    %45 = vector.load %arg3[%c8, %c0_23] : memref<20x128xf32, #tpu.memory_space<vmem>>, vector<1x32xf32>
    %c9 = arith.constant 9 : index
    %c0_24 = arith.constant 0 : index
    %46 = vector.load %arg3[%c9, %c0_24] : memref<20x128xf32, #tpu.memory_space<vmem>>, vector<1x32xf32>
    %47 = arith.truncf %26 : vector<16x32xf32> to vector<16x32xbf16>
    %cst_25 = arith.constant dense<0.000000e+00> : vector<16x64xf32>
    %48 = tpu.matmul %47, %35, %cst_25 {dimension_numbers = #tpu.dot_dimension_numbers<[1], [0], [0], [1], [0, 0, 1, 1], [], []>} : vector<16x32xbf16>, vector<32x64xbf16>, vector<16x64xf32> -> vector<16x64xf32>
    %49 = vector.broadcast %39 : vector<1x64xf32> to vector<16x64xf32>
    %50 = arith.addf %48, %49 : vector<16x64xf32>
    %51 = arith.truncf %26 : vector<16x32xf32> to vector<16x32xbf16>
    %cst_26 = arith.constant dense<0.000000e+00> : vector<16x128xf32>
    %52 = tpu.matmul %51, %36, %cst_26 {dimension_numbers = #tpu.dot_dimension_numbers<[1], [0], [0], [1], [0, 0, 1, 1], [], []>} : vector<16x32xbf16>, vector<32x128xbf16>, vector<16x128xf32> -> vector<16x128xf32>
    %cst_27 = arith.constant 0.000000e+00 : f32
    %53 = vector.broadcast %cst_27 : f32 to vector<2x8x32xf32>
    %54 = vector.extract_strided_slice %50 {offsets = [0, 0], sizes = [16, 8], strides = [1, 1]} : vector<16x64xf32> to vector<16x8xf32>
    %55 = vector.shape_cast %54 : vector<16x8xf32> to vector<2x8x8xf32>
    %56 = vector.extract_strided_slice %50 {offsets = [0, 32], sizes = [16, 8], strides = [1, 1]} : vector<16x64xf32> to vector<16x8xf32>
    %57 = vector.shape_cast %56 : vector<16x8xf32> to vector<2x8x8xf32>
    %58 = vector.extract_strided_slice %52 {offsets = [0, 0], sizes = [16, 32], strides = [1, 1]} : vector<16x128xf32> to vector<16x32xf32>
    %59 = vector.shape_cast %58 : vector<16x32xf32> to vector<2x8x32xf32>
    %60 = arith.truncf %55 : vector<2x8x8xf32> to vector<2x8x8xbf16>
    %61 = arith.truncf %57 : vector<2x8x8xf32> to vector<2x8x8xbf16>
    "tpu.trace_start"() <{level = 10 : i32, message = "bqd,bkd->bqk"}> : () -> ()
    %cst_28 = arith.constant dense<0.000000e+00> : vector<2x8x8xf32>
    %62 = tpu.matmul %60, %61, %cst_28 {dimension_numbers = #tpu.dot_dimension_numbers<[2], [2], [1], [1], [0, 0, 0, 1, 1, 1], [0], [0]>} : vector<2x8x8xbf16>, vector<2x8x8xbf16>, vector<2x8x8xf32> -> vector<2x8x8xf32>
    "tpu.trace_stop"() : () -> ()
    %63 = arith.addf %62, %34 : vector<2x8x8xf32>
    %cst_29 = arith.constant dense<0xFF800000> : vector<2x8xf32>
    %64 = vector.multi_reduction <maximumf>, %63, %cst_29 [2] : vector<2x8x8xf32> to vector<2x8xf32>
    %65 = vector.shape_cast %64 : vector<2x8xf32> to vector<2x8x1xf32>
    %66 = vector.broadcast %65 : vector<2x8x1xf32> to vector<2x8x8xf32>
    %67 = arith.subf %63, %66 : vector<2x8x8xf32>
    %68 = math.exp %67 : vector<2x8x8xf32>
    %cst_30 = arith.constant dense<0.000000e+00> : vector<2x8xf32>
    %69 = vector.multi_reduction <add>, %68, %cst_30 [2] : vector<2x8x8xf32> to vector<2x8xf32>
    %70 = vector.shape_cast %69 : vector<2x8xf32> to vector<2x8x1xf32>
    %71 = tpu.reciprocal %70 {approx = true} : vector<2x8x1xf32> -> vector<2x8x1xf32>
    %72 = vector.broadcast %71 : vector<2x8x1xf32> to vector<2x8x8xf32>
    %73 = arith.mulf %68, %72 : vector<2x8x8xf32>
    %74 = arith.truncf %73 : vector<2x8x8xf32> to vector<2x8x8xbf16>
    %75 = arith.truncf %59 : vector<2x8x32xf32> to vector<2x8x32xbf16>
    "tpu.trace_start"() <{level = 10 : i32, message = "bqk,bkh->bqh"}> : () -> ()
    %cst_31 = arith.constant dense<0.000000e+00> : vector<2x8x32xf32>
    %76 = tpu.matmul %74, %75, %cst_31 {dimension_numbers = #tpu.dot_dimension_numbers<[2], [1], [1], [2], [0, 0, 0, 1, 1, 2], [0], [0]>} : vector<2x8x8xbf16>, vector<2x8x32xbf16>, vector<2x8x32xf32> -> vector<2x8x32xf32>
    "tpu.trace_stop"() : () -> ()
    %77 = arith.addf %53, %76 : vector<2x8x32xf32>
    %78 = vector.extract_strided_slice %50 {offsets = [0, 8], sizes = [16, 8], strides = [1, 1]} : vector<16x64xf32> to vector<16x8xf32>
    %79 = vector.shape_cast %78 : vector<16x8xf32> to vector<2x8x8xf32>
    %80 = vector.extract_strided_slice %50 {offsets = [0, 40], sizes = [16, 8], strides = [1, 1]} : vector<16x64xf32> to vector<16x8xf32>
    %81 = vector.shape_cast %80 : vector<16x8xf32> to vector<2x8x8xf32>
    %82 = vector.extract_strided_slice %52 {offsets = [0, 32], sizes = [16, 32], strides = [1, 1]} : vector<16x128xf32> to vector<16x32xf32>
    %83 = vector.shape_cast %82 : vector<16x32xf32> to vector<2x8x32xf32>
    %84 = arith.truncf %79 : vector<2x8x8xf32> to vector<2x8x8xbf16>
    %85 = arith.truncf %81 : vector<2x8x8xf32> to vector<2x8x8xbf16>
    "tpu.trace_start"() <{level = 10 : i32, message = "bqd,bkd->bqk"}> : () -> ()
    %cst_32 = arith.constant dense<0.000000e+00> : vector<2x8x8xf32>
    %86 = tpu.matmul %84, %85, %cst_32 {dimension_numbers = #tpu.dot_dimension_numbers<[2], [2], [1], [1], [0, 0, 0, 1, 1, 1], [0], [0]>} : vector<2x8x8xbf16>, vector<2x8x8xbf16>, vector<2x8x8xf32> -> vector<2x8x8xf32>
    "tpu.trace_stop"() : () -> ()
    %87 = arith.addf %86, %34 : vector<2x8x8xf32>
    %cst_33 = arith.constant dense<0xFF800000> : vector<2x8xf32>
    %88 = vector.multi_reduction <maximumf>, %87, %cst_33 [2] : vector<2x8x8xf32> to vector<2x8xf32>
    %89 = vector.shape_cast %88 : vector<2x8xf32> to vector<2x8x1xf32>
    %90 = vector.broadcast %89 : vector<2x8x1xf32> to vector<2x8x8xf32>
    %91 = arith.subf %87, %90 : vector<2x8x8xf32>
    %92 = math.exp %91 : vector<2x8x8xf32>
    %cst_34 = arith.constant dense<0.000000e+00> : vector<2x8xf32>
    %93 = vector.multi_reduction <add>, %92, %cst_34 [2] : vector<2x8x8xf32> to vector<2x8xf32>
    %94 = vector.shape_cast %93 : vector<2x8xf32> to vector<2x8x1xf32>
    %95 = tpu.reciprocal %94 {approx = true} : vector<2x8x1xf32> -> vector<2x8x1xf32>
    %96 = vector.broadcast %95 : vector<2x8x1xf32> to vector<2x8x8xf32>
    %97 = arith.mulf %92, %96 : vector<2x8x8xf32>
    %98 = arith.truncf %97 : vector<2x8x8xf32> to vector<2x8x8xbf16>
    %99 = arith.truncf %83 : vector<2x8x32xf32> to vector<2x8x32xbf16>
    "tpu.trace_start"() <{level = 10 : i32, message = "bqk,bkh->bqh"}> : () -> ()
    %cst_35 = arith.constant dense<0.000000e+00> : vector<2x8x32xf32>
    %100 = tpu.matmul %98, %99, %cst_35 {dimension_numbers = #tpu.dot_dimension_numbers<[2], [1], [1], [2], [0, 0, 0, 1, 1, 2], [0], [0]>} : vector<2x8x8xbf16>, vector<2x8x32xbf16>, vector<2x8x32xf32> -> vector<2x8x32xf32>
    "tpu.trace_stop"() : () -> ()
    %101 = arith.addf %77, %100 : vector<2x8x32xf32>
    %102 = vector.extract_strided_slice %50 {offsets = [0, 16], sizes = [16, 8], strides = [1, 1]} : vector<16x64xf32> to vector<16x8xf32>
    %103 = vector.shape_cast %102 : vector<16x8xf32> to vector<2x8x8xf32>
    %104 = vector.extract_strided_slice %50 {offsets = [0, 48], sizes = [16, 8], strides = [1, 1]} : vector<16x64xf32> to vector<16x8xf32>
    %105 = vector.shape_cast %104 : vector<16x8xf32> to vector<2x8x8xf32>
    %106 = vector.extract_strided_slice %52 {offsets = [0, 64], sizes = [16, 32], strides = [1, 1]} : vector<16x128xf32> to vector<16x32xf32>
    %107 = vector.shape_cast %106 : vector<16x32xf32> to vector<2x8x32xf32>
    %108 = arith.truncf %103 : vector<2x8x8xf32> to vector<2x8x8xbf16>
    %109 = arith.truncf %105 : vector<2x8x8xf32> to vector<2x8x8xbf16>
    "tpu.trace_start"() <{level = 10 : i32, message = "bqd,bkd->bqk"}> : () -> ()
    %cst_36 = arith.constant dense<0.000000e+00> : vector<2x8x8xf32>
    %110 = tpu.matmul %108, %109, %cst_36 {dimension_numbers = #tpu.dot_dimension_numbers<[2], [2], [1], [1], [0, 0, 0, 1, 1, 1], [0], [0]>} : vector<2x8x8xbf16>, vector<2x8x8xbf16>, vector<2x8x8xf32> -> vector<2x8x8xf32>
    "tpu.trace_stop"() : () -> ()
    %111 = arith.addf %110, %34 : vector<2x8x8xf32>
    %cst_37 = arith.constant dense<0xFF800000> : vector<2x8xf32>
    %112 = vector.multi_reduction <maximumf>, %111, %cst_37 [2] : vector<2x8x8xf32> to vector<2x8xf32>
    %113 = vector.shape_cast %112 : vector<2x8xf32> to vector<2x8x1xf32>
    %114 = vector.broadcast %113 : vector<2x8x1xf32> to vector<2x8x8xf32>
    %115 = arith.subf %111, %114 : vector<2x8x8xf32>
    %116 = math.exp %115 : vector<2x8x8xf32>
    %cst_38 = arith.constant dense<0.000000e+00> : vector<2x8xf32>
    %117 = vector.multi_reduction <add>, %116, %cst_38 [2] : vector<2x8x8xf32> to vector<2x8xf32>
    %118 = vector.shape_cast %117 : vector<2x8xf32> to vector<2x8x1xf32>
    %119 = tpu.reciprocal %118 {approx = true} : vector<2x8x1xf32> -> vector<2x8x1xf32>
    %120 = vector.broadcast %119 : vector<2x8x1xf32> to vector<2x8x8xf32>
    %121 = arith.mulf %116, %120 : vector<2x8x8xf32>
    %122 = arith.truncf %121 : vector<2x8x8xf32> to vector<2x8x8xbf16>
    %123 = arith.truncf %107 : vector<2x8x32xf32> to vector<2x8x32xbf16>
    "tpu.trace_start"() <{level = 10 : i32, message = "bqk,bkh->bqh"}> : () -> ()
    %cst_39 = arith.constant dense<0.000000e+00> : vector<2x8x32xf32>
    %124 = tpu.matmul %122, %123, %cst_39 {dimension_numbers = #tpu.dot_dimension_numbers<[2], [1], [1], [2], [0, 0, 0, 1, 1, 2], [0], [0]>} : vector<2x8x8xbf16>, vector<2x8x32xbf16>, vector<2x8x32xf32> -> vector<2x8x32xf32>
    "tpu.trace_stop"() : () -> ()
    %125 = arith.addf %101, %124 : vector<2x8x32xf32>
    %126 = vector.extract_strided_slice %50 {offsets = [0, 24], sizes = [16, 8], strides = [1, 1]} : vector<16x64xf32> to vector<16x8xf32>
    %127 = vector.shape_cast %126 : vector<16x8xf32> to vector<2x8x8xf32>
    %128 = vector.extract_strided_slice %50 {offsets = [0, 56], sizes = [16, 8], strides = [1, 1]} : vector<16x64xf32> to vector<16x8xf32>
    %129 = vector.shape_cast %128 : vector<16x8xf32> to vector<2x8x8xf32>
    %130 = vector.extract_strided_slice %52 {offsets = [0, 96], sizes = [16, 32], strides = [1, 1]} : vector<16x128xf32> to vector<16x32xf32>
    %131 = vector.shape_cast %130 : vector<16x32xf32> to vector<2x8x32xf32>
    %132 = arith.truncf %127 : vector<2x8x8xf32> to vector<2x8x8xbf16>
    %133 = arith.truncf %129 : vector<2x8x8xf32> to vector<2x8x8xbf16>
    "tpu.trace_start"() <{level = 10 : i32, message = "bqd,bkd->bqk"}> : () -> ()
    %cst_40 = arith.constant dense<0.000000e+00> : vector<2x8x8xf32>
    %134 = tpu.matmul %132, %133, %cst_40 {dimension_numbers = #tpu.dot_dimension_numbers<[2], [2], [1], [1], [0, 0, 0, 1, 1, 1], [0], [0]>} : vector<2x8x8xbf16>, vector<2x8x8xbf16>, vector<2x8x8xf32> -> vector<2x8x8xf32>
    "tpu.trace_stop"() : () -> ()
    %135 = arith.addf %134, %34 : vector<2x8x8xf32>
    %cst_41 = arith.constant dense<0xFF800000> : vector<2x8xf32>
    %136 = vector.multi_reduction <maximumf>, %135, %cst_41 [2] : vector<2x8x8xf32> to vector<2x8xf32>
    %137 = vector.shape_cast %136 : vector<2x8xf32> to vector<2x8x1xf32>
    %138 = vector.broadcast %137 : vector<2x8x1xf32> to vector<2x8x8xf32>
    %139 = arith.subf %135, %138 : vector<2x8x8xf32>
    %140 = math.exp %139 : vector<2x8x8xf32>
    %cst_42 = arith.constant dense<0.000000e+00> : vector<2x8xf32>
    %141 = vector.multi_reduction <add>, %140, %cst_42 [2] : vector<2x8x8xf32> to vector<2x8xf32>
    %142 = vector.shape_cast %141 : vector<2x8xf32> to vector<2x8x1xf32>
    %143 = tpu.reciprocal %142 {approx = true} : vector<2x8x1xf32> -> vector<2x8x1xf32>
    %144 = vector.broadcast %143 : vector<2x8x1xf32> to vector<2x8x8xf32>
    %145 = arith.mulf %140, %144 : vector<2x8x8xf32>
    %146 = arith.truncf %145 : vector<2x8x8xf32> to vector<2x8x8xbf16>
    %147 = arith.truncf %131 : vector<2x8x32xf32> to vector<2x8x32xbf16>
    "tpu.trace_start"() <{level = 10 : i32, message = "bqk,bkh->bqh"}> : () -> ()
    %cst_43 = arith.constant dense<0.000000e+00> : vector<2x8x32xf32>
    %148 = tpu.matmul %146, %147, %cst_43 {dimension_numbers = #tpu.dot_dimension_numbers<[2], [1], [1], [2], [0, 0, 0, 1, 1, 2], [0], [0]>} : vector<2x8x8xbf16>, vector<2x8x32xbf16>, vector<2x8x32xf32> -> vector<2x8x32xf32>
    "tpu.trace_stop"() : () -> ()
    %149 = arith.addf %125, %148 : vector<2x8x32xf32>
    %150 = vector.shape_cast %149 : vector<2x8x32xf32> to vector<16x32xf32>
    %151 = vector.broadcast %40 : vector<1x32xf32> to vector<16x32xf32>
    %152 = arith.addf %150, %151 : vector<16x32xf32>
    %153 = arith.addf %26, %152 : vector<16x32xf32>
    %cst_44 = arith.constant dense<0.000000e+00> : vector<16xf32>
    %154 = vector.multi_reduction <add>, %153, %cst_44 [1] : vector<16x32xf32> to vector<16xf32>
    %155 = vector.shape_cast %154 : vector<16xf32> to vector<16x1xf32>
    %cst_45 = arith.constant 3.200000e+01 : f32
    %156 = vector.broadcast %cst_45 : f32 to vector<16x1xf32>
    %157 = arith.divf %155, %156 : vector<16x1xf32>
    %158 = vector.broadcast %157 : vector<16x1xf32> to vector<16x32xf32>
    %159 = arith.subf %153, %158 : vector<16x32xf32>
    %160 = vector.broadcast %157 : vector<16x1xf32> to vector<16x32xf32>
    %161 = arith.subf %153, %160 : vector<16x32xf32>
    %162 = arith.mulf %159, %161 : vector<16x32xf32>
    %cst_46 = arith.constant dense<0.000000e+00> : vector<16xf32>
    %163 = vector.multi_reduction <add>, %162, %cst_46 [1] : vector<16x32xf32> to vector<16xf32>
    %164 = vector.shape_cast %163 : vector<16xf32> to vector<16x1xf32>
    %cst_47 = arith.constant 3.200000e+01 : f32
    %165 = vector.broadcast %cst_47 : f32 to vector<16x1xf32>
    %166 = arith.divf %164, %165 : vector<16x1xf32>
    %167 = vector.broadcast %157 : vector<16x1xf32> to vector<16x32xf32>
    %168 = arith.subf %153, %167 : vector<16x32xf32>
    %cst_48 = arith.constant 9.99999996E-13 : f32
    %169 = vector.broadcast %cst_48 : f32 to vector<16x1xf32>
    %170 = arith.addf %166, %169 : vector<16x1xf32>
    %171 = math.rsqrt %170 : vector<16x1xf32>
    %172 = vector.broadcast %171 : vector<16x1xf32> to vector<16x32xf32>
    %173 = arith.mulf %168, %172 : vector<16x32xf32>
    %174 = vector.broadcast %41 : vector<1x32xf32> to vector<16x32xf32>
    %175 = arith.mulf %173, %174 : vector<16x32xf32>
    %176 = vector.broadcast %42 : vector<1x32xf32> to vector<16x32xf32>
    %177 = arith.addf %175, %176 : vector<16x32xf32>
    %178 = arith.truncf %177 : vector<16x32xf32> to vector<16x32xbf16>
    %cst_49 = arith.constant dense<0.000000e+00> : vector<16x64xf32>
    %179 = tpu.matmul %178, %37, %cst_49 {dimension_numbers = #tpu.dot_dimension_numbers<[1], [0], [0], [1], [0, 0, 1, 1], [], []>} : vector<16x32xbf16>, vector<32x64xbf16>, vector<16x64xf32> -> vector<16x64xf32>
    %180 = vector.broadcast %43 : vector<1x64xf32> to vector<16x64xf32>
    %181 = arith.addf %179, %180 : vector<16x64xf32>
    %cst_50 = arith.constant 5.000000e-01 : f32
    %182 = vector.broadcast %cst_50 : f32 to vector<16x64xf32>
    %183 = arith.mulf %182, %181 : vector<16x64xf32>
    %cst_51 = arith.constant 0.707106769 : f32
    %184 = vector.broadcast %cst_51 : f32 to vector<16x64xf32>
    %185 = arith.mulf %181, %184 : vector<16x64xf32>
    %186 = math.erf %185 : vector<16x64xf32>
    %cst_52 = arith.constant 1.000000e+00 : f32
    %187 = vector.broadcast %cst_52 : f32 to vector<16x64xf32>
    %188 = arith.addf %187, %186 : vector<16x64xf32>
    %189 = arith.mulf %183, %188 : vector<16x64xf32>
    %190 = arith.truncf %189 : vector<16x64xf32> to vector<16x64xbf16>
    %cst_53 = arith.constant dense<0.000000e+00> : vector<16x32xf32>
    %191 = tpu.matmul %190, %38, %cst_53 {dimension_numbers = #tpu.dot_dimension_numbers<[1], [0], [0], [1], [0, 0, 1, 1], [], []>} : vector<16x64xbf16>, vector<64x32xbf16>, vector<16x32xf32> -> vector<16x32xf32>
    %192 = vector.broadcast %44 : vector<1x32xf32> to vector<16x32xf32>
    %193 = arith.addf %191, %192 : vector<16x32xf32>
    %194 = arith.addf %177, %193 : vector<16x32xf32>
    %cst_54 = arith.constant dense<0.000000e+00> : vector<16xf32>
    %195 = vector.multi_reduction <add>, %194, %cst_54 [1] : vector<16x32xf32> to vector<16xf32>
    %196 = vector.shape_cast %195 : vector<16xf32> to vector<16x1xf32>
    %cst_55 = arith.constant 3.200000e+01 : f32
    %197 = vector.broadcast %cst_55 : f32 to vector<16x1xf32>
    %198 = arith.divf %196, %197 : vector<16x1xf32>
    %199 = vector.broadcast %198 : vector<16x1xf32> to vector<16x32xf32>
    %200 = arith.subf %194, %199 : vector<16x32xf32>
    %201 = vector.broadcast %198 : vector<16x1xf32> to vector<16x32xf32>
    %202 = arith.subf %194, %201 : vector<16x32xf32>
    %203 = arith.mulf %200, %202 : vector<16x32xf32>
    %cst_56 = arith.constant dense<0.000000e+00> : vector<16xf32>
    %204 = vector.multi_reduction <add>, %203, %cst_56 [1] : vector<16x32xf32> to vector<16xf32>
    %205 = vector.shape_cast %204 : vector<16xf32> to vector<16x1xf32>
    %cst_57 = arith.constant 3.200000e+01 : f32
    %206 = vector.broadcast %cst_57 : f32 to vector<16x1xf32>
    %207 = arith.divf %205, %206 : vector<16x1xf32>
    %208 = vector.broadcast %198 : vector<16x1xf32> to vector<16x32xf32>
    %209 = arith.subf %194, %208 : vector<16x32xf32>
    %cst_58 = arith.constant 9.99999996E-13 : f32
    %210 = vector.broadcast %cst_58 : f32 to vector<16x1xf32>
    %211 = arith.addf %207, %210 : vector<16x1xf32>
    %212 = math.rsqrt %211 : vector<16x1xf32>
    %213 = vector.broadcast %212 : vector<16x1xf32> to vector<16x32xf32>
    %214 = arith.mulf %209, %213 : vector<16x32xf32>
    %215 = vector.broadcast %45 : vector<1x32xf32> to vector<16x32xf32>
    %216 = arith.mulf %214, %215 : vector<16x32xf32>
    %217 = vector.broadcast %46 : vector<1x32xf32> to vector<16x32xf32>
    %218 = arith.addf %216, %217 : vector<16x32xf32>
    %c160 = arith.constant 160 : index
    %c0_59 = arith.constant 0 : index
    %219 = vector.load %arg2[%c160, %c0_59] : memref<384x128xbf16, #tpu.memory_space<vmem>>, vector<32x64xbf16>
    %c192 = arith.constant 192 : index
    %c0_60 = arith.constant 0 : index
    %220 = vector.load %arg2[%c192, %c0_60] : memref<384x128xbf16, #tpu.memory_space<vmem>>, vector<32x128xbf16>
    %c224 = arith.constant 224 : index
    %c0_61 = arith.constant 0 : index
    %221 = vector.load %arg2[%c224, %c0_61] : memref<384x128xbf16, #tpu.memory_space<vmem>>, vector<32x64xbf16>
    %c256 = arith.constant 256 : index
    %c0_62 = arith.constant 0 : index
    %222 = vector.load %arg2[%c256, %c0_62] : memref<384x128xbf16, #tpu.memory_space<vmem>>, vector<64x32xbf16>
    %c10 = arith.constant 10 : index
    %c0_63 = arith.constant 0 : index
    %223 = vector.load %arg3[%c10, %c0_63] : memref<20x128xf32, #tpu.memory_space<vmem>>, vector<1x64xf32>
    %c11 = arith.constant 11 : index
    %c0_64 = arith.constant 0 : index
    %224 = vector.load %arg3[%c11, %c0_64] : memref<20x128xf32, #tpu.memory_space<vmem>>, vector<1x32xf32>
    %c12 = arith.constant 12 : index
    %c0_65 = arith.constant 0 : index
    %225 = vector.load %arg3[%c12, %c0_65] : memref<20x128xf32, #tpu.memory_space<vmem>>, vector<1x32xf32>
    %c13 = arith.constant 13 : index
    %c0_66 = arith.constant 0 : index
    %226 = vector.load %arg3[%c13, %c0_66] : memref<20x128xf32, #tpu.memory_space<vmem>>, vector<1x32xf32>
    %c14 = arith.constant 14 : index
    %c0_67 = arith.constant 0 : index
    %227 = vector.load %arg3[%c14, %c0_67] : memref<20x128xf32, #tpu.memory_space<vmem>>, vector<1x64xf32>
    %c15 = arith.constant 15 : index
    %c0_68 = arith.constant 0 : index
    %228 = vector.load %arg3[%c15, %c0_68] : memref<20x128xf32, #tpu.memory_space<vmem>>, vector<1x32xf32>
    %c16 = arith.constant 16 : index
    %c0_69 = arith.constant 0 : index
    %229 = vector.load %arg3[%c16, %c0_69] : memref<20x128xf32, #tpu.memory_space<vmem>>, vector<1x32xf32>
    %c17 = arith.constant 17 : index
    %c0_70 = arith.constant 0 : index
    %230 = vector.load %arg3[%c17, %c0_70] : memref<20x128xf32, #tpu.memory_space<vmem>>, vector<1x32xf32>
    %231 = arith.truncf %218 : vector<16x32xf32> to vector<16x32xbf16>
    %cst_71 = arith.constant dense<0.000000e+00> : vector<16x64xf32>
    %232 = tpu.matmul %231, %219, %cst_71 {dimension_numbers = #tpu.dot_dimension_numbers<[1], [0], [0], [1], [0, 0, 1, 1], [], []>} : vector<16x32xbf16>, vector<32x64xbf16>, vector<16x64xf32> -> vector<16x64xf32>
    %233 = vector.broadcast %223 : vector<1x64xf32> to vector<16x64xf32>
    %234 = arith.addf %232, %233 : vector<16x64xf32>
    %235 = arith.truncf %218 : vector<16x32xf32> to vector<16x32xbf16>
    %cst_72 = arith.constant dense<0.000000e+00> : vector<16x128xf32>
    %236 = tpu.matmul %235, %220, %cst_72 {dimension_numbers = #tpu.dot_dimension_numbers<[1], [0], [0], [1], [0, 0, 1, 1], [], []>} : vector<16x32xbf16>, vector<32x128xbf16>, vector<16x128xf32> -> vector<16x128xf32>
    %cst_73 = arith.constant 0.000000e+00 : f32
    %237 = vector.broadcast %cst_73 : f32 to vector<2x8x32xf32>
    %238 = vector.extract_strided_slice %234 {offsets = [0, 0], sizes = [16, 8], strides = [1, 1]} : vector<16x64xf32> to vector<16x8xf32>
    %239 = vector.shape_cast %238 : vector<16x8xf32> to vector<2x8x8xf32>
    %240 = vector.extract_strided_slice %234 {offsets = [0, 32], sizes = [16, 8], strides = [1, 1]} : vector<16x64xf32> to vector<16x8xf32>
    %241 = vector.shape_cast %240 : vector<16x8xf32> to vector<2x8x8xf32>
    %242 = vector.extract_strided_slice %236 {offsets = [0, 0], sizes = [16, 32], strides = [1, 1]} : vector<16x128xf32> to vector<16x32xf32>
    %243 = vector.shape_cast %242 : vector<16x32xf32> to vector<2x8x32xf32>
    %244 = arith.truncf %239 : vector<2x8x8xf32> to vector<2x8x8xbf16>
    %245 = arith.truncf %241 : vector<2x8x8xf32> to vector<2x8x8xbf16>
    "tpu.trace_start"() <{level = 10 : i32, message = "bqd,bkd->bqk"}> : () -> ()
    %cst_74 = arith.constant dense<0.000000e+00> : vector<2x8x8xf32>
    %246 = tpu.matmul %244, %245, %cst_74 {dimension_numbers = #tpu.dot_dimension_numbers<[2], [2], [1], [1], [0, 0, 0, 1, 1, 1], [0], [0]>} : vector<2x8x8xbf16>, vector<2x8x8xbf16>, vector<2x8x8xf32> -> vector<2x8x8xf32>
    "tpu.trace_stop"() : () -> ()
    %247 = arith.addf %246, %34 : vector<2x8x8xf32>
    %cst_75 = arith.constant dense<0xFF800000> : vector<2x8xf32>
    %248 = vector.multi_reduction <maximumf>, %247, %cst_75 [2] : vector<2x8x8xf32> to vector<2x8xf32>
    %249 = vector.shape_cast %248 : vector<2x8xf32> to vector<2x8x1xf32>
    %250 = vector.broadcast %249 : vector<2x8x1xf32> to vector<2x8x8xf32>
    %251 = arith.subf %247, %250 : vector<2x8x8xf32>
    %252 = math.exp %251 : vector<2x8x8xf32>
    %cst_76 = arith.constant dense<0.000000e+00> : vector<2x8xf32>
    %253 = vector.multi_reduction <add>, %252, %cst_76 [2] : vector<2x8x8xf32> to vector<2x8xf32>
    %254 = vector.shape_cast %253 : vector<2x8xf32> to vector<2x8x1xf32>
    %255 = tpu.reciprocal %254 {approx = true} : vector<2x8x1xf32> -> vector<2x8x1xf32>
    %256 = vector.broadcast %255 : vector<2x8x1xf32> to vector<2x8x8xf32>
    %257 = arith.mulf %252, %256 : vector<2x8x8xf32>
    %258 = arith.truncf %257 : vector<2x8x8xf32> to vector<2x8x8xbf16>
    %259 = arith.truncf %243 : vector<2x8x32xf32> to vector<2x8x32xbf16>
    "tpu.trace_start"() <{level = 10 : i32, message = "bqk,bkh->bqh"}> : () -> ()
    %cst_77 = arith.constant dense<0.000000e+00> : vector<2x8x32xf32>
    %260 = tpu.matmul %258, %259, %cst_77 {dimension_numbers = #tpu.dot_dimension_numbers<[2], [1], [1], [2], [0, 0, 0, 1, 1, 2], [0], [0]>} : vector<2x8x8xbf16>, vector<2x8x32xbf16>, vector<2x8x32xf32> -> vector<2x8x32xf32>
    "tpu.trace_stop"() : () -> ()
    %261 = arith.addf %237, %260 : vector<2x8x32xf32>
    %262 = vector.extract_strided_slice %234 {offsets = [0, 8], sizes = [16, 8], strides = [1, 1]} : vector<16x64xf32> to vector<16x8xf32>
    %263 = vector.shape_cast %262 : vector<16x8xf32> to vector<2x8x8xf32>
    %264 = vector.extract_strided_slice %234 {offsets = [0, 40], sizes = [16, 8], strides = [1, 1]} : vector<16x64xf32> to vector<16x8xf32>
    %265 = vector.shape_cast %264 : vector<16x8xf32> to vector<2x8x8xf32>
    %266 = vector.extract_strided_slice %236 {offsets = [0, 32], sizes = [16, 32], strides = [1, 1]} : vector<16x128xf32> to vector<16x32xf32>
    %267 = vector.shape_cast %266 : vector<16x32xf32> to vector<2x8x32xf32>
    %268 = arith.truncf %263 : vector<2x8x8xf32> to vector<2x8x8xbf16>
    %269 = arith.truncf %265 : vector<2x8x8xf32> to vector<2x8x8xbf16>
    "tpu.trace_start"() <{level = 10 : i32, message = "bqd,bkd->bqk"}> : () -> ()
    %cst_78 = arith.constant dense<0.000000e+00> : vector<2x8x8xf32>
    %270 = tpu.matmul %268, %269, %cst_78 {dimension_numbers = #tpu.dot_dimension_numbers<[2], [2], [1], [1], [0, 0, 0, 1, 1, 1], [0], [0]>} : vector<2x8x8xbf16>, vector<2x8x8xbf16>, vector<2x8x8xf32> -> vector<2x8x8xf32>
    "tpu.trace_stop"() : () -> ()
    %271 = arith.addf %270, %34 : vector<2x8x8xf32>
    %cst_79 = arith.constant dense<0xFF800000> : vector<2x8xf32>
    %272 = vector.multi_reduction <maximumf>, %271, %cst_79 [2] : vector<2x8x8xf32> to vector<2x8xf32>
    %273 = vector.shape_cast %272 : vector<2x8xf32> to vector<2x8x1xf32>
    %274 = vector.broadcast %273 : vector<2x8x1xf32> to vector<2x8x8xf32>
    %275 = arith.subf %271, %274 : vector<2x8x8xf32>
    %276 = math.exp %275 : vector<2x8x8xf32>
    %cst_80 = arith.constant dense<0.000000e+00> : vector<2x8xf32>
    %277 = vector.multi_reduction <add>, %276, %cst_80 [2] : vector<2x8x8xf32> to vector<2x8xf32>
    %278 = vector.shape_cast %277 : vector<2x8xf32> to vector<2x8x1xf32>
    %279 = tpu.reciprocal %278 {approx = true} : vector<2x8x1xf32> -> vector<2x8x1xf32>
    %280 = vector.broadcast %279 : vector<2x8x1xf32> to vector<2x8x8xf32>
    %281 = arith.mulf %276, %280 : vector<2x8x8xf32>
    %282 = arith.truncf %281 : vector<2x8x8xf32> to vector<2x8x8xbf16>
    %283 = arith.truncf %267 : vector<2x8x32xf32> to vector<2x8x32xbf16>
    "tpu.trace_start"() <{level = 10 : i32, message = "bqk,bkh->bqh"}> : () -> ()
    %cst_81 = arith.constant dense<0.000000e+00> : vector<2x8x32xf32>
    %284 = tpu.matmul %282, %283, %cst_81 {dimension_numbers = #tpu.dot_dimension_numbers<[2], [1], [1], [2], [0, 0, 0, 1, 1, 2], [0], [0]>} : vector<2x8x8xbf16>, vector<2x8x32xbf16>, vector<2x8x32xf32> -> vector<2x8x32xf32>
    "tpu.trace_stop"() : () -> ()
    %285 = arith.addf %261, %284 : vector<2x8x32xf32>
    %286 = vector.extract_strided_slice %234 {offsets = [0, 16], sizes = [16, 8], strides = [1, 1]} : vector<16x64xf32> to vector<16x8xf32>
    %287 = vector.shape_cast %286 : vector<16x8xf32> to vector<2x8x8xf32>
    %288 = vector.extract_strided_slice %234 {offsets = [0, 48], sizes = [16, 8], strides = [1, 1]} : vector<16x64xf32> to vector<16x8xf32>
    %289 = vector.shape_cast %288 : vector<16x8xf32> to vector<2x8x8xf32>
    %290 = vector.extract_strided_slice %236 {offsets = [0, 64], sizes = [16, 32], strides = [1, 1]} : vector<16x128xf32> to vector<16x32xf32>
    %291 = vector.shape_cast %290 : vector<16x32xf32> to vector<2x8x32xf32>
    %292 = arith.truncf %287 : vector<2x8x8xf32> to vector<2x8x8xbf16>
    %293 = arith.truncf %289 : vector<2x8x8xf32> to vector<2x8x8xbf16>
    "tpu.trace_start"() <{level = 10 : i32, message = "bqd,bkd->bqk"}> : () -> ()
    %cst_82 = arith.constant dense<0.000000e+00> : vector<2x8x8xf32>
    %294 = tpu.matmul %292, %293, %cst_82 {dimension_numbers = #tpu.dot_dimension_numbers<[2], [2], [1], [1], [0, 0, 0, 1, 1, 1], [0], [0]>} : vector<2x8x8xbf16>, vector<2x8x8xbf16>, vector<2x8x8xf32> -> vector<2x8x8xf32>
    "tpu.trace_stop"() : () -> ()
    %295 = arith.addf %294, %34 : vector<2x8x8xf32>
    %cst_83 = arith.constant dense<0xFF800000> : vector<2x8xf32>
    %296 = vector.multi_reduction <maximumf>, %295, %cst_83 [2] : vector<2x8x8xf32> to vector<2x8xf32>
    %297 = vector.shape_cast %296 : vector<2x8xf32> to vector<2x8x1xf32>
    %298 = vector.broadcast %297 : vector<2x8x1xf32> to vector<2x8x8xf32>
    %299 = arith.subf %295, %298 : vector<2x8x8xf32>
    %300 = math.exp %299 : vector<2x8x8xf32>
    %cst_84 = arith.constant dense<0.000000e+00> : vector<2x8xf32>
    %301 = vector.multi_reduction <add>, %300, %cst_84 [2] : vector<2x8x8xf32> to vector<2x8xf32>
    %302 = vector.shape_cast %301 : vector<2x8xf32> to vector<2x8x1xf32>
    %303 = tpu.reciprocal %302 {approx = true} : vector<2x8x1xf32> -> vector<2x8x1xf32>
    %304 = vector.broadcast %303 : vector<2x8x1xf32> to vector<2x8x8xf32>
    %305 = arith.mulf %300, %304 : vector<2x8x8xf32>
    %306 = arith.truncf %305 : vector<2x8x8xf32> to vector<2x8x8xbf16>
    %307 = arith.truncf %291 : vector<2x8x32xf32> to vector<2x8x32xbf16>
    "tpu.trace_start"() <{level = 10 : i32, message = "bqk,bkh->bqh"}> : () -> ()
    %cst_85 = arith.constant dense<0.000000e+00> : vector<2x8x32xf32>
    %308 = tpu.matmul %306, %307, %cst_85 {dimension_numbers = #tpu.dot_dimension_numbers<[2], [1], [1], [2], [0, 0, 0, 1, 1, 2], [0], [0]>} : vector<2x8x8xbf16>, vector<2x8x32xbf16>, vector<2x8x32xf32> -> vector<2x8x32xf32>
    "tpu.trace_stop"() : () -> ()
    %309 = arith.addf %285, %308 : vector<2x8x32xf32>
    %310 = vector.extract_strided_slice %234 {offsets = [0, 24], sizes = [16, 8], strides = [1, 1]} : vector<16x64xf32> to vector<16x8xf32>
    %311 = vector.shape_cast %310 : vector<16x8xf32> to vector<2x8x8xf32>
    %312 = vector.extract_strided_slice %234 {offsets = [0, 56], sizes = [16, 8], strides = [1, 1]} : vector<16x64xf32> to vector<16x8xf32>
    %313 = vector.shape_cast %312 : vector<16x8xf32> to vector<2x8x8xf32>
    %314 = vector.extract_strided_slice %236 {offsets = [0, 96], sizes = [16, 32], strides = [1, 1]} : vector<16x128xf32> to vector<16x32xf32>
    %315 = vector.shape_cast %314 : vector<16x32xf32> to vector<2x8x32xf32>
    %316 = arith.truncf %311 : vector<2x8x8xf32> to vector<2x8x8xbf16>
    %317 = arith.truncf %313 : vector<2x8x8xf32> to vector<2x8x8xbf16>
    "tpu.trace_start"() <{level = 10 : i32, message = "bqd,bkd->bqk"}> : () -> ()
    %cst_86 = arith.constant dense<0.000000e+00> : vector<2x8x8xf32>
    %318 = tpu.matmul %316, %317, %cst_86 {dimension_numbers = #tpu.dot_dimension_numbers<[2], [2], [1], [1], [0, 0, 0, 1, 1, 1], [0], [0]>} : vector<2x8x8xbf16>, vector<2x8x8xbf16>, vector<2x8x8xf32> -> vector<2x8x8xf32>
    "tpu.trace_stop"() : () -> ()
    %319 = arith.addf %318, %34 : vector<2x8x8xf32>
    %cst_87 = arith.constant dense<0xFF800000> : vector<2x8xf32>
    %320 = vector.multi_reduction <maximumf>, %319, %cst_87 [2] : vector<2x8x8xf32> to vector<2x8xf32>
    %321 = vector.shape_cast %320 : vector<2x8xf32> to vector<2x8x1xf32>
    %322 = vector.broadcast %321 : vector<2x8x1xf32> to vector<2x8x8xf32>
    %323 = arith.subf %319, %322 : vector<2x8x8xf32>
    %324 = math.exp %323 : vector<2x8x8xf32>
    %cst_88 = arith.constant dense<0.000000e+00> : vector<2x8xf32>
    %325 = vector.multi_reduction <add>, %324, %cst_88 [2] : vector<2x8x8xf32> to vector<2x8xf32>
    %326 = vector.shape_cast %325 : vector<2x8xf32> to vector<2x8x1xf32>
    %327 = tpu.reciprocal %326 {approx = true} : vector<2x8x1xf32> -> vector<2x8x1xf32>
    %328 = vector.broadcast %327 : vector<2x8x1xf32> to vector<2x8x8xf32>
    %329 = arith.mulf %324, %328 : vector<2x8x8xf32>
    %330 = arith.truncf %329 : vector<2x8x8xf32> to vector<2x8x8xbf16>
    %331 = arith.truncf %315 : vector<2x8x32xf32> to vector<2x8x32xbf16>
    "tpu.trace_start"() <{level = 10 : i32, message = "bqk,bkh->bqh"}> : () -> ()
    %cst_89 = arith.constant dense<0.000000e+00> : vector<2x8x32xf32>
    %332 = tpu.matmul %330, %331, %cst_89 {dimension_numbers = #tpu.dot_dimension_numbers<[2], [1], [1], [2], [0, 0, 0, 1, 1, 2], [0], [0]>} : vector<2x8x8xbf16>, vector<2x8x32xbf16>, vector<2x8x32xf32> -> vector<2x8x32xf32>
    "tpu.trace_stop"() : () -> ()
    %333 = arith.addf %309, %332 : vector<2x8x32xf32>
    %334 = vector.shape_cast %333 : vector<2x8x32xf32> to vector<16x32xf32>
    %335 = vector.broadcast %224 : vector<1x32xf32> to vector<16x32xf32>
    %336 = arith.addf %334, %335 : vector<16x32xf32>
    %337 = arith.addf %218, %336 : vector<16x32xf32>
    %cst_90 = arith.constant dense<0.000000e+00> : vector<16xf32>
    %338 = vector.multi_reduction <add>, %337, %cst_90 [1] : vector<16x32xf32> to vector<16xf32>
    %339 = vector.shape_cast %338 : vector<16xf32> to vector<16x1xf32>
    %cst_91 = arith.constant 3.200000e+01 : f32
    %340 = vector.broadcast %cst_91 : f32 to vector<16x1xf32>
    %341 = arith.divf %339, %340 : vector<16x1xf32>
    %342 = vector.broadcast %341 : vector<16x1xf32> to vector<16x32xf32>
    %343 = arith.subf %337, %342 : vector<16x32xf32>
    %344 = vector.broadcast %341 : vector<16x1xf32> to vector<16x32xf32>
    %345 = arith.subf %337, %344 : vector<16x32xf32>
    %346 = arith.mulf %343, %345 : vector<16x32xf32>
    %cst_92 = arith.constant dense<0.000000e+00> : vector<16xf32>
    %347 = vector.multi_reduction <add>, %346, %cst_92 [1] : vector<16x32xf32> to vector<16xf32>
    %348 = vector.shape_cast %347 : vector<16xf32> to vector<16x1xf32>
    %cst_93 = arith.constant 3.200000e+01 : f32
    %349 = vector.broadcast %cst_93 : f32 to vector<16x1xf32>
    %350 = arith.divf %348, %349 : vector<16x1xf32>
    %351 = vector.broadcast %341 : vector<16x1xf32> to vector<16x32xf32>
    %352 = arith.subf %337, %351 : vector<16x32xf32>
    %cst_94 = arith.constant 9.99999996E-13 : f32
    %353 = vector.broadcast %cst_94 : f32 to vector<16x1xf32>
    %354 = arith.addf %350, %353 : vector<16x1xf32>
    %355 = math.rsqrt %354 : vector<16x1xf32>
    %356 = vector.broadcast %355 : vector<16x1xf32> to vector<16x32xf32>
    %357 = arith.mulf %352, %356 : vector<16x32xf32>
    %358 = vector.broadcast %225 : vector<1x32xf32> to vector<16x32xf32>
    %359 = arith.mulf %357, %358 : vector<16x32xf32>
    %360 = vector.broadcast %226 : vector<1x32xf32> to vector<16x32xf32>
    %361 = arith.addf %359, %360 : vector<16x32xf32>
    %362 = arith.truncf %361 : vector<16x32xf32> to vector<16x32xbf16>
    %cst_95 = arith.constant dense<0.000000e+00> : vector<16x64xf32>
    %363 = tpu.matmul %362, %221, %cst_95 {dimension_numbers = #tpu.dot_dimension_numbers<[1], [0], [0], [1], [0, 0, 1, 1], [], []>} : vector<16x32xbf16>, vector<32x64xbf16>, vector<16x64xf32> -> vector<16x64xf32>
    %364 = vector.broadcast %227 : vector<1x64xf32> to vector<16x64xf32>
    %365 = arith.addf %363, %364 : vector<16x64xf32>
    %cst_96 = arith.constant 5.000000e-01 : f32
    %366 = vector.broadcast %cst_96 : f32 to vector<16x64xf32>
    %367 = arith.mulf %366, %365 : vector<16x64xf32>
    %cst_97 = arith.constant 0.707106769 : f32
    %368 = vector.broadcast %cst_97 : f32 to vector<16x64xf32>
    %369 = arith.mulf %365, %368 : vector<16x64xf32>
    %370 = math.erf %369 : vector<16x64xf32>
    %cst_98 = arith.constant 1.000000e+00 : f32
    %371 = vector.broadcast %cst_98 : f32 to vector<16x64xf32>
    %372 = arith.addf %371, %370 : vector<16x64xf32>
    %373 = arith.mulf %367, %372 : vector<16x64xf32>
    %374 = arith.truncf %373 : vector<16x64xf32> to vector<16x64xbf16>
    %cst_99 = arith.constant dense<0.000000e+00> : vector<16x32xf32>
    %375 = tpu.matmul %374, %222, %cst_99 {dimension_numbers = #tpu.dot_dimension_numbers<[1], [0], [0], [1], [0, 0, 1, 1], [], []>} : vector<16x64xbf16>, vector<64x32xbf16>, vector<16x32xf32> -> vector<16x32xf32>
    %376 = vector.broadcast %228 : vector<1x32xf32> to vector<16x32xf32>
    %377 = arith.addf %375, %376 : vector<16x32xf32>
    %378 = arith.addf %361, %377 : vector<16x32xf32>
    %cst_100 = arith.constant dense<0.000000e+00> : vector<16xf32>
    %379 = vector.multi_reduction <add>, %378, %cst_100 [1] : vector<16x32xf32> to vector<16xf32>
    %380 = vector.shape_cast %379 : vector<16xf32> to vector<16x1xf32>
    %cst_101 = arith.constant 3.200000e+01 : f32
    %381 = vector.broadcast %cst_101 : f32 to vector<16x1xf32>
    %382 = arith.divf %380, %381 : vector<16x1xf32>
    %383 = vector.broadcast %382 : vector<16x1xf32> to vector<16x32xf32>
    %384 = arith.subf %378, %383 : vector<16x32xf32>
    %385 = vector.broadcast %382 : vector<16x1xf32> to vector<16x32xf32>
    %386 = arith.subf %378, %385 : vector<16x32xf32>
    %387 = arith.mulf %384, %386 : vector<16x32xf32>
    %cst_102 = arith.constant dense<0.000000e+00> : vector<16xf32>
    %388 = vector.multi_reduction <add>, %387, %cst_102 [1] : vector<16x32xf32> to vector<16xf32>
    %389 = vector.shape_cast %388 : vector<16xf32> to vector<16x1xf32>
    %cst_103 = arith.constant 3.200000e+01 : f32
    %390 = vector.broadcast %cst_103 : f32 to vector<16x1xf32>
    %391 = arith.divf %389, %390 : vector<16x1xf32>
    %392 = vector.broadcast %382 : vector<16x1xf32> to vector<16x32xf32>
    %393 = arith.subf %378, %392 : vector<16x32xf32>
    %cst_104 = arith.constant 9.99999996E-13 : f32
    %394 = vector.broadcast %cst_104 : f32 to vector<16x1xf32>
    %395 = arith.addf %391, %394 : vector<16x1xf32>
    %396 = math.rsqrt %395 : vector<16x1xf32>
    %397 = vector.broadcast %396 : vector<16x1xf32> to vector<16x32xf32>
    %398 = arith.mulf %393, %397 : vector<16x32xf32>
    %399 = vector.broadcast %229 : vector<1x32xf32> to vector<16x32xf32>
    %400 = arith.mulf %398, %399 : vector<16x32xf32>
    %401 = vector.broadcast %230 : vector<1x32xf32> to vector<16x32xf32>
    %402 = arith.addf %400, %401 : vector<16x32xf32>
    %403 = vector.shape_cast %402 : vector<16x32xf32> to vector<2x8x32xf32>
    %404 = vector.extract_strided_slice %403 {offsets = [0, 0, 0], sizes = [2, 1, 32], strides = [1, 1, 1]} : vector<2x8x32xf32> to vector<2x1x32xf32>
    %405 = vector.shape_cast %404 : vector<2x1x32xf32> to vector<2x32xf32>
    %c320 = arith.constant 320 : index
    %c0_105 = arith.constant 0 : index
    %406 = vector.load %arg2[%c320, %c0_105] : memref<384x128xbf16, #tpu.memory_space<vmem>>, vector<32x32xbf16>
    %c352 = arith.constant 352 : index
    %c0_106 = arith.constant 0 : index
    %407 = vector.load %arg2[%c352, %c0_106] : memref<384x128xbf16, #tpu.memory_space<vmem>>, vector<32x128xbf16>
    %c18 = arith.constant 18 : index
    %c0_107 = arith.constant 0 : index
    %408 = vector.load %arg3[%c18, %c0_107] : memref<20x128xf32, #tpu.memory_space<vmem>>, vector<1x32xf32>
    %c19 = arith.constant 19 : index
    %c0_108 = arith.constant 0 : index
    %409 = vector.load %arg3[%c19, %c0_108] : memref<20x128xf32, #tpu.memory_space<vmem>>, vector<1x128xf32>
    %410 = arith.truncf %405 : vector<2x32xf32> to vector<2x32xbf16>
    %cst_109 = arith.constant dense<0.000000e+00> : vector<2x32xf32>
    %411 = tpu.matmul %410, %406, %cst_109 {dimension_numbers = #tpu.dot_dimension_numbers<[1], [0], [0], [1], [0, 0, 1, 1], [], []>} : vector<2x32xbf16>, vector<32x32xbf16>, vector<2x32xf32> -> vector<2x32xf32>
    %412 = vector.broadcast %408 : vector<1x32xf32> to vector<2x32xf32>
    %413 = arith.addf %411, %412 : vector<2x32xf32>
    %414 = math.tanh %413 : vector<2x32xf32>
    %415 = arith.truncf %414 : vector<2x32xf32> to vector<2x32xbf16>
    %cst_110 = arith.constant dense<0.000000e+00> : vector<2x128xf32>
    %416 = tpu.matmul %415, %407, %cst_110 {dimension_numbers = #tpu.dot_dimension_numbers<[1], [0], [0], [1], [0, 0, 1, 1], [], []>} : vector<2x32xbf16>, vector<32x128xbf16>, vector<2x128xf32> -> vector<2x128xf32>
    %417 = vector.broadcast %409 : vector<1x128xf32> to vector<2x128xf32>
    %418 = arith.addf %416, %417 : vector<2x128xf32>
    %c0_111 = arith.constant 0 : index
    %c0_112 = arith.constant 0 : index
    %419 = vector.load %arg4[%c0_111, %c0_112] : memref<2x128xf32, #tpu.memory_space<vmem>>, vector<2x128xf32>
    tpu.vector_store %arg4[%c0_111, %c0_112], %418 {strides = array<i32>} : memref<2x128xf32, #tpu.memory_space<vmem>>, vector<2x128xf32>,
    return
  }
}

</mosaic_0001>

<llo_original>
// kernel: _lambda_.1
$region0: #{_lambda_.1}
  #allocation0 [shape = 'u32[]', space=smem, size = 0x4, offset = 0x4, fixed_abs, tag = 'smem constant byte address 0x4 - core index']
  #allocation1 [shape = 'u32[144,128]{1,0:T(1,128)}', space=vmem, size = 0x12000, scoped, tag = 'internal scratch']
  %s0 = inlined_call_operand.vmem [shape: f32[16,32], index: 0, kind: input, shape index: {}]
  %s1 = inlined_call_operand.vmem [shape: f32[2,8], index: 1, kind: input, shape index: {}]
  %s2 = inlined_call_operand.vmem [shape: bf16[384,128], index: 2, kind: input, shape index: {}]
  %s3 = inlined_call_operand.vmem [shape: f32[20,128], index: 3, kind: input, shape index: {}]
  %s4 = inlined_call_operand.hbm [shape: f32[2,128], index: 4, kind: output, shape index: {}]
  %s5 = sld [smem:[#allocation0]]
  $region26: #{_lambda_.1} parent=0
    _
  %s7 = ssub.s32 1, %s5
  %s8 = scalar_select 0, %s7, %s5
  $region1: #{_lambda_.1} parent=0
    #allocation2 [shape = 'u8[1024]{0}', space=vmem, size = 0x400, scoped, tag = 'output window, operand 0, single buffered']
    #allocation3 [shape = 's32[1]{0}', space=sflag, size = 0x4, scoped, tag = 'scoped memory for _lambda_.1']
    %9 = vsyncpa [#allocation3], 0
    // Predicated region
    $region2: #{_lambda_.1} parent=1 // pred_check
      _
    $region3: #{_lambda_.1} parent=1 // pred_check_branch
      %11 = sbr.rel (0) target = $region5
    $region4: #{_lambda_.1} parent=1 // pred_region
      _
    $region5: #{_lambda_.1} parent=1 // pred_fallthru
      _
    // Predicated region
    $region6: #{_lambda_.1} parent=1 // pred_check
      _
    $region7: #{_lambda_.1} parent=1 // pred_check_branch
      %13 = sbr.rel (0) target = $region9
    $region8: #{_lambda_.1} parent=1 // pred_region
      _
    $region9: #{_lambda_.1} parent=1 // pred_fallthru
      _
    // Predicated region
    $region10: #{_lambda_.1} parent=1 // pred_check
      _
    $region11: #{_lambda_.1} parent=1 // pred_check_branch
      %15 = sbr.rel (0) target = $region13
    $region12: #{_lambda_.1} parent=1 // pred_region
      _
    $region13: #{_lambda_.1} parent=1 // pred_fallthru
      _
    // Predicated region
    $region14: #{_lambda_.1} parent=1 // pred_check
      _
    $region15: #{_lambda_.1} parent=1 // pred_check_branch
      %17 = sbr.rel (0) target = $region17
    $region16: #{_lambda_.1} parent=1 // pred_region
      _
    $region17: #{_lambda_.1} parent=1 // pred_fallthru
      _
    %v19 = vld [vmem:[%s0] sm:$0xff]
    %v20 = vld [vmem:[%s0 + $0x8] sm:$0xff]
    %v21 = vld [vmem:[%s3] sm:$0x1]
    %v22 = vld [vmem:[%s3 + $0x1] sm:$0x1]
    %vm23 = vcmask 261120
    %v24 = vsel %vm23, %v19, 0.0
    %25 = vadd.xlane.f32.xlu0 %v24
    %v26 = vpop.xlane.xlu0 %25
    %v27 = vsel %vm23, %v20, 0.0
    %28 = vadd.xlane.f32.xlu0 %v27
    %v29 = vpop.xlane.xlu0 %28
    %v30 = vrcp.pop 32.0
    %v31 = vmul.f32 %v26, %v30
    %v32 = vmul.f32 %v29, %v30
    %v33 = vsub.f32 %v19, %v31
    %v34 = vsub.f32 %v20, %v32
    %v35 = vmul.f32 %v33, %v33
    %v36 = vmul.f32 %v34, %v34
    %v37 = vsel %vm23, %v35, 0.0
    %38 = vadd.xlane.f32.xlu0 %v37
    %v39 = vpop.xlane.xlu0 %38
    %v40 = vsel %vm23, %v36, 0.0
    %41 = vadd.xlane.f32.xlu0 %v40
    %v42 = vpop.xlane.xlu0 %41
    %v43 = vmul.f32 %v39, %v30
    %v44 = vmul.f32 %v42, %v30
    %v45 = vadd.f32 %v43, 1e-12
    %v46 = vadd.f32 %v44, 1e-12
    %v47 = vrsqrt.pop %v45
    %v48 = vrsqrt.pop %v46
    %v49 = vmul.f32 %v33, %v47
    %v50 = vmul.f32 %v34, %v48
    %v51 = vlaneseq
    %v52 = vshrl.u32 %v51, 7
    %v53 = vsub.s32 0, %v52
    %v54 = vrot.slane %v21, %v53
    %v55 = vmul.f32 %v49, %v54
    %v56 = vmul.f32 %v50, %v54
    %v57 = vlaneseq
    %v58 = vshrl.u32 %v57, 7
    %v59 = vsub.s32 0, %v58
    %v60 = vrot.slane %v22, %v59
    %v61 = vadd.f32 %v55, %v60
    %v62 = vadd.f32 %v56, %v60
    %v63 = vld [vmem:[%s1] sm:$0x3]
    %v64 = vsub.f32 1.0, %v63
    %v65 = vmul.f32 %v64, -1e+09
    %v68 = vunpack.c.l.s4 1966171168
    %v69 = vunpack.c.0.s8 %v68
    %v70 = vlaneseq
    %v71 = vshrl.u32 %v70, 7
    %v72 = vsub.s32 %v69, %v71
    %v73 = vrot.slane %v65, %v72
    %v74 = vcombine.high %v73, %v73
    %v76 = vunpack.c.l.s4 1966171168
    %v77 = vunpack.c.0.s8 %v76
    %v78 = vlaneseq
    %v79 = vshrl.u32 %v78, 7
    %v80 = vsub.s32 %v77, %v79
    %v81 = vrot.slane %v73, %v80
    %v83 = vunpack.c.l.s4 1966171168
    %v84 = vunpack.c.0.s8 %v83
    %v85 = vlaneseq
    %v86 = vshrl.u32 %v85, 7
    %v87 = vsub.s32 %v84, %v86
    %v88 = vrot.slane %v74, %v87
    %v89 = vlaneseq
    %v90 = vshrl.u32 %v89, 7
    %v91 = vsub.s32 0, %v90
    %v92 = vrot.slane %v81, %v91
    %v93 = vlaneseq
    %v94 = vshrl.u32 %v93, 7
    %v95 = vsub.s32 0, %v94
    %v96 = vrot.slane %v88, %v95
    %v99 = vld [vmem:[%s2] sm:$0xf]
    %v100 = vld [vmem:[%s2 + $0x4] sm:$0xf]
    %v101 = vld [vmem:[%s2 + $0x8] sm:$0xf]
    %v102 = vld [vmem:[%s2 + $0xc] sm:$0xf]
    %v103 = vld [vmem:[%s2 + $0x10] sm:$0xf]
    %v104 = vld [vmem:[%s2 + $0x14] sm:$0xf]
    %v105 = vld [vmem:[%s2 + $0x18] sm:$0xf]
    %v106 = vld [vmem:[%s2 + $0x1c] sm:$0xf]
    %v107 = vld [vmem:[%s2 + $0x20] sm:$0xf]
    %v108 = vld [vmem:[%s2 + $0x24] sm:$0xf]
    %v109 = vld [vmem:[%s2 + $0x28] sm:$0xf]
    %v110 = vld [vmem:[%s2 + $0x2c] sm:$0xf]
    %v111 = vld [vmem:[%s2 + $0x30] sm:$0xf]
    %v112 = vld [vmem:[%s2 + $0x34] sm:$0xf]
    %v113 = vld [vmem:[%s2 + $0x38] sm:$0xf]
    %v114 = vld [vmem:[%s2 + $0x3c] sm:$0xf]
    %v115 = vld [vmem:[%s2 + $0x40] sm:$0xf]
    %v116 = vld [vmem:[%s2 + $0x44] sm:$0xf]
    %v117 = vld [vmem:[%s2 + $0x48] sm:$0xf]
    %v118 = vld [vmem:[%s2 + $0x4c] sm:$0xf]
    %v119 = vld [vmem:[%s3 + $0x2] sm:$0x1]
    %v120 = vld [vmem:[%s3 + $0x3] sm:$0x1]
    %v121 = vld [vmem:[%s3 + $0x4] sm:$0x1]
    %v122 = vld [vmem:[%s3 + $0x5] sm:$0x1]
    %v123 = vld [vmem:[%s3 + $0x6] sm:$0x1]
    %v124 = vld [vmem:[%s3 + $0x7] sm:$0x1]
    %v125 = vld [vmem:[%s3 + $0x8] sm:$0x1]
    %v126 = vld [vmem:[%s3 + $0x9] sm:$0x1]
    %v127 = vpack.c.bf16 %v62, %v61
    %v128 = vlaneseq
    %v129 = vshrl.u32 %v128, 7
    %v130 = vsub.s32 0, %v129
    %v131 = vrot.slane %v119, %v130
    %v136 = vunpack.c.l.b16 %v99
    %v137 = vunpack.c.l.b16 %v100
    %v138 = vunpack.c.l.b16 %v101
    %v139 = vunpack.c.l.b16 %v102
    %v140 = vpack.c.b16 %v137, %v136
    %v141 = vpack.c.b16 %v139, %v138
    %v145 = vsel %vm23, %v127, 0
    %147 = vmatprep.subr.bf16.mxu0 0
    %148 = vmatpush1.bf16.msra.mxu0 %v140
    %149 = vmatprep.subr.bf16.mxu0 0
    %150 = vmatpush1.bf16.msra.mxu0 %v141
    %151 = vmatprep.subr.bf16.mxu0 0
    %152 = vmatpush1.bf16.msra.mxu0 0
    %153 = vmatprep.subr.bf16.mxu0 0
    %154 = vmatpush1.bf16.msra.mxu0 0
    %155 = vmatprep.subr.bf16.mxu0 0
    %156 = vmatpush1.bf16.msra.mxu0 0
    %157 = vmatprep.subr.bf16.mxu0 0
    %158 = vmatpush1.bf16.msra.mxu0 0
    %159 = vmatprep.subr.bf16.mxu0 0
    %160 = vmatpush1.bf16.msra.mxu0 0
    %161 = vmatprep.subr.bf16.mxu0 0
    %162 = vmatpush1.bf16.msra.mxu0 0
    %163 = vmatprep.subr.bf16.mxu0 0
    %164 = vmatpush1.bf16.msra.mxu0 0
    %165 = vmatprep.subr.bf16.mxu0 0
    %166 = vmatpush1.bf16.msra.mxu0 0
    %167 = vmatprep.subr.bf16.mxu0 0
    %168 = vmatpush1.bf16.msra.mxu0 0
    %169 = vmatprep.subr.bf16.mxu0 0
    %170 = vmatpush1.bf16.msra.mxu0 0
    %171 = vmatprep.subr.bf16.mxu0 0
    %172 = vmatpush1.bf16.msra.mxu0 0
    %173 = vmatprep.subr.bf16.mxu0 0
    %174 = vmatpush1.bf16.msra.mxu0 0
    %175 = vmatprep.subr.bf16.mxu0 0
    %176 = vmatpush1.bf16.msra.mxu0 0
    %177 = vmatprep.subr.bf16.mxu0 0
    %178 = vmatpush1.bf16.msra.mxu0 0
    %179 = vmatprep.mubr.bf16.mxu0 0
    %180 = vmatmul.mubr.bf16.gmra.mrb[0].mxu0 %v145
    %v181 = vpop.f32.mrb[0].mxu0
    %v182 = vadd.f32 %v131, %v181
    %v183 = vpop.f32.mrb[0].mxu0
    %v184 = vpop.f32.mrb[0].mxu0
    %v185 = vadd.f32 %v131, %v184
    %v186 = vpop.f32.mrb[0].mxu0
    %187 = vdwg.mxu0
    %v192 = vunpack.c.l.b16 %v103
    %v193 = vunpack.c.l.b16 %v104
    %v194 = vunpack.c.l.b16 %v105
    %v195 = vunpack.c.l.b16 %v106
    %v196 = vpack.c.b16 %v193, %v192
    %v197 = vpack.c.b16 %v195, %v194
    %200 = vmatprep.subr.bf16.mxu0 0
    %201 = vmatpush1.bf16.msra.mxu0 %v196
    %202 = vmatprep.subr.bf16.mxu0 0
    %203 = vmatpush1.bf16.msra.mxu0 %v197
    %204 = vmatprep.subr.bf16.mxu0 0
    %205 = vmatpush1.bf16.msra.mxu0 0
    %206 = vmatprep.subr.bf16.mxu0 0
    %207 = vmatpush1.bf16.msra.mxu0 0
    %208 = vmatprep.subr.bf16.mxu0 0
    %209 = vmatpush1.bf16.msra.mxu0 0
    %210 = vmatprep.subr.bf16.mxu0 0
    %211 = vmatpush1.bf16.msra.mxu0 0
    %212 = vmatprep.subr.bf16.mxu0 0
    %213 = vmatpush1.bf16.msra.mxu0 0
    %214 = vmatprep.subr.bf16.mxu0 0
    %215 = vmatpush1.bf16.msra.mxu0 0
    %216 = vmatprep.subr.bf16.mxu0 0
    %217 = vmatpush1.bf16.msra.mxu0 0
    %218 = vmatprep.subr.bf16.mxu0 0
    %219 = vmatpush1.bf16.msra.mxu0 0
    %220 = vmatprep.subr.bf16.mxu0 0
    %221 = vmatpush1.bf16.msra.mxu0 0
    %222 = vmatprep.subr.bf16.mxu0 0
    %223 = vmatpush1.bf16.msra.mxu0 0
    %224 = vmatprep.subr.bf16.mxu0 0
    %225 = vmatpush1.bf16.msra.mxu0 0
    %226 = vmatprep.subr.bf16.mxu0 0
    %227 = vmatpush1.bf16.msra.mxu0 0
    %228 = vmatprep.subr.bf16.mxu0 0
    %229 = vmatpush1.bf16.msra.mxu0 0
    %230 = vmatprep.subr.bf16.mxu0 0
    %231 = vmatpush1.bf16.msra.mxu0 0
    %232 = vmatprep.mubr.bf16.mxu0 0
    %233 = vmatmul.mubr.bf16.gmra.mrb[0].mxu0 %v145
    %v234 = vpop.f32.mrb[0].mxu0
    %v235 = vadd.f32 0.0, %v234
    %v236 = vpop.f32.mrb[0].mxu0
    %v237 = vpop.f32.mrb[0].mxu0
    %v238 = vadd.f32 0.0, %v237
    %v239 = vpop.f32.mrb[0].mxu0
    %240 = vdwg.mxu0
    %v241 = vpack.c.bf16 %v182, %v182
    %v242 = vpack.c.bf16 %v185, %v185
    %244 = vrot.lane.b32.xlu0 %v241, 96
    %v245 = vpop.permute.xlu0 %244
    %vm246 = vcmask 64512
    %v248 = vsel %vm246, %v241, 0
    %v251 = vsel %vm246, %v245, 0
    %253 = vmatprep.subr.bf16.mxu0 0
    %254 = vmatpush1.bf16.xpose.msra.mxu0 %v251
    %255 = vmatprep.subr.bf16.mxu0 0
    %256 = vmatpush1.bf16.xpose.msra.mxu0 0
    %257 = vmatprep.subr.bf16.mxu0 0
    %258 = vmatpush1.bf16.xpose.msra.mxu0 0
    %259 = vmatprep.subr.bf16.mxu0 0
    %260 = vmatpush1.bf16.xpose.msra.mxu0 0
    %261 = vmatprep.subr.bf16.mxu0 0
    %262 = vmatpush1.bf16.xpose.msra.mxu0 0
    %263 = vmatprep.subr.bf16.mxu0 0
    %264 = vmatpush1.bf16.xpose.msra.mxu0 0
    %265 = vmatprep.subr.bf16.mxu0 0
    %266 = vmatpush1.bf16.xpose.msra.mxu0 0
    %267 = vmatprep.subr.bf16.mxu0 0
    %268 = vmatpush1.bf16.xpose.msra.mxu0 0
    %269 = vmatprep.subr.bf16.mxu0 0
    %270 = vmatpush1.bf16.xpose.msra.mxu0 0
    %271 = vmatprep.subr.bf16.mxu0 0
    %272 = vmatpush1.bf16.xpose.msra.mxu0 0
    %273 = vmatprep.subr.bf16.mxu0 0
    %274 = vmatpush1.bf16.xpose.msra.mxu0 0
    %275 = vmatprep.subr.bf16.mxu0 0
    %276 = vmatpush1.bf16.xpose.msra.mxu0 0
    %277 = vmatprep.subr.bf16.mxu0 0
    %278 = vmatpush1.bf16.xpose.msra.mxu0 0
    %279 = vmatprep.subr.bf16.mxu0 0
    %280 = vmatpush1.bf16.xpose.msra.mxu0 0
    %281 = vmatprep.subr.bf16.mxu0 0
    %282 = vmatpush1.bf16.xpose.msra.mxu0 0
    %283 = vmatprep.subr.bf16.mxu0 0
    %284 = vmatpush1.bf16.xpose.msra.mxu0 0
    %285 = vmatprep.mubr.bf16.mxu0 0
    %286 = vmatmul.mubr.bf16.gmra.mrb[0].mxu0 %v248
    %v287 = vpop.f32.mrb[0].mxu0
    %v288 = vadd.f32 %v92, %v287
    %v289 = vpop.f32.mrb[0].mxu0
    %v290 = vpop.f32.mrb[0].mxu0
    %v291 = vpop.f32.mrb[0].mxu0
    %292 = vdwg.mxu0
    %294 = vrot.lane.b32.xlu0 %v242, 96
    %v295 = vpop.permute.xlu0 %294
    %v297 = vsel %vm246, %v242, 0
    %v300 = vsel %vm246, %v295, 0
    %302 = vmatprep.subr.bf16.mxu0 0
    %303 = vmatpush1.bf16.xpose.msra.mxu0 %v300
    %304 = vmatprep.subr.bf16.mxu0 0
    %305 = vmatpush1.bf16.xpose.msra.mxu0 0
    %306 = vmatprep.subr.bf16.mxu0 0
    %307 = vmatpush1.bf16.xpose.msra.mxu0 0
    %308 = vmatprep.subr.bf16.mxu0 0
    %309 = vmatpush1.bf16.xpose.msra.mxu0 0
    %310 = vmatprep.subr.bf16.mxu0 0
    %311 = vmatpush1.bf16.xpose.msra.mxu0 0
    %312 = vmatprep.subr.bf16.mxu0 0
    %313 = vmatpush1.bf16.xpose.msra.mxu0 0
    %314 = vmatprep.subr.bf16.mxu0 0
    %315 = vmatpush1.bf16.xpose.msra.mxu0 0
    %316 = vmatprep.subr.bf16.mxu0 0
    %317 = vmatpush1.bf16.xpose.msra.mxu0 0
    %318 = vmatprep.subr.bf16.mxu0 0
    %319 = vmatpush1.bf16.xpose.msra.mxu0 0
    %320 = vmatprep.subr.bf16.mxu0 0
    %321 = vmatpush1.bf16.xpose.msra.mxu0 0
    %322 = vmatprep.subr.bf16.mxu0 0
    %323 = vmatpush1.bf16.xpose.msra.mxu0 0
    %324 = vmatprep.subr.bf16.mxu0 0
    %325 = vmatpush1.bf16.xpose.msra.mxu0 0
    %326 = vmatprep.subr.bf16.mxu0 0
    %327 = vmatpush1.bf16.xpose.msra.mxu0 0
    %328 = vmatprep.subr.bf16.mxu0 0
    %329 = vmatpush1.bf16.xpose.msra.mxu0 0
    %330 = vmatprep.subr.bf16.mxu0 0
    %331 = vmatpush1.bf16.xpose.msra.mxu0 0
    %332 = vmatprep.subr.bf16.mxu0 0
    %333 = vmatpush1.bf16.xpose.msra.mxu0 0
    %334 = vmatprep.mubr.bf16.mxu0 0
    %335 = vmatmul.mubr.bf16.gmra.mrb[0].mxu0 %v297
    %v336 = vpop.f32.mrb[0].mxu0
    %v337 = vadd.f32 %v96, %v336
    %v338 = vpop.f32.mrb[0].mxu0
    %v339 = vpop.f32.mrb[0].mxu0
    %v340 = vpop.f32.mrb[0].mxu0
    %341 = vdwg.mxu0
    %v342 = vsel %vm246, %v288, -inf
    %343 = vmax.xlane.f32.xlu0 %v342
    %v344 = vpop.xlane.xlu0 %343
    %v345 = vsel %vm246, %v337, -inf
    %346 = vmax.xlane.f32.xlu0 %v345
    %v347 = vpop.xlane.xlu0 %346
    %v348 = vsub.f32 %v288, %v344
    %v349 = vsub.f32 %v337, %v347
    %v350 = vmul.f32 %v348, 1.442695
    %v351 = vpow.pop %v350
    %v352 = vmul.f32 %v349, 1.442695
    %v353 = vpow.pop %v352
    %v354 = vsel %vm246, %v351, 0.0
    %355 = vadd.xlane.f32.xlu0 %v354
    %v356 = vpop.xlane.xlu0 %355
    %v357 = vsel %vm246, %v353, 0.0
    %358 = vadd.xlane.f32.xlu0 %v357
    %v359 = vpop.xlane.xlu0 %358
    %v360 = vrcp.pop %v356
    %v361 = vrcp.pop %v359
    %v362 = vmul.f32 %v351, %v360
    %v363 = vmul.f32 %v353, %v361
    %v364 = vpack.c.bf16 %v362, %v362
    %v365 = vpack.c.bf16 %v363, %v363
    %v366 = vpack.c.bf16 %v235, %v235
    %v367 = vpack.c.bf16 %v238, %v238
    %368 = vrot.lane.b32.xlu0 %v241, 120
    %v369 = vpop.permute.xlu0 %368
    %370 = vrot.lane.b32.xlu0 %v241, 88
    %v371 = vpop.permute.xlu0 %370
    %v373 = vsel %vm246, %v369, 0
    %v376 = vsel %vm246, %v371, 0
    %378 = vmatprep.subr.bf16.mxu0 0
    %379 = vmatpush1.bf16.xpose.msra.mxu0 %v376
    %380 = vmatprep.subr.bf16.mxu0 0
    %381 = vmatpush1.bf16.xpose.msra.mxu0 0
    %382 = vmatprep.subr.bf16.mxu0 0
    %383 = vmatpush1.bf16.xpose.msra.mxu0 0
    %384 = vmatprep.subr.bf16.mxu0 0
    %385 = vmatpush1.bf16.xpose.msra.mxu0 0
    %386 = vmatprep.subr.bf16.mxu0 0
    %387 = vmatpush1.bf16.xpose.msra.mxu0 0
    %388 = vmatprep.subr.bf16.mxu0 0
    %389 = vmatpush1.bf16.xpose.msra.mxu0 0
    %390 = vmatprep.subr.bf16.mxu0 0
    %391 = vmatpush1.bf16.xpose.msra.mxu0 0
    %392 = vmatprep.subr.bf16.mxu0 0
    %393 = vmatpush1.bf16.xpose.msra.mxu0 0
    %394 = vmatprep.subr.bf16.mxu0 0
    %395 = vmatpush1.bf16.xpose.msra.mxu0 0
    %396 = vmatprep.subr.bf16.mxu0 0
    %397 = vmatpush1.bf16.xpose.msra.mxu0 0
    %398 = vmatprep.subr.bf16.mxu0 0
    %399 = vmatpush1.bf16.xpose.msra.mxu0 0
    %400 = vmatprep.subr.bf16.mxu0 0
    %401 = vmatpush1.bf16.xpose.msra.mxu0 0
    %402 = vmatprep.subr.bf16.mxu0 0
    %403 = vmatpush1.bf16.xpose.msra.mxu0 0
    %404 = vmatprep.subr.bf16.mxu0 0
    %405 = vmatpush1.bf16.xpose.msra.mxu0 0
    %406 = vmatprep.subr.bf16.mxu0 0
    %407 = vmatpush1.bf16.xpose.msra.mxu0 0
    %408 = vmatprep.subr.bf16.mxu0 0
    %409 = vmatpush1.bf16.xpose.msra.mxu0 0
    %410 = vmatprep.mubr.bf16.mxu0 0
    %411 = vmatmul.mubr.bf16.gmra.mrb[0].mxu0 %v373
    %v412 = vpop.f32.mrb[0].mxu0
    %v413 = vadd.f32 %v92, %v412
    %v414 = vpop.f32.mrb[0].mxu0
    %v415 = vpop.f32.mrb[0].mxu0
    %v416 = vpop.f32.mrb[0].mxu0
    %417 = vdwg.mxu0
    %418 = vrot.lane.b32.xlu0 %v242, 120
    %v419 = vpop.permute.xlu0 %418
    %420 = vrot.lane.b32.xlu0 %v242, 88
    %v421 = vpop.permute.xlu0 %420
    %v423 = vsel %vm246, %v419, 0
    %v426 = vsel %vm246, %v421, 0
    %428 = vmatprep.subr.bf16.mxu0 0
    %429 = vmatpush1.bf16.xpose.msra.mxu0 %v426
    %430 = vmatprep.subr.bf16.mxu0 0
    %431 = vmatpush1.bf16.xpose.msra.mxu0 0
    %432 = vmatprep.subr.bf16.mxu0 0
    %433 = vmatpush1.bf16.xpose.msra.mxu0 0
    %434 = vmatprep.subr.bf16.mxu0 0
    %435 = vmatpush1.bf16.xpose.msra.mxu0 0
    %436 = vmatprep.subr.bf16.mxu0 0
    %437 = vmatpush1.bf16.xpose.msra.mxu0 0
    %438 = vmatprep.subr.bf16.mxu0 0
    %439 = vmatpush1.bf16.xpose.msra.mxu0 0
    %440 = vmatprep.subr.bf16.mxu0 0
    %441 = vmatpush1.bf16.xpose.msra.mxu0 0
    %442 = vmatprep.subr.bf16.mxu0 0
    %443 = vmatpush1.bf16.xpose.msra.mxu0 0
    %444 = vmatprep.subr.bf16.mxu0 0
    %445 = vmatpush1.bf16.xpose.msra.mxu0 0
    %446 = vmatprep.subr.bf16.mxu0 0
    %447 = vmatpush1.bf16.xpose.msra.mxu0 0
    %448 = vmatprep.subr.bf16.mxu0 0
    %449 = vmatpush1.bf16.xpose.msra.mxu0 0
    %450 = vmatprep.subr.bf16.mxu0 0
    %451 = vmatpush1.bf16.xpose.msra.mxu0 0
    %452 = vmatprep.subr.bf16.mxu0 0
    %453 = vmatpush1.bf16.xpose.msra.mxu0 0
    %454 = vmatprep.subr.bf16.mxu0 0
    %455 = vmatpush1.bf16.xpose.msra.mxu0 0
    %456 = vmatprep.subr.bf16.mxu0 0
    %457 = vmatpush1.bf16.xpose.msra.mxu0 0
    %458 = vmatprep.subr.bf16.mxu0 0
    %459 = vmatpush1.bf16.xpose.msra.mxu0 0
    %460 = vmatprep.mubr.bf16.mxu0 0
    %461 = vmatmul.mubr.bf16.gmra.mrb[0].mxu0 %v423
    %v462 = vpop.f32.mrb[0].mxu0
    %v463 = vadd.f32 %v96, %v462
    %v464 = vpop.f32.mrb[0].mxu0
    %v465 = vpop.f32.mrb[0].mxu0
    %v466 = vpop.f32.mrb[0].mxu0
    %467 = vdwg.mxu0
    %v468 = vsel %vm246, %v413, -inf
    %469 = vmax.xlane.f32.xlu0 %v468
    %v470 = vpop.xlane.xlu0 %469
    %v471 = vsel %vm246, %v463, -inf
    %472 = vmax.xlane.f32.xlu0 %v471
    %v473 = vpop.xlane.xlu0 %472
    %v474 = vsub.f32 %v413, %v470
    %v475 = vsub.f32 %v463, %v473
    %v476 = vmul.f32 %v474, 1.442695
    %v477 = vpow.pop %v476
    %v478 = vmul.f32 %v475, 1.442695
    %v479 = vpow.pop %v478
    %v480 = vsel %vm246, %v477, 0.0
    %481 = vadd.xlane.f32.xlu0 %v480
    %v482 = vpop.xlane.xlu0 %481
    %v483 = vsel %vm246, %v479, 0.0
    %484 = vadd.xlane.f32.xlu0 %v483
    %v485 = vpop.xlane.xlu0 %484
    %v486 = vrcp.pop %v482
    %v487 = vrcp.pop %v485
    %v488 = vmul.f32 %v477, %v486
    %v489 = vmul.f32 %v479, %v487
    %v490 = vpack.c.bf16 %v488, %v488
    %v491 = vpack.c.bf16 %v489, %v489
    %493 = vrot.lane.b32.xlu0 %v366, 96
    %v494 = vpop.permute.xlu0 %493
    %v496 = vsel %vm246, %v490, 0
    %vm498 = vcmask 1043456
    %v500 = vsel %vm498, %v494, 0
    %502 = vmatprep.subr.bf16.mxu0 0
    %503 = vmatpush1.bf16.msra.mxu0 %v500
    %504 = vmatprep.subr.bf16.mxu0 0
    %505 = vmatpush1.bf16.msra.mxu0 0
    %506 = vmatprep.subr.bf16.mxu0 0
    %507 = vmatpush1.bf16.msra.mxu0 0
    %508 = vmatprep.subr.bf16.mxu0 0
    %509 = vmatpush1.bf16.msra.mxu0 0
    %510 = vmatprep.subr.bf16.mxu0 0
    %511 = vmatpush1.bf16.msra.mxu0 0
    %512 = vmatprep.subr.bf16.mxu0 0
    %513 = vmatpush1.bf16.msra.mxu0 0
    %514 = vmatprep.subr.bf16.mxu0 0
    %515 = vmatpush1.bf16.msra.mxu0 0
    %516 = vmatprep.subr.bf16.mxu0 0
    %517 = vmatpush1.bf16.msra.mxu0 0
    %518 = vmatprep.subr.bf16.mxu0 0
    %519 = vmatpush1.bf16.msra.mxu0 0
    %520 = vmatprep.subr.bf16.mxu0 0
    %521 = vmatpush1.bf16.msra.mxu0 0
    %522 = vmatprep.subr.bf16.mxu0 0
    %523 = vmatpush1.bf16.msra.mxu0 0
    %524 = vmatprep.subr.bf16.mxu0 0
    %525 = vmatpush1.bf16.msra.mxu0 0
    %526 = vmatprep.subr.bf16.mxu0 0
    %527 = vmatpush1.bf16.msra.mxu0 0
    %528 = vmatprep.subr.bf16.mxu0 0
    %529 = vmatpush1.bf16.msra.mxu0 0
    %530 = vmatprep.subr.bf16.mxu0 0
    %531 = vmatpush1.bf16.msra.mxu0 0
    %532 = vmatprep.subr.bf16.mxu0 0
    %533 = vmatpush1.bf16.msra.mxu0 0
    %534 = vmatprep.mubr.bf16.mxu0 0
    %535 = vmatmul.mubr.bf16.gmra.mrb[0].mxu0 %v496
    %v536 = vpop.f32.mrb[0].mxu0
    %v537 = vadd.f32 0.0, %v536
    %v538 = vpop.f32.mrb[0].mxu0
    %v539 = vpop.f32.mrb[0].mxu0
    %v540 = vpop.f32.mrb[0].mxu0
    %541 = vdwg.mxu0
    %543 = vrot.lane.b32.xlu0 %v367, 96
    %v544 = vpop.permute.xlu0 %543
    %v546 = vsel %vm246, %v491, 0
    %v549 = vsel %vm498, %v544, 0
    %551 = vmatprep.subr.bf16.mxu0 0
    %552 = vmatpush1.bf16.msra.mxu0 %v549
    %553 = vmatprep.subr.bf16.mxu0 0
    %554 = vmatpush1.bf16.msra.mxu0 0
    %555 = vmatprep.subr.bf16.mxu0 0
    %556 = vmatpush1.bf16.msra.mxu0 0
    %557 = vmatprep.subr.bf16.mxu0 0
    %558 = vmatpush1.bf16.msra.mxu0 0
    %559 = vmatprep.subr.bf16.mxu0 0
    %560 = vmatpush1.bf16.msra.mxu0 0
    %561 = vmatprep.subr.bf16.mxu0 0
    %562 = vmatpush1.bf16.msra.mxu0 0
    %563 = vmatprep.subr.bf16.mxu0 0
    %564 = vmatpush1.bf16.msra.mxu0 0
    %565 = vmatprep.subr.bf16.mxu0 0
    %566 = vmatpush1.bf16.msra.mxu0 0
    %567 = vmatprep.subr.bf16.mxu0 0
    %568 = vmatpush1.bf16.msra.mxu0 0
    %569 = vmatprep.subr.bf16.mxu0 0
    %570 = vmatpush1.bf16.msra.mxu0 0
    %571 = vmatprep.subr.bf16.mxu0 0
    %572 = vmatpush1.bf16.msra.mxu0 0
    %573 = vmatprep.subr.bf16.mxu0 0
    %574 = vmatpush1.bf16.msra.mxu0 0
    %575 = vmatprep.subr.bf16.mxu0 0
    %576 = vmatpush1.bf16.msra.mxu0 0
    %577 = vmatprep.subr.bf16.mxu0 0
    %578 = vmatpush1.bf16.msra.mxu0 0
    %579 = vmatprep.subr.bf16.mxu0 0
    %580 = vmatpush1.bf16.msra.mxu0 0
    %581 = vmatprep.subr.bf16.mxu0 0
    %582 = vmatpush1.bf16.msra.mxu0 0
    %583 = vmatprep.mubr.bf16.mxu0 0
    %584 = vmatmul.mubr.bf16.gmra.mrb[0].mxu0 %v546
    %v585 = vpop.f32.mrb[0].mxu0
    %v586 = vadd.f32 0.0, %v585
    %v587 = vpop.f32.mrb[0].mxu0
    %v588 = vpop.f32.mrb[0].mxu0
    %v589 = vpop.f32.mrb[0].mxu0
    %590 = vdwg.mxu0
    %v592 = vsel %vm246, %v364, 0
    %v595 = vsel %vm498, %v366, 0
    %597 = vmatprep.subr.bf16.mxu0 0
    %598 = vmatpush1.bf16.msra.mxu0 %v595
    %599 = vmatprep.subr.bf16.mxu0 0
    %600 = vmatpush1.bf16.msra.mxu0 0
    %601 = vmatprep.subr.bf16.mxu0 0
    %602 = vmatpush1.bf16.msra.mxu0 0
    %603 = vmatprep.subr.bf16.mxu0 0
    %604 = vmatpush1.bf16.msra.mxu0 0
    %605 = vmatprep.subr.bf16.mxu0 0
    %606 = vmatpush1.bf16.msra.mxu0 0
    %607 = vmatprep.subr.bf16.mxu0 0
    %608 = vmatpush1.bf16.msra.mxu0 0
    %609 = vmatprep.subr.bf16.mxu0 0
    %610 = vmatpush1.bf16.msra.mxu0 0
    %611 = vmatprep.subr.bf16.mxu0 0
    %612 = vmatpush1.bf16.msra.mxu0 0
    %613 = vmatprep.subr.bf16.mxu0 0
    %614 = vmatpush1.bf16.msra.mxu0 0
    %615 = vmatprep.subr.bf16.mxu0 0
    %616 = vmatpush1.bf16.msra.mxu0 0
    %617 = vmatprep.subr.bf16.mxu0 0
    %618 = vmatpush1.bf16.msra.mxu0 0
    %619 = vmatprep.subr.bf16.mxu0 0
    %620 = vmatpush1.bf16.msra.mxu0 0
    %621 = vmatprep.subr.bf16.mxu0 0
    %622 = vmatpush1.bf16.msra.mxu0 0
    %623 = vmatprep.subr.bf16.mxu0 0
    %624 = vmatpush1.bf16.msra.mxu0 0
    %625 = vmatprep.subr.bf16.mxu0 0
    %626 = vmatpush1.bf16.msra.mxu0 0
    %627 = vmatprep.subr.bf16.mxu0 0
    %628 = vmatpush1.bf16.msra.mxu0 0
    %629 = vmatprep.mubr.bf16.mxu0 0
    %630 = vmatmul.mubr.bf16.gmra.mrb[0].mxu0 %v592
    %v631 = vpop.f32.mrb[0].mxu0
    %v632 = vadd.f32 %v537, %v631
    %v633 = vpop.f32.mrb[0].mxu0
    %v634 = vpop.f32.mrb[0].mxu0
    %v635 = vpop.f32.mrb[0].mxu0
    %636 = vdwg.mxu0
    %v638 = vsel %vm246, %v365, 0
    %v641 = vsel %vm498, %v367, 0
    %643 = vmatprep.subr.bf16.mxu0 0
    %644 = vmatpush1.bf16.msra.mxu0 %v641
    %645 = vmatprep.subr.bf16.mxu0 0
    %646 = vmatpush1.bf16.msra.mxu0 0
    %647 = vmatprep.subr.bf16.mxu0 0
    %648 = vmatpush1.bf16.msra.mxu0 0
    %649 = vmatprep.subr.bf16.mxu0 0
    %650 = vmatpush1.bf16.msra.mxu0 0
    %651 = vmatprep.subr.bf16.mxu0 0
    %652 = vmatpush1.bf16.msra.mxu0 0
    %653 = vmatprep.subr.bf16.mxu0 0
    %654 = vmatpush1.bf16.msra.mxu0 0
    %655 = vmatprep.subr.bf16.mxu0 0
    %656 = vmatpush1.bf16.msra.mxu0 0
    %657 = vmatprep.subr.bf16.mxu0 0
    %658 = vmatpush1.bf16.msra.mxu0 0
    %659 = vmatprep.subr.bf16.mxu0 0
    %660 = vmatpush1.bf16.msra.mxu0 0
    %661 = vmatprep.subr.bf16.mxu0 0
    %662 = vmatpush1.bf16.msra.mxu0 0
    %663 = vmatprep.subr.bf16.mxu0 0
    %664 = vmatpush1.bf16.msra.mxu0 0
    %665 = vmatprep.subr.bf16.mxu0 0
    %666 = vmatpush1.bf16.msra.mxu0 0
    %667 = vmatprep.subr.bf16.mxu0 0
    %668 = vmatpush1.bf16.msra.mxu0 0
    %669 = vmatprep.subr.bf16.mxu0 0
    %670 = vmatpush1.bf16.msra.mxu0 0
    %671 = vmatprep.subr.bf16.mxu0 0
    %672 = vmatpush1.bf16.msra.mxu0 0
    %673 = vmatprep.subr.bf16.mxu0 0
    %674 = vmatpush1.bf16.msra.mxu0 0
    %675 = vmatprep.mubr.bf16.mxu0 0
    %676 = vmatmul.mubr.bf16.gmra.mrb[0].mxu0 %v638
    %v677 = vpop.f32.mrb[0].mxu0
    %v678 = vadd.f32 %v586, %v677
    %v679 = vpop.f32.mrb[0].mxu0
    %v680 = vpop.f32.mrb[0].mxu0
    %v681 = vpop.f32.mrb[0].mxu0
    %682 = vdwg.mxu0
    %683 = vrot.lane.b32.xlu0 %v241, 112
    %v684 = vpop.permute.xlu0 %683
    %685 = vrot.lane.b32.xlu0 %v241, 80
    %v686 = vpop.permute.xlu0 %685
    %v688 = vsel %vm246, %v684, 0
    %v691 = vsel %vm246, %v686, 0
    %693 = vmatprep.subr.bf16.mxu0 0
    %694 = vmatpush1.bf16.xpose.msra.mxu0 %v691
    %695 = vmatprep.subr.bf16.mxu0 0
    %696 = vmatpush1.bf16.xpose.msra.mxu0 0
    %697 = vmatprep.subr.bf16.mxu0 0
    %698 = vmatpush1.bf16.xpose.msra.mxu0 0
    %699 = vmatprep.subr.bf16.mxu0 0
    %700 = vmatpush1.bf16.xpose.msra.mxu0 0
    %701 = vmatprep.subr.bf16.mxu0 0
    %702 = vmatpush1.bf16.xpose.msra.mxu0 0
    %703 = vmatprep.subr.bf16.mxu0 0
    %704 = vmatpush1.bf16.xpose.msra.mxu0 0
    %705 = vmatprep.subr.bf16.mxu0 0
    %706 = vmatpush1.bf16.xpose.msra.mxu0 0
    %707 = vmatprep.subr.bf16.mxu0 0
    %708 = vmatpush1.bf16.xpose.msra.mxu0 0
    %709 = vmatprep.subr.bf16.mxu0 0
    %710 = vmatpush1.bf16.xpose.msra.mxu0 0
    %711 = vmatprep.subr.bf16.mxu0 0
    %712 = vmatpush1.bf16.xpose.msra.mxu0 0
    %713 = vmatprep.subr.bf16.mxu0 0
    %714 = vmatpush1.bf16.xpose.msra.mxu0 0
    %715 = vmatprep.subr.bf16.mxu0 0
    %716 = vmatpush1.bf16.xpose.msra.mxu0 0
    %717 = vmatprep.subr.bf16.mxu0 0
    %718 = vmatpush1.bf16.xpose.msra.mxu0 0
    %719 = vmatprep.subr.bf16.mxu0 0
    %720 = vmatpush1.bf16.xpose.msra.mxu0 0
    %721 = vmatprep.subr.bf16.mxu0 0
    %722 = vmatpush1.bf16.xpose.msra.mxu0 0
    %723 = vmatprep.subr.bf16.mxu0 0
    %724 = vmatpush1.bf16.xpose.msra.mxu0 0
    %725 = vmatprep.mubr.bf16.mxu0 0
    %726 = vmatmul.mubr.bf16.gmra.mrb[0].mxu0 %v688
    %v727 = vpop.f32.mrb[0].mxu0
    %v728 = vadd.f32 %v92, %v727
    %v729 = vpop.f32.mrb[0].mxu0
    %v730 = vpop.f32.mrb[0].mxu0
    %v731 = vpop.f32.mrb[0].mxu0
    %732 = vdwg.mxu0
    %733 = vrot.lane.b32.xlu0 %v242, 112
    %v734 = vpop.permute.xlu0 %733
    %735 = vrot.lane.b32.xlu0 %v242, 80
    %v736 = vpop.permute.xlu0 %735
    %v738 = vsel %vm246, %v734, 0
    %v741 = vsel %vm246, %v736, 0
    %743 = vmatprep.subr.bf16.mxu0 0
    %744 = vmatpush1.bf16.xpose.msra.mxu0 %v741
    %745 = vmatprep.subr.bf16.mxu0 0
    %746 = vmatpush1.bf16.xpose.msra.mxu0 0
    %747 = vmatprep.subr.bf16.mxu0 0
    %748 = vmatpush1.bf16.xpose.msra.mxu0 0
    %749 = vmatprep.subr.bf16.mxu0 0
    %750 = vmatpush1.bf16.xpose.msra.mxu0 0
    %751 = vmatprep.subr.bf16.mxu0 0
    %752 = vmatpush1.bf16.xpose.msra.mxu0 0
    %753 = vmatprep.subr.bf16.mxu0 0
    %754 = vmatpush1.bf16.xpose.msra.mxu0 0
    %755 = vmatprep.subr.bf16.mxu0 0
    %756 = vmatpush1.bf16.xpose.msra.mxu0 0
    %757 = vmatprep.subr.bf16.mxu0 0
    %758 = vmatpush1.bf16.xpose.msra.mxu0 0
    %759 = vmatprep.subr.bf16.mxu0 0
    %760 = vmatpush1.bf16.xpose.msra.mxu0 0
    %761 = vmatprep.subr.bf16.mxu0 0
    %762 = vmatpush1.bf16.xpose.msra.mxu0 0
    %763 = vmatprep.subr.bf16.mxu0 0
    %764 = vmatpush1.bf16.xpose.msra.mxu0 0
    %765 = vmatprep.subr.bf16.mxu0 0
    %766 = vmatpush1.bf16.xpose.msra.mxu0 0
    %767 = vmatprep.subr.bf16.mxu0 0
    %768 = vmatpush1.bf16.xpose.msra.mxu0 0
    %769 = vmatprep.subr.bf16.mxu0 0
    %770 = vmatpush1.bf16.xpose.msra.mxu0 0
    %771 = vmatprep.subr.bf16.mxu0 0
    %772 = vmatpush1.bf16.xpose.msra.mxu0 0
    %773 = vmatprep.subr.bf16.mxu0 0
    %774 = vmatpush1.bf16.xpose.msra.mxu0 0
    %775 = vmatprep.mubr.bf16.mxu0 0
    %776 = vmatmul.mubr.bf16.gmra.mrb[0].mxu0 %v738
    %v777 = vpop.f32.mrb[0].mxu0
    %v778 = vadd.f32 %v96, %v777
    %v779 = vpop.f32.mrb[0].mxu0
    %v780 = vpop.f32.mrb[0].mxu0
    %v781 = vpop.f32.mrb[0].mxu0
    %782 = vdwg.mxu0
    %v783 = vsel %vm246, %v728, -inf
    %784 = vmax.xlane.f32.xlu0 %v783
    %v785 = vpop.xlane.xlu0 %784
    %v786 = vsel %vm246, %v778, -inf
    %787 = vmax.xlane.f32.xlu0 %v786
    %v788 = vpop.xlane.xlu0 %787
    %v789 = vsub.f32 %v728, %v785
    %v790 = vsub.f32 %v778, %v788
    %v791 = vmul.f32 %v789, 1.442695
    %v792 = vpow.pop %v791
    %v793 = vmul.f32 %v790, 1.442695
    %v794 = vpow.pop %v793
    %v795 = vsel %vm246, %v792, 0.0
    %796 = vadd.xlane.f32.xlu0 %v795
    %v797 = vpop.xlane.xlu0 %796
    %v798 = vsel %vm246, %v794, 0.0
    %799 = vadd.xlane.f32.xlu0 %v798
    %v800 = vpop.xlane.xlu0 %799
    %v801 = vrcp.pop %v797
    %v802 = vrcp.pop %v800
    %v803 = vmul.f32 %v792, %v801
    %v804 = vmul.f32 %v794, %v802
    %v805 = vpack.c.bf16 %v803, %v803
    %v806 = vpack.c.bf16 %v804, %v804
    %807 = vrot.lane.b32.xlu0 %v366, 64
    %v808 = vpop.permute.xlu0 %807
    %v810 = vsel %vm246, %v805, 0
    %v813 = vsel %vm498, %v808, 0
    %815 = vmatprep.subr.bf16.mxu0 0
    %816 = vmatpush1.bf16.msra.mxu0 %v813
    %817 = vmatprep.subr.bf16.mxu0 0
    %818 = vmatpush1.bf16.msra.mxu0 0
    %819 = vmatprep.subr.bf16.mxu0 0
    %820 = vmatpush1.bf16.msra.mxu0 0
    %821 = vmatprep.subr.bf16.mxu0 0
    %822 = vmatpush1.bf16.msra.mxu0 0
    %823 = vmatprep.subr.bf16.mxu0 0
    %824 = vmatpush1.bf16.msra.mxu0 0
    %825 = vmatprep.subr.bf16.mxu0 0
    %826 = vmatpush1.bf16.msra.mxu0 0
    %827 = vmatprep.subr.bf16.mxu0 0
    %828 = vmatpush1.bf16.msra.mxu0 0
    %829 = vmatprep.subr.bf16.mxu0 0
    %830 = vmatpush1.bf16.msra.mxu0 0
    %831 = vmatprep.subr.bf16.mxu0 0
    %832 = vmatpush1.bf16.msra.mxu0 0
    %833 = vmatprep.subr.bf16.mxu0 0
    %834 = vmatpush1.bf16.msra.mxu0 0
    %835 = vmatprep.subr.bf16.mxu0 0
    %836 = vmatpush1.bf16.msra.mxu0 0
    %837 = vmatprep.subr.bf16.mxu0 0
    %838 = vmatpush1.bf16.msra.mxu0 0
    %839 = vmatprep.subr.bf16.mxu0 0
    %840 = vmatpush1.bf16.msra.mxu0 0
    %841 = vmatprep.subr.bf16.mxu0 0
    %842 = vmatpush1.bf16.msra.mxu0 0
    %843 = vmatprep.subr.bf16.mxu0 0
    %844 = vmatpush1.bf16.msra.mxu0 0
    %845 = vmatprep.subr.bf16.mxu0 0
    %846 = vmatpush1.bf16.msra.mxu0 0
    %847 = vmatprep.mubr.bf16.mxu0 0
    %848 = vmatmul.mubr.bf16.gmra.mrb[0].mxu0 %v810
    %v849 = vpop.f32.mrb[0].mxu0
    %v850 = vadd.f32 0.0, %v849
    %v851 = vpop.f32.mrb[0].mxu0
    %v852 = vpop.f32.mrb[0].mxu0
    %v853 = vpop.f32.mrb[0].mxu0
    %854 = vdwg.mxu0
    %855 = vrot.lane.b32.xlu0 %v367, 64
    %v856 = vpop.permute.xlu0 %855
    %v858 = vsel %vm246, %v806, 0
    %v861 = vsel %vm498, %v856, 0
    %863 = vmatprep.subr.bf16.mxu0 0
    %864 = vmatpush1.bf16.msra.mxu0 %v861
    %865 = vmatprep.subr.bf16.mxu0 0
    %866 = vmatpush1.bf16.msra.mxu0 0
    %867 = vmatprep.subr.bf16.mxu0 0
    %868 = vmatpush1.bf16.msra.mxu0 0
    %869 = vmatprep.subr.bf16.mxu0 0
    %870 = vmatpush1.bf16.msra.mxu0 0
    %871 = vmatprep.subr.bf16.mxu0 0
    %872 = vmatpush1.bf16.msra.mxu0 0
    %873 = vmatprep.subr.bf16.mxu0 0
    %874 = vmatpush1.bf16.msra.mxu0 0
    %875 = vmatprep.subr.bf16.mxu0 0
    %876 = vmatpush1.bf16.msra.mxu0 0
    %877 = vmatprep.subr.bf16.mxu0 0
    %878 = vmatpush1.bf16.msra.mxu0 0
    %879 = vmatprep.subr.bf16.mxu0 0
    %880 = vmatpush1.bf16.msra.mxu0 0
    %881 = vmatprep.subr.bf16.mxu0 0
    %882 = vmatpush1.bf16.msra.mxu0 0
    %883 = vmatprep.subr.bf16.mxu0 0
    %884 = vmatpush1.bf16.msra.mxu0 0
    %885 = vmatprep.subr.bf16.mxu0 0
    %886 = vmatpush1.bf16.msra.mxu0 0
    %887 = vmatprep.subr.bf16.mxu0 0
    %888 = vmatpush1.bf16.msra.mxu0 0
    %889 = vmatprep.subr.bf16.mxu0 0
    %890 = vmatpush1.bf16.msra.mxu0 0
    %891 = vmatprep.subr.bf16.mxu0 0
    %892 = vmatpush1.bf16.msra.mxu0 0
    %893 = vmatprep.subr.bf16.mxu0 0
    %894 = vmatpush1.bf16.msra.mxu0 0
    %895 = vmatprep.mubr.bf16.mxu0 0
    %896 = vmatmul.mubr.bf16.gmra.mrb[0].mxu0 %v858
    %v897 = vpop.f32.mrb[0].mxu0
    %v898 = vadd.f32 0.0, %v897
    %v899 = vpop.f32.mrb[0].mxu0
    %v900 = vpop.f32.mrb[0].mxu0
    %v901 = vpop.f32.mrb[0].mxu0
    %902 = vdwg.mxu0
    %v903 = vadd.f32 %v632, %v850
    %v904 = vadd.f32 %v678, %v898
    %905 = vrot.lane.b32.xlu0 %v241, 104
    %v906 = vpop.permute.xlu0 %905
    %907 = vrot.lane.b32.xlu0 %v241, 72
    %v908 = vpop.permute.xlu0 %907
    %v910 = vsel %vm246, %v906, 0
    %v913 = vsel %vm246, %v908, 0
    %915 = vmatprep.subr.bf16.mxu0 0
    %916 = vmatpush1.bf16.xpose.msra.mxu0 %v913
    %917 = vmatprep.subr.bf16.mxu0 0
    %918 = vmatpush1.bf16.xpose.msra.mxu0 0
    %919 = vmatprep.subr.bf16.mxu0 0
    %920 = vmatpush1.bf16.xpose.msra.mxu0 0
    %921 = vmatprep.subr.bf16.mxu0 0
    %922 = vmatpush1.bf16.xpose.msra.mxu0 0
    %923 = vmatprep.subr.bf16.mxu0 0
    %924 = vmatpush1.bf16.xpose.msra.mxu0 0
    %925 = vmatprep.subr.bf16.mxu0 0
    %926 = vmatpush1.bf16.xpose.msra.mxu0 0
    %927 = vmatprep.subr.bf16.mxu0 0
    %928 = vmatpush1.bf16.xpose.msra.mxu0 0
    %929 = vmatprep.subr.bf16.mxu0 0
    %930 = vmatpush1.bf16.xpose.msra.mxu0 0
    %931 = vmatprep.subr.bf16.mxu0 0
    %932 = vmatpush1.bf16.xpose.msra.mxu0 0
    %933 = vmatprep.subr.bf16.mxu0 0
    %934 = vmatpush1.bf16.xpose.msra.mxu0 0
    %935 = vmatprep.subr.bf16.mxu0 0
    %936 = vmatpush1.bf16.xpose.msra.mxu0 0
    %937 = vmatprep.subr.bf16.mxu0 0
    %938 = vmatpush1.bf16.xpose.msra.mxu0 0
    %939 = vmatprep.subr.bf16.mxu0 0
    %940 = vmatpush1.bf16.xpose.msra.mxu0 0
    %941 = vmatprep.subr.bf16.mxu0 0
    %942 = vmatpush1.bf16.xpose.msra.mxu0 0
    %943 = vmatprep.subr.bf16.mxu0 0
    %944 = vmatpush1.bf16.xpose.msra.mxu0 0
    %945 = vmatprep.subr.bf16.mxu0 0
    %946 = vmatpush1.bf16.xpose.msra.mxu0 0
    %947 = vmatprep.mubr.bf16.mxu0 0
    %948 = vmatmul.mubr.bf16.gmra.mrb[0].mxu0 %v910
    %v949 = vpop.f32.mrb[0].mxu0
    %v950 = vadd.f32 %v92, %v949
    %v951 = vpop.f32.mrb[0].mxu0
    %v952 = vpop.f32.mrb[0].mxu0
    %v953 = vpop.f32.mrb[0].mxu0
    %954 = vdwg.mxu0
    %955 = vrot.lane.b32.xlu0 %v242, 104
    %v956 = vpop.permute.xlu0 %955
    %957 = vrot.lane.b32.xlu0 %v242, 72
    %v958 = vpop.permute.xlu0 %957
    %v960 = vsel %vm246, %v956, 0
    %v963 = vsel %vm246, %v958, 0
    %965 = vmatprep.subr.bf16.mxu0 0
    %966 = vmatpush1.bf16.xpose.msra.mxu0 %v963
    %967 = vmatprep.subr.bf16.mxu0 0
    %968 = vmatpush1.bf16.xpose.msra.mxu0 0
    %969 = vmatprep.subr.bf16.mxu0 0
    %970 = vmatpush1.bf16.xpose.msra.mxu0 0
    %971 = vmatprep.subr.bf16.mxu0 0
    %972 = vmatpush1.bf16.xpose.msra.mxu0 0
    %973 = vmatprep.subr.bf16.mxu0 0
    %974 = vmatpush1.bf16.xpose.msra.mxu0 0
    %975 = vmatprep.subr.bf16.mxu0 0
    %976 = vmatpush1.bf16.xpose.msra.mxu0 0
    %977 = vmatprep.subr.bf16.mxu0 0
    %978 = vmatpush1.bf16.xpose.msra.mxu0 0
    %979 = vmatprep.subr.bf16.mxu0 0
    %980 = vmatpush1.bf16.xpose.msra.mxu0 0
    %981 = vmatprep.subr.bf16.mxu0 0
    %982 = vmatpush1.bf16.xpose.msra.mxu0 0
    %983 = vmatprep.subr.bf16.mxu0 0
    %984 = vmatpush1.bf16.xpose.msra.mxu0 0
    %985 = vmatprep.subr.bf16.mxu0 0
    %986 = vmatpush1.bf16.xpose.msra.mxu0 0
    %987 = vmatprep.subr.bf16.mxu0 0
    %988 = vmatpush1.bf16.xpose.msra.mxu0 0
    %989 = vmatprep.subr.bf16.mxu0 0
    %990 = vmatpush1.bf16.xpose.msra.mxu0 0
    %991 = vmatprep.subr.bf16.mxu0 0
    %992 = vmatpush1.bf16.xpose.msra.mxu0 0
    %993 = vmatprep.subr.bf16.mxu0 0
    %994 = vmatpush1.bf16.xpose.msra.mxu0 0
    %995 = vmatprep.subr.bf16.mxu0 0
    %996 = vmatpush1.bf16.xpose.msra.mxu0 0
    %997 = vmatprep.mubr.bf16.mxu0 0
    %998 = vmatmul.mubr.bf16.gmra.mrb[0].mxu0 %v960
    %v999 = vpop.f32.mrb[0].mxu0
    %v1000 = vadd.f32 %v96, %v999
    %v1001 = vpop.f32.mrb[0].mxu0
    %v1002 = vpop.f32.mrb[0].mxu0
    %v1003 = vpop.f32.mrb[0].mxu0
    %1004 = vdwg.mxu0
    %v1005 = vsel %vm246, %v950, -inf
    %1006 = vmax.xlane.f32.xlu0 %v1005
    %v1007 = vpop.xlane.xlu0 %1006
    %v1008 = vsel %vm246, %v1000, -inf
    %1009 = vmax.xlane.f32.xlu0 %v1008
    %v1010 = vpop.xlane.xlu0 %1009
    %v1011 = vsub.f32 %v950, %v1007
    %v1012 = vsub.f32 %v1000, %v1010
    %v1013 = vmul.f32 %v1011, 1.442695
    %v1014 = vpow.pop %v1013
    %v1015 = vmul.f32 %v1012, 1.442695
    %v1016 = vpow.pop %v1015
    %v1017 = vsel %vm246, %v1014, 0.0
    %1018 = vadd.xlane.f32.xlu0 %v1017
    %v1019 = vpop.xlane.xlu0 %1018
    %v1020 = vsel %vm246, %v1016, 0.0
    %1021 = vadd.xlane.f32.xlu0 %v1020
    %v1022 = vpop.xlane.xlu0 %1021
    %v1023 = vrcp.pop %v1019
    %v1024 = vrcp.pop %v1022
    %v1025 = vmul.f32 %v1014, %v1023
    %v1026 = vmul.f32 %v1016, %v1024
    %v1027 = vpack.c.bf16 %v1025, %v1025
    %v1028 = vpack.c.bf16 %v1026, %v1026
    %1029 = vrot.lane.b32.xlu0 %v366, 32
    %v1030 = vpop.permute.xlu0 %1029
    %v1032 = vsel %vm246, %v1027, 0
    %v1035 = vsel %vm498, %v1030, 0
    %1037 = vmatprep.subr.bf16.mxu0 0
    %1038 = vmatpush1.bf16.msra.mxu0 %v1035
    %1039 = vmatprep.subr.bf16.mxu0 0
    %1040 = vmatpush1.bf16.msra.mxu0 0
    %1041 = vmatprep.subr.bf16.mxu0 0
    %1042 = vmatpush1.bf16.msra.mxu0 0
    %1043 = vmatprep.subr.bf16.mxu0 0
    %1044 = vmatpush1.bf16.msra.mxu0 0
    %1045 = vmatprep.subr.bf16.mxu0 0
    %1046 = vmatpush1.bf16.msra.mxu0 0
    %1047 = vmatprep.subr.bf16.mxu0 0
    %1048 = vmatpush1.bf16.msra.mxu0 0
    %1049 = vmatprep.subr.bf16.mxu0 0
    %1050 = vmatpush1.bf16.msra.mxu0 0
    %1051 = vmatprep.subr.bf16.mxu0 0
    %1052 = vmatpush1.bf16.msra.mxu0 0
    %1053 = vmatprep.subr.bf16.mxu0 0
    %1054 = vmatpush1.bf16.msra.mxu0 0
    %1055 = vmatprep.subr.bf16.mxu0 0
    %1056 = vmatpush1.bf16.msra.mxu0 0
    %1057 = vmatprep.subr.bf16.mxu0 0
    %1058 = vmatpush1.bf16.msra.mxu0 0
    %1059 = vmatprep.subr.bf16.mxu0 0
    %1060 = vmatpush1.bf16.msra.mxu0 0
    %1061 = vmatprep.subr.bf16.mxu0 0
    %1062 = vmatpush1.bf16.msra.mxu0 0
    %1063 = vmatprep.subr.bf16.mxu0 0
    %1064 = vmatpush1.bf16.msra.mxu0 0
    %1065 = vmatprep.subr.bf16.mxu0 0
    %1066 = vmatpush1.bf16.msra.mxu0 0
    %1067 = vmatprep.subr.bf16.mxu0 0
    %1068 = vmatpush1.bf16.msra.mxu0 0
    %1069 = vmatprep.mubr.bf16.mxu0 0
    %1070 = vmatmul.mubr.bf16.gmra.mrb[0].mxu0 %v1032
    %v1071 = vpop.f32.mrb[0].mxu0
    %v1072 = vadd.f32 0.0, %v1071
    %v1073 = vpop.f32.mrb[0].mxu0
    %v1074 = vpop.f32.mrb[0].mxu0
    %v1075 = vpop.f32.mrb[0].mxu0
    %1076 = vdwg.mxu0
    %1077 = vrot.lane.b32.xlu0 %v367, 32
    %v1078 = vpop.permute.xlu0 %1077
    %v1080 = vsel %vm246, %v1028, 0
    %v1083 = vsel %vm498, %v1078, 0
    %1085 = vmatprep.subr.bf16.mxu0 0
    %1086 = vmatpush1.bf16.msra.mxu0 %v1083
    %1087 = vmatprep.subr.bf16.mxu0 0
    %1088 = vmatpush1.bf16.msra.mxu0 0
    %1089 = vmatprep.subr.bf16.mxu0 0
    %1090 = vmatpush1.bf16.msra.mxu0 0
    %1091 = vmatprep.subr.bf16.mxu0 0
    %1092 = vmatpush1.bf16.msra.mxu0 0
    %1093 = vmatprep.subr.bf16.mxu0 0
    %1094 = vmatpush1.bf16.msra.mxu0 0
    %1095 = vmatprep.subr.bf16.mxu0 0
    %1096 = vmatpush1.bf16.msra.mxu0 0
    %1097 = vmatprep.subr.bf16.mxu0 0
    %1098 = vmatpush1.bf16.msra.mxu0 0
    %1099 = vmatprep.subr.bf16.mxu0 0
    %1100 = vmatpush1.bf16.msra.mxu0 0
    %1101 = vmatprep.subr.bf16.mxu0 0
    %1102 = vmatpush1.bf16.msra.mxu0 0
    %1103 = vmatprep.subr.bf16.mxu0 0
    %1104 = vmatpush1.bf16.msra.mxu0 0
    %1105 = vmatprep.subr.bf16.mxu0 0
    %1106 = vmatpush1.bf16.msra.mxu0 0
    %1107 = vmatprep.subr.bf16.mxu0 0
    %1108 = vmatpush1.bf16.msra.mxu0 0
    %1109 = vmatprep.subr.bf16.mxu0 0
    %1110 = vmatpush1.bf16.msra.mxu0 0
    %1111 = vmatprep.subr.bf16.mxu0 0
    %1112 = vmatpush1.bf16.msra.mxu0 0
    %1113 = vmatprep.subr.bf16.mxu0 0
    %1114 = vmatpush1.bf16.msra.mxu0 0
    %1115 = vmatprep.subr.bf16.mxu0 0
    %1116 = vmatpush1.bf16.msra.mxu0 0
    %1117 = vmatprep.mubr.bf16.mxu0 0
    %1118 = vmatmul.mubr.bf16.gmra.mrb[0].mxu0 %v1080
    %v1119 = vpop.f32.mrb[0].mxu0
    %v1120 = vadd.f32 0.0, %v1119
    %v1121 = vpop.f32.mrb[0].mxu0
    %v1122 = vpop.f32.mrb[0].mxu0
    %v1123 = vpop.f32.mrb[0].mxu0
    %1124 = vdwg.mxu0
    %v1125 = vadd.f32 %v903, %v1072
    %v1126 = vadd.f32 %v904, %v1120
    %v1127 = vlaneseq
    %v1128 = vshrl.u32 %v1127, 7
    %v1129 = vsub.s32 0, %v1128
    %v1130 = vrot.slane %v120, %v1129
    %v1131 = vadd.f32 %v1125, %v1130
    %v1132 = vadd.f32 %v1126, %v1130
    %v1133 = vadd.f32 %v61, %v1131
    %v1134 = vadd.f32 %v62, %v1132
    %v1135 = vsel %vm23, %v1133, 0.0
    %1136 = vadd.xlane.f32.xlu0 %v1135
    %v1137 = vpop.xlane.xlu0 %1136
    %v1138 = vsel %vm23, %v1134, 0.0
    %1139 = vadd.xlane.f32.xlu0 %v1138
    %v1140 = vpop.xlane.xlu0 %1139
    %v1141 = vmul.f32 %v1137, %v30
    %v1142 = vmul.f32 %v1140, %v30
    %v1143 = vsub.f32 %v1133, %v1141
    %v1144 = vsub.f32 %v1134, %v1142
    %v1145 = vmul.f32 %v1143, %v1143
    %v1146 = vmul.f32 %v1144, %v1144
    %v1147 = vsel %vm23, %v1145, 0.0
    %1148 = vadd.xlane.f32.xlu0 %v1147
    %v1149 = vpop.xlane.xlu0 %1148
    %v1150 = vsel %vm23, %v1146, 0.0
    %1151 = vadd.xlane.f32.xlu0 %v1150
    %v1152 = vpop.xlane.xlu0 %1151
    %v1153 = vmul.f32 %v1149, %v30
    %v1154 = vmul.f32 %v1152, %v30
    %v1155 = vadd.f32 %v1153, 1e-12
    %v1156 = vadd.f32 %v1154, 1e-12
    %v1157 = vrsqrt.pop %v1155
    %v1158 = vrsqrt.pop %v1156
    %v1159 = vmul.f32 %v1143, %v1157
    %v1160 = vmul.f32 %v1144, %v1158
    %v1161 = vlaneseq
    %v1162 = vshrl.u32 %v1161, 7
    %v1163 = vsub.s32 0, %v1162
    %v1164 = vrot.slane %v121, %v1163
    %v1165 = vmul.f32 %v1159, %v1164
    %v1166 = vmul.f32 %v1160, %v1164
    %v1167 = vlaneseq
    %v1168 = vshrl.u32 %v1167, 7
    %v1169 = vsub.s32 0, %v1168
    %v1170 = vrot.slane %v122, %v1169
    %v1171 = vadd.f32 %v1165, %v1170
    %v1172 = vadd.f32 %v1166, %v1170
    %v1173 = vpack.c.bf16 %v1172, %v1171
    %v1174 = vlaneseq
    %v1175 = vshrl.u32 %v1174, 7
    %v1176 = vsub.s32 0, %v1175
    %v1177 = vrot.slane %v123, %v1176
    %v1182 = vunpack.c.l.b16 %v107
    %v1183 = vunpack.c.l.b16 %v108
    %v1184 = vunpack.c.l.b16 %v109
    %v1185 = vunpack.c.l.b16 %v110
    %v1186 = vpack.c.b16 %v1183, %v1182
    %v1187 = vpack.c.b16 %v1185, %v1184
    %v1191 = vsel %vm23, %v1173, 0
    %1193 = vmatprep.subr.bf16.mxu0 0
    %1194 = vmatpush1.bf16.msra.mxu0 %v1186
    %1195 = vmatprep.subr.bf16.mxu0 0
    %1196 = vmatpush1.bf16.msra.mxu0 %v1187
    %1197 = vmatprep.subr.bf16.mxu0 0
    %1198 = vmatpush1.bf16.msra.mxu0 0
    %1199 = vmatprep.subr.bf16.mxu0 0
    %1200 = vmatpush1.bf16.msra.mxu0 0
    %1201 = vmatprep.subr.bf16.mxu0 0
    %1202 = vmatpush1.bf16.msra.mxu0 0
    %1203 = vmatprep.subr.bf16.mxu0 0
    %1204 = vmatpush1.bf16.msra.mxu0 0
    %1205 = vmatprep.subr.bf16.mxu0 0
    %1206 = vmatpush1.bf16.msra.mxu0 0
    %1207 = vmatprep.subr.bf16.mxu0 0
    %1208 = vmatpush1.bf16.msra.mxu0 0
    %1209 = vmatprep.subr.bf16.mxu0 0
    %1210 = vmatpush1.bf16.msra.mxu0 0
    %1211 = vmatprep.subr.bf16.mxu0 0
    %1212 = vmatpush1.bf16.msra.mxu0 0
    %1213 = vmatprep.subr.bf16.mxu0 0
    %1214 = vmatpush1.bf16.msra.mxu0 0
    %1215 = vmatprep.subr.bf16.mxu0 0
    %1216 = vmatpush1.bf16.msra.mxu0 0
    %1217 = vmatprep.subr.bf16.mxu0 0
    %1218 = vmatpush1.bf16.msra.mxu0 0
    %1219 = vmatprep.subr.bf16.mxu0 0
    %1220 = vmatpush1.bf16.msra.mxu0 0
    %1221 = vmatprep.subr.bf16.mxu0 0
    %1222 = vmatpush1.bf16.msra.mxu0 0
    %1223 = vmatprep.subr.bf16.mxu0 0
    %1224 = vmatpush1.bf16.msra.mxu0 0
    %1225 = vmatprep.mubr.bf16.mxu0 0
    %1226 = vmatmul.mubr.bf16.gmra.mrb[0].mxu0 %v1191
    %v1227 = vpop.f32.mrb[0].mxu0
    %v1228 = vadd.f32 %v1177, %v1227
    %v1229 = vpop.f32.mrb[0].mxu0
    %v1230 = vpop.f32.mrb[0].mxu0
    %v1231 = vadd.f32 %v1177, %v1230
    %v1232 = vpop.f32.mrb[0].mxu0
    %1233 = vdwg.mxu0
    %v1234 = vmul.f32 %v1228, 0.5
    %v1235 = vmul.f32 %v1231, 0.5
    %v1236 = vmul.f32 %v1228, 0.70710677
    %v1237 = vmul.f32 %v1231, 0.70710677
    %v1238 = verf.f32.pop %v1236
    %v1239 = verf.f32.pop %v1237
    %v1240 = vadd.f32 %v1238, 1.0
    %v1241 = vadd.f32 %v1239, 1.0
    %v1242 = vmul.f32 %v1234, %v1240
    %v1243 = vmul.f32 %v1235, %v1241
    %v1244 = vpack.c.bf16 %v1243, %v1242
    %v1245 = vlaneseq
    %v1246 = vshrl.u32 %v1245, 7
    %v1247 = vsub.s32 0, %v1246
    %v1248 = vrot.slane %v124, %v1247
    %v1257 = vunpack.c.l.b16 %v111
    %v1258 = vunpack.c.l.b16 %v112
    %v1259 = vunpack.c.l.b16 %v113
    %v1260 = vunpack.c.l.b16 %v114
    %v1261 = vunpack.c.l.b16 %v115
    %v1262 = vunpack.c.l.b16 %v116
    %v1263 = vunpack.c.l.b16 %v117
    %v1264 = vunpack.c.l.b16 %v118
    %v1265 = vpack.c.b16 %v1258, %v1257
    %v1266 = vpack.c.b16 %v1260, %v1259
    %v1267 = vpack.c.b16 %v1262, %v1261
    %v1268 = vpack.c.b16 %v1264, %v1263
    %vm1273 = vcmask 523264
    %v1275 = vsel %vm1273, %v1244, 0
    %1277 = vmatprep.subr.bf16.mxu0 0
    %1278 = vmatpush1.bf16.msra.mxu0 %v1265
    %1279 = vmatprep.subr.bf16.mxu0 0
    %1280 = vmatpush1.bf16.msra.mxu0 %v1266
    %1281 = vmatprep.subr.bf16.mxu0 0
    %1282 = vmatpush1.bf16.msra.mxu0 %v1267
    %1283 = vmatprep.subr.bf16.mxu0 0
    %1284 = vmatpush1.bf16.msra.mxu0 %v1268
    %1285 = vmatprep.subr.bf16.mxu0 0
    %1286 = vmatpush1.bf16.msra.mxu0 0
    %1287 = vmatprep.subr.bf16.mxu0 0
    %1288 = vmatpush1.bf16.msra.mxu0 0
    %1289 = vmatprep.subr.bf16.mxu0 0
    %1290 = vmatpush1.bf16.msra.mxu0 0
    %1291 = vmatprep.subr.bf16.mxu0 0
    %1292 = vmatpush1.bf16.msra.mxu0 0
    %1293 = vmatprep.subr.bf16.mxu0 0
    %1294 = vmatpush1.bf16.msra.mxu0 0
    %1295 = vmatprep.subr.bf16.mxu0 0
    %1296 = vmatpush1.bf16.msra.mxu0 0
    %1297 = vmatprep.subr.bf16.mxu0 0
    %1298 = vmatpush1.bf16.msra.mxu0 0
    %1299 = vmatprep.subr.bf16.mxu0 0
    %1300 = vmatpush1.bf16.msra.mxu0 0
    %1301 = vmatprep.subr.bf16.mxu0 0
    %1302 = vmatpush1.bf16.msra.mxu0 0
    %1303 = vmatprep.subr.bf16.mxu0 0
    %1304 = vmatpush1.bf16.msra.mxu0 0
    %1305 = vmatprep.subr.bf16.mxu0 0
    %1306 = vmatpush1.bf16.msra.mxu0 0
    %1307 = vmatprep.subr.bf16.mxu0 0
    %1308 = vmatpush1.bf16.msra.mxu0 0
    %1309 = vmatprep.mubr.bf16.mxu0 0
    %1310 = vmatmul.mubr.bf16.gmra.mrb[0].mxu0 %v1275
    %v1311 = vpop.f32.mrb[0].mxu0
    %v1312 = vadd.f32 %v1248, %v1311
    %v1313 = vpop.f32.mrb[0].mxu0
    %v1314 = vpop.f32.mrb[0].mxu0
    %v1315 = vadd.f32 %v1248, %v1314
    %v1316 = vpop.f32.mrb[0].mxu0
    %1317 = vdwg.mxu0
    %v1318 = vadd.f32 %v1171, %v1312
    %v1319 = vadd.f32 %v1172, %v1315
    %v1320 = vsel %vm23, %v1318, 0.0
    %1321 = vadd.xlane.f32.xlu0 %v1320
    %v1322 = vpop.xlane.xlu0 %1321
    %v1323 = vsel %vm23, %v1319, 0.0
    %1324 = vadd.xlane.f32.xlu0 %v1323
    %v1325 = vpop.xlane.xlu0 %1324
    %v1326 = vmul.f32 %v1322, %v30
    %v1327 = vmul.f32 %v1325, %v30
    %v1328 = vsub.f32 %v1318, %v1326
    %v1329 = vsub.f32 %v1319, %v1327
    %v1330 = vmul.f32 %v1328, %v1328
    %v1331 = vmul.f32 %v1329, %v1329
    %v1332 = vsel %vm23, %v1330, 0.0
    %1333 = vadd.xlane.f32.xlu0 %v1332
    %v1334 = vpop.xlane.xlu0 %1333
    %v1335 = vsel %vm23, %v1331, 0.0
    %1336 = vadd.xlane.f32.xlu0 %v1335
    %v1337 = vpop.xlane.xlu0 %1336
    %v1338 = vmul.f32 %v1334, %v30
    %v1339 = vmul.f32 %v1337, %v30
    %v1340 = vadd.f32 %v1338, 1e-12
    %v1341 = vadd.f32 %v1339, 1e-12
    %v1342 = vrsqrt.pop %v1340
    %v1343 = vrsqrt.pop %v1341
    %v1344 = vmul.f32 %v1328, %v1342
    %v1345 = vmul.f32 %v1329, %v1343
    %v1346 = vlaneseq
    %v1347 = vshrl.u32 %v1346, 7
    %v1348 = vsub.s32 0, %v1347
    %v1349 = vrot.slane %v125, %v1348
    %v1350 = vmul.f32 %v1344, %v1349
    %v1351 = vmul.f32 %v1345, %v1349
    %v1352 = vlaneseq
    %v1353 = vshrl.u32 %v1352, 7
    %v1354 = vsub.s32 0, %v1353
    %v1355 = vrot.slane %v126, %v1354
    %v1356 = vadd.f32 %v1350, %v1355
    %v1357 = vadd.f32 %v1351, %v1355
    %v1358 = vld [vmem:[%s2 + $0x50] sm:$0xf]
    %v1359 = vld [vmem:[%s2 + $0x54] sm:$0xf]
    %v1360 = vld [vmem:[%s2 + $0x58] sm:$0xf]
    %v1361 = vld [vmem:[%s2 + $0x5c] sm:$0xf]
    %v1362 = vld [vmem:[%s2 + $0x60] sm:$0xf]
    %v1363 = vld [vmem:[%s2 + $0x64] sm:$0xf]
    %v1364 = vld [vmem:[%s2 + $0x68] sm:$0xf]
    %v1365 = vld [vmem:[%s2 + $0x6c] sm:$0xf]
    %v1366 = vld [vmem:[%s2 + $0x70] sm:$0xf]
    %v1367 = vld [vmem:[%s2 + $0x74] sm:$0xf]
    %v1368 = vld [vmem:[%s2 + $0x78] sm:$0xf]
    %v1369 = vld [vmem:[%s2 + $0x7c] sm:$0xf]
    %v1370 = vld [vmem:[%s2 + $0x80] sm:$0xf]
    %v1371 = vld [vmem:[%s2 + $0x84] sm:$0xf]
    %v1372 = vld [vmem:[%s2 + $0x88] sm:$0xf]
    %v1373 = vld [vmem:[%s2 + $0x8c] sm:$0xf]
    %v1374 = vld [vmem:[%s2 + $0x90] sm:$0xf]
    %v1375 = vld [vmem:[%s2 + $0x94] sm:$0xf]
    %v1376 = vld [vmem:[%s2 + $0x98] sm:$0xf]
    %v1377 = vld [vmem:[%s2 + $0x9c] sm:$0xf]
    %v1378 = vld [vmem:[%s3 + $0xa] sm:$0x1]
    %v1379 = vld [vmem:[%s3 + $0xb] sm:$0x1]
    %v1380 = vld [vmem:[%s3 + $0xc] sm:$0x1]
    %v1381 = vld [vmem:[%s3 + $0xd] sm:$0x1]
    %v1382 = vld [vmem:[%s3 + $0xe] sm:$0x1]
    %v1383 = vld [vmem:[%s3 + $0xf] sm:$0x1]
    %v1384 = vld [vmem:[%s3 + $0x10] sm:$0x1]
    %v1385 = vld [vmem:[%s3 + $0x11] sm:$0x1]
    %v1386 = vpack.c.bf16 %v1357, %v1356
    %v1387 = vlaneseq
    %v1388 = vshrl.u32 %v1387, 7
    %v1389 = vsub.s32 0, %v1388
    %v1390 = vrot.slane %v1378, %v1389
    %v1395 = vunpack.c.l.b16 %v1358
    %v1396 = vunpack.c.l.b16 %v1359
    %v1397 = vunpack.c.l.b16 %v1360
    %v1398 = vunpack.c.l.b16 %v1361
    %v1399 = vpack.c.b16 %v1396, %v1395
    %v1400 = vpack.c.b16 %v1398, %v1397
    %v1404 = vsel %vm23, %v1386, 0
    %1406 = vmatprep.subr.bf16.mxu0 0
    %1407 = vmatpush1.bf16.msra.mxu0 %v1399
    %1408 = vmatprep.subr.bf16.mxu0 0
    %1409 = vmatpush1.bf16.msra.mxu0 %v1400
    %1410 = vmatprep.subr.bf16.mxu0 0
    %1411 = vmatpush1.bf16.msra.mxu0 0
    %1412 = vmatprep.subr.bf16.mxu0 0
    %1413 = vmatpush1.bf16.msra.mxu0 0
    %1414 = vmatprep.subr.bf16.mxu0 0
    %1415 = vmatpush1.bf16.msra.mxu0 0
    %1416 = vmatprep.subr.bf16.mxu0 0
    %1417 = vmatpush1.bf16.msra.mxu0 0
    %1418 = vmatprep.subr.bf16.mxu0 0
    %1419 = vmatpush1.bf16.msra.mxu0 0
    %1420 = vmatprep.subr.bf16.mxu0 0
    %1421 = vmatpush1.bf16.msra.mxu0 0
    %1422 = vmatprep.subr.bf16.mxu0 0
    %1423 = vmatpush1.bf16.msra.mxu0 0
    %1424 = vmatprep.subr.bf16.mxu0 0
    %1425 = vmatpush1.bf16.msra.mxu0 0
    %1426 = vmatprep.subr.bf16.mxu0 0
    %1427 = vmatpush1.bf16.msra.mxu0 0
    %1428 = vmatprep.subr.bf16.mxu0 0
    %1429 = vmatpush1.bf16.msra.mxu0 0
    %1430 = vmatprep.subr.bf16.mxu0 0
    %1431 = vmatpush1.bf16.msra.mxu0 0
    %1432 = vmatprep.subr.bf16.mxu0 0
    %1433 = vmatpush1.bf16.msra.mxu0 0
    %1434 = vmatprep.subr.bf16.mxu0 0
    %1435 = vmatpush1.bf16.msra.mxu0 0
    %1436 = vmatprep.subr.bf16.mxu0 0
    %1437 = vmatpush1.bf16.msra.mxu0 0
    %1438 = vmatprep.mubr.bf16.mxu0 0
    %1439 = vmatmul.mubr.bf16.gmra.mrb[0].mxu0 %v1404
    %v1440 = vpop.f32.mrb[0].mxu0
    %v1441 = vadd.f32 %v1390, %v1440
    %v1442 = vpop.f32.mrb[0].mxu0
    %v1443 = vpop.f32.mrb[0].mxu0
    %v1444 = vadd.f32 %v1390, %v1443
    %v1445 = vpop.f32.mrb[0].mxu0
    %1446 = vdwg.mxu0
    %v1451 = vunpack.c.l.b16 %v1362
    %v1452 = vunpack.c.l.b16 %v1363
    %v1453 = vunpack.c.l.b16 %v1364
    %v1454 = vunpack.c.l.b16 %v1365
    %v1455 = vpack.c.b16 %v1452, %v1451
    %v1456 = vpack.c.b16 %v1454, %v1453
    %1459 = vmatprep.subr.bf16.mxu0 0
    %1460 = vmatpush1.bf16.msra.mxu0 %v1455
    %1461 = vmatprep.subr.bf16.mxu0 0
    %1462 = vmatpush1.bf16.msra.mxu0 %v1456
    %1463 = vmatprep.subr.bf16.mxu0 0
    %1464 = vmatpush1.bf16.msra.mxu0 0
    %1465 = vmatprep.subr.bf16.mxu0 0
    %1466 = vmatpush1.bf16.msra.mxu0 0
    %1467 = vmatprep.subr.bf16.mxu0 0
    %1468 = vmatpush1.bf16.msra.mxu0 0
    %1469 = vmatprep.subr.bf16.mxu0 0
    %1470 = vmatpush1.bf16.msra.mxu0 0
    %1471 = vmatprep.subr.bf16.mxu0 0
    %1472 = vmatpush1.bf16.msra.mxu0 0
    %1473 = vmatprep.subr.bf16.mxu0 0
    %1474 = vmatpush1.bf16.msra.mxu0 0
    %1475 = vmatprep.subr.bf16.mxu0 0
    %1476 = vmatpush1.bf16.msra.mxu0 0
    %1477 = vmatprep.subr.bf16.mxu0 0
    %1478 = vmatpush1.bf16.msra.mxu0 0
    %1479 = vmatprep.subr.bf16.mxu0 0
    %1480 = vmatpush1.bf16.msra.mxu0 0
    %1481 = vmatprep.subr.bf16.mxu0 0
    %1482 = vmatpush1.bf16.msra.mxu0 0
    %1483 = vmatprep.subr.bf16.mxu0 0
    %1484 = vmatpush1.bf16.msra.mxu0 0
    %1485 = vmatprep.subr.bf16.mxu0 0
    %1486 = vmatpush1.bf16.msra.mxu0 0
    %1487 = vmatprep.subr.bf16.mxu0 0
    %1488 = vmatpush1.bf16.msra.mxu0 0
    %1489 = vmatprep.subr.bf16.mxu0 0
    %1490 = vmatpush1.bf16.msra.mxu0 0
    %1491 = vmatprep.mubr.bf16.mxu0 0
    %1492 = vmatmul.mubr.bf16.gmra.mrb[0].mxu0 %v1404
    %v1493 = vpop.f32.mrb[0].mxu0
    %v1494 = vadd.f32 0.0, %v1493
    %v1495 = vpop.f32.mrb[0].mxu0
    %v1496 = vpop.f32.mrb[0].mxu0
    %v1497 = vadd.f32 0.0, %v1496
    %v1498 = vpop.f32.mrb[0].mxu0
    %1499 = vdwg.mxu0
    %v1500 = vpack.c.bf16 %v1441, %v1441
    %v1501 = vpack.c.bf16 %v1444, %v1444
    %1503 = vrot.lane.b32.xlu0 %v1500, 96
    %v1504 = vpop.permute.xlu0 %1503
    %v1506 = vsel %vm246, %v1500, 0
    %v1509 = vsel %vm246, %v1504, 0
    %1511 = vmatprep.subr.bf16.mxu0 0
    %1512 = vmatpush1.bf16.xpose.msra.mxu0 %v1509
    %1513 = vmatprep.subr.bf16.mxu0 0
    %1514 = vmatpush1.bf16.xpose.msra.mxu0 0
    %1515 = vmatprep.subr.bf16.mxu0 0
    %1516 = vmatpush1.bf16.xpose.msra.mxu0 0
    %1517 = vmatprep.subr.bf16.mxu0 0
    %1518 = vmatpush1.bf16.xpose.msra.mxu0 0
    %1519 = vmatprep.subr.bf16.mxu0 0
    %1520 = vmatpush1.bf16.xpose.msra.mxu0 0
    %1521 = vmatprep.subr.bf16.mxu0 0
    %1522 = vmatpush1.bf16.xpose.msra.mxu0 0
    %1523 = vmatprep.subr.bf16.mxu0 0
    %1524 = vmatpush1.bf16.xpose.msra.mxu0 0
    %1525 = vmatprep.subr.bf16.mxu0 0
    %1526 = vmatpush1.bf16.xpose.msra.mxu0 0
    %1527 = vmatprep.subr.bf16.mxu0 0
    %1528 = vmatpush1.bf16.xpose.msra.mxu0 0
    %1529 = vmatprep.subr.bf16.mxu0 0
    %1530 = vmatpush1.bf16.xpose.msra.mxu0 0
    %1531 = vmatprep.subr.bf16.mxu0 0
    %1532 = vmatpush1.bf16.xpose.msra.mxu0 0
    %1533 = vmatprep.subr.bf16.mxu0 0
    %1534 = vmatpush1.bf16.xpose.msra.mxu0 0
    %1535 = vmatprep.subr.bf16.mxu0 0
    %1536 = vmatpush1.bf16.xpose.msra.mxu0 0
    %1537 = vmatprep.subr.bf16.mxu0 0
    %1538 = vmatpush1.bf16.xpose.msra.mxu0 0
    %1539 = vmatprep.subr.bf16.mxu0 0
    %1540 = vmatpush1.bf16.xpose.msra.mxu0 0
    %1541 = vmatprep.subr.bf16.mxu0 0
    %1542 = vmatpush1.bf16.xpose.msra.mxu0 0
    %1543 = vmatprep.mubr.bf16.mxu0 0
    %1544 = vmatmul.mubr.bf16.gmra.mrb[0].mxu0 %v1506
    %v1545 = vpop.f32.mrb[0].mxu0
    %v1546 = vadd.f32 %v92, %v1545
    %v1547 = vpop.f32.mrb[0].mxu0
    %v1548 = vpop.f32.mrb[0].mxu0
    %v1549 = vpop.f32.mrb[0].mxu0
    %1550 = vdwg.mxu0
    %1552 = vrot.lane.b32.xlu0 %v1501, 96
    %v1553 = vpop.permute.xlu0 %1552
    %v1555 = vsel %vm246, %v1501, 0
    %v1558 = vsel %vm246, %v1553, 0
    %1560 = vmatprep.subr.bf16.mxu0 0
    %1561 = vmatpush1.bf16.xpose.msra.mxu0 %v1558
    %1562 = vmatprep.subr.bf16.mxu0 0
    %1563 = vmatpush1.bf16.xpose.msra.mxu0 0
    %1564 = vmatprep.subr.bf16.mxu0 0
    %1565 = vmatpush1.bf16.xpose.msra.mxu0 0
    %1566 = vmatprep.subr.bf16.mxu0 0
    %1567 = vmatpush1.bf16.xpose.msra.mxu0 0
    %1568 = vmatprep.subr.bf16.mxu0 0
    %1569 = vmatpush1.bf16.xpose.msra.mxu0 0
    %1570 = vmatprep.subr.bf16.mxu0 0
    %1571 = vmatpush1.bf16.xpose.msra.mxu0 0
    %1572 = vmatprep.subr.bf16.mxu0 0
    %1573 = vmatpush1.bf16.xpose.msra.mxu0 0
    %1574 = vmatprep.subr.bf16.mxu0 0
    %1575 = vmatpush1.bf16.xpose.msra.mxu0 0
    %1576 = vmatprep.subr.bf16.mxu0 0
    %1577 = vmatpush1.bf16.xpose.msra.mxu0 0
    %1578 = vmatprep.subr.bf16.mxu0 0
    %1579 = vmatpush1.bf16.xpose.msra.mxu0 0
    %1580 = vmatprep.subr.bf16.mxu0 0
    %1581 = vmatpush1.bf16.xpose.msra.mxu0 0
    %1582 = vmatprep.subr.bf16.mxu0 0
    %1583 = vmatpush1.bf16.xpose.msra.mxu0 0
    %1584 = vmatprep.subr.bf16.mxu0 0
    %1585 = vmatpush1.bf16.xpose.msra.mxu0 0
    %1586 = vmatprep.subr.bf16.mxu0 0
    %1587 = vmatpush1.bf16.xpose.msra.mxu0 0
    %1588 = vmatprep.subr.bf16.mxu0 0
    %1589 = vmatpush1.bf16.xpose.msra.mxu0 0
    %1590 = vmatprep.subr.bf16.mxu0 0
    %1591 = vmatpush1.bf16.xpose.msra.mxu0 0
    %1592 = vmatprep.mubr.bf16.mxu0 0
    %1593 = vmatmul.mubr.bf16.gmra.mrb[0].mxu0 %v1555
    %v1594 = vpop.f32.mrb[0].mxu0
    %v1595 = vadd.f32 %v96, %v1594
    %v1596 = vpop.f32.mrb[0].mxu0
    %v1597 = vpop.f32.mrb[0].mxu0
    %v1598 = vpop.f32.mrb[0].mxu0
    %1599 = vdwg.mxu0
    %v1600 = vsel %vm246, %v1546, -inf
    %1601 = vmax.xlane.f32.xlu0 %v1600
    %v1602 = vpop.xlane.xlu0 %1601
    %v1603 = vsel %vm246, %v1595, -inf
    %1604 = vmax.xlane.f32.xlu0 %v1603
    %v1605 = vpop.xlane.xlu0 %1604
    %v1606 = vsub.f32 %v1546, %v1602
    %v1607 = vsub.f32 %v1595, %v1605
    %v1608 = vmul.f32 %v1606, 1.442695
    %v1609 = vpow.pop %v1608
    %v1610 = vmul.f32 %v1607, 1.442695
    %v1611 = vpow.pop %v1610
    %v1612 = vsel %vm246, %v1609, 0.0
    %1613 = vadd.xlane.f32.xlu0 %v1612
    %v1614 = vpop.xlane.xlu0 %1613
    %v1615 = vsel %vm246, %v1611, 0.0
    %1616 = vadd.xlane.f32.xlu0 %v1615
    %v1617 = vpop.xlane.xlu0 %1616
    %v1618 = vrcp.pop %v1614
    %v1619 = vrcp.pop %v1617
    %v1620 = vmul.f32 %v1609, %v1618
    %v1621 = vmul.f32 %v1611, %v1619
    %v1622 = vpack.c.bf16 %v1620, %v1620
    %v1623 = vpack.c.bf16 %v1621, %v1621
    %v1624 = vpack.c.bf16 %v1494, %v1494
    %v1625 = vpack.c.bf16 %v1497, %v1497
    %1626 = vrot.lane.b32.xlu0 %v1500, 120
    %v1627 = vpop.permute.xlu0 %1626
    %1628 = vrot.lane.b32.xlu0 %v1500, 88
    %v1629 = vpop.permute.xlu0 %1628
    %v1631 = vsel %vm246, %v1627, 0
    %v1634 = vsel %vm246, %v1629, 0
    %1636 = vmatprep.subr.bf16.mxu0 0
    %1637 = vmatpush1.bf16.xpose.msra.mxu0 %v1634
    %1638 = vmatprep.subr.bf16.mxu0 0
    %1639 = vmatpush1.bf16.xpose.msra.mxu0 0
    %1640 = vmatprep.subr.bf16.mxu0 0
    %1641 = vmatpush1.bf16.xpose.msra.mxu0 0
    %1642 = vmatprep.subr.bf16.mxu0 0
    %1643 = vmatpush1.bf16.xpose.msra.mxu0 0
    %1644 = vmatprep.subr.bf16.mxu0 0
    %1645 = vmatpush1.bf16.xpose.msra.mxu0 0
    %1646 = vmatprep.subr.bf16.mxu0 0
    %1647 = vmatpush1.bf16.xpose.msra.mxu0 0
    %1648 = vmatprep.subr.bf16.mxu0 0
    %1649 = vmatpush1.bf16.xpose.msra.mxu0 0
    %1650 = vmatprep.subr.bf16.mxu0 0
    %1651 = vmatpush1.bf16.xpose.msra.mxu0 0
    %1652 = vmatprep.subr.bf16.mxu0 0
    %1653 = vmatpush1.bf16.xpose.msra.mxu0 0
    %1654 = vmatprep.subr.bf16.mxu0 0
    %1655 = vmatpush1.bf16.xpose.msra.mxu0 0
    %1656 = vmatprep.subr.bf16.mxu0 0
    %1657 = vmatpush1.bf16.xpose.msra.mxu0 0
    %1658 = vmatprep.subr.bf16.mxu0 0
    %1659 = vmatpush1.bf16.xpose.msra.mxu0 0
    %1660 = vmatprep.subr.bf16.mxu0 0
    %1661 = vmatpush1.bf16.xpose.msra.mxu0 0
    %1662 = vmatprep.subr.bf16.mxu0 0
    %1663 = vmatpush1.bf16.xpose.msra.mxu0 0
    %1664 = vmatprep.subr.bf16.mxu0 0
    %1665 = vmatpush1.bf16.xpose.msra.mxu0 0
    %1666 = vmatprep.subr.bf16.mxu0 0
    %1667 = vmatpush1.bf16.xpose.msra.mxu0 0
    %1668 = vmatprep.mubr.bf16.mxu0 0
    %1669 = vmatmul.mubr.bf16.gmra.mrb[0].mxu0 %v1631
    %v1670 = vpop.f32.mrb[0].mxu0
    %v1671 = vadd.f32 %v92, %v1670
    %v1672 = vpop.f32.mrb[0].mxu0
    %v1673 = vpop.f32.mrb[0].mxu0
    %v1674 = vpop.f32.mrb[0].mxu0
    %1675 = vdwg.mxu0
    %1676 = vrot.lane.b32.xlu0 %v1501, 120
    %v1677 = vpop.permute.xlu0 %1676
    %1678 = vrot.lane.b32.xlu0 %v1501, 88
    %v1679 = vpop.permute.xlu0 %1678
    %v1681 = vsel %vm246, %v1677, 0
    %v1684 = vsel %vm246, %v1679, 0
    %1686 = vmatprep.subr.bf16.mxu0 0
    %1687 = vmatpush1.bf16.xpose.msra.mxu0 %v1684
    %1688 = vmatprep.subr.bf16.mxu0 0
    %1689 = vmatpush1.bf16.xpose.msra.mxu0 0
    %1690 = vmatprep.subr.bf16.mxu0 0
    %1691 = vmatpush1.bf16.xpose.msra.mxu0 0
    %1692 = vmatprep.subr.bf16.mxu0 0
    %1693 = vmatpush1.bf16.xpose.msra.mxu0 0
    %1694 = vmatprep.subr.bf16.mxu0 0
    %1695 = vmatpush1.bf16.xpose.msra.mxu0 0
    %1696 = vmatprep.subr.bf16.mxu0 0
    %1697 = vmatpush1.bf16.xpose.msra.mxu0 0
    %1698 = vmatprep.subr.bf16.mxu0 0
    %1699 = vmatpush1.bf16.xpose.msra.mxu0 0
    %1700 = vmatprep.subr.bf16.mxu0 0
    %1701 = vmatpush1.bf16.xpose.msra.mxu0 0
    %1702 = vmatprep.subr.bf16.mxu0 0
    %1703 = vmatpush1.bf16.xpose.msra.mxu0 0
    %1704 = vmatprep.subr.bf16.mxu0 0
    %1705 = vmatpush1.bf16.xpose.msra.mxu0 0
    %1706 = vmatprep.subr.bf16.mxu0 0
    %1707 = vmatpush1.bf16.xpose.msra.mxu0 0
    %1708 = vmatprep.subr.bf16.mxu0 0
    %1709 = vmatpush1.bf16.xpose.msra.mxu0 0
    %1710 = vmatprep.subr.bf16.mxu0 0
    %1711 = vmatpush1.bf16.xpose.msra.mxu0 0
    %1712 = vmatprep.subr.bf16.mxu0 0
    %1713 = vmatpush1.bf16.xpose.msra.mxu0 0
    %1714 = vmatprep.subr.bf16.mxu0 0
    %1715 = vmatpush1.bf16.xpose.msra.mxu0 0
    %1716 = vmatprep.subr.bf16.mxu0 0
    %1717 = vmatpush1.bf16.xpose.msra.mxu0 0
    %1718 = vmatprep.mubr.bf16.mxu0 0
    %1719 = vmatmul.mubr.bf16.gmra.mrb[0].mxu0 %v1681
    %v1720 = vpop.f32.mrb[0].mxu0
    %v1721 = vadd.f32 %v96, %v1720
    %v1722 = vpop.f32.mrb[0].mxu0
    %v1723 = vpop.f32.mrb[0].mxu0
    %v1724 = vpop.f32.mrb[0].mxu0
    %1725 = vdwg.mxu0
    %v1726 = vsel %vm246, %v1671, -inf
    %1727 = vmax.xlane.f32.xlu0 %v1726
    %v1728 = vpop.xlane.xlu0 %1727
    %v1729 = vsel %vm246, %v1721, -inf
    %1730 = vmax.xlane.f32.xlu0 %v1729
    %v1731 = vpop.xlane.xlu0 %1730
    %v1732 = vsub.f32 %v1671, %v1728
    %v1733 = vsub.f32 %v1721, %v1731
    %v1734 = vmul.f32 %v1732, 1.442695
    %v1735 = vpow.pop %v1734
    %v1736 = vmul.f32 %v1733, 1.442695
    %v1737 = vpow.pop %v1736
    %v1738 = vsel %vm246, %v1735, 0.0
    %1739 = vadd.xlane.f32.xlu0 %v1738
    %v1740 = vpop.xlane.xlu0 %1739
    %v1741 = vsel %vm246, %v1737, 0.0
    %1742 = vadd.xlane.f32.xlu0 %v1741
    %v1743 = vpop.xlane.xlu0 %1742
    %v1744 = vrcp.pop %v1740
    %v1745 = vrcp.pop %v1743
    %v1746 = vmul.f32 %v1735, %v1744
    %v1747 = vmul.f32 %v1737, %v1745
    %v1748 = vpack.c.bf16 %v1746, %v1746
    %v1749 = vpack.c.bf16 %v1747, %v1747
    %1751 = vrot.lane.b32.xlu0 %v1624, 96
    %v1752 = vpop.permute.xlu0 %1751
    %v1754 = vsel %vm246, %v1748, 0
    %v1757 = vsel %vm498, %v1752, 0
    %1759 = vmatprep.subr.bf16.mxu0 0
    %1760 = vmatpush1.bf16.msra.mxu0 %v1757
    %1761 = vmatprep.subr.bf16.mxu0 0
    %1762 = vmatpush1.bf16.msra.mxu0 0
    %1763 = vmatprep.subr.bf16.mxu0 0
    %1764 = vmatpush1.bf16.msra.mxu0 0
    %1765 = vmatprep.subr.bf16.mxu0 0
    %1766 = vmatpush1.bf16.msra.mxu0 0
    %1767 = vmatprep.subr.bf16.mxu0 0
    %1768 = vmatpush1.bf16.msra.mxu0 0
    %1769 = vmatprep.subr.bf16.mxu0 0
    %1770 = vmatpush1.bf16.msra.mxu0 0
    %1771 = vmatprep.subr.bf16.mxu0 0
    %1772 = vmatpush1.bf16.msra.mxu0 0
    %1773 = vmatprep.subr.bf16.mxu0 0
    %1774 = vmatpush1.bf16.msra.mxu0 0
    %1775 = vmatprep.subr.bf16.mxu0 0
    %1776 = vmatpush1.bf16.msra.mxu0 0
    %1777 = vmatprep.subr.bf16.mxu0 0
    %1778 = vmatpush1.bf16.msra.mxu0 0
    %1779 = vmatprep.subr.bf16.mxu0 0
    %1780 = vmatpush1.bf16.msra.mxu0 0
    %1781 = vmatprep.subr.bf16.mxu0 0
    %1782 = vmatpush1.bf16.msra.mxu0 0
    %1783 = vmatprep.subr.bf16.mxu0 0
    %1784 = vmatpush1.bf16.msra.mxu0 0
    %1785 = vmatprep.subr.bf16.mxu0 0
    %1786 = vmatpush1.bf16.msra.mxu0 0
    %1787 = vmatprep.subr.bf16.mxu0 0
    %1788 = vmatpush1.bf16.msra.mxu0 0
    %1789 = vmatprep.subr.bf16.mxu0 0
    %1790 = vmatpush1.bf16.msra.mxu0 0
    %1791 = vmatprep.mubr.bf16.mxu0 0
    %1792 = vmatmul.mubr.bf16.gmra.mrb[0].mxu0 %v1754
    %v1793 = vpop.f32.mrb[0].mxu0
    %v1794 = vadd.f32 0.0, %v1793
    %v1795 = vpop.f32.mrb[0].mxu0
    %v1796 = vpop.f32.mrb[0].mxu0
    %v1797 = vpop.f32.mrb[0].mxu0
    %1798 = vdwg.mxu0
    %1800 = vrot.lane.b32.xlu0 %v1625, 96
    %v1801 = vpop.permute.xlu0 %1800
    %v1803 = vsel %vm246, %v1749, 0
    %v1806 = vsel %vm498, %v1801, 0
    %1808 = vmatprep.subr.bf16.mxu0 0
    %1809 = vmatpush1.bf16.msra.mxu0 %v1806
    %1810 = vmatprep.subr.bf16.mxu0 0
    %1811 = vmatpush1.bf16.msra.mxu0 0
    %1812 = vmatprep.subr.bf16.mxu0 0
    %1813 = vmatpush1.bf16.msra.mxu0 0
    %1814 = vmatprep.subr.bf16.mxu0 0
    %1815 = vmatpush1.bf16.msra.mxu0 0
    %1816 = vmatprep.subr.bf16.mxu0 0
    %1817 = vmatpush1.bf16.msra.mxu0 0
    %1818 = vmatprep.subr.bf16.mxu0 0
    %1819 = vmatpush1.bf16.msra.mxu0 0
    %1820 = vmatprep.subr.bf16.mxu0 0
    %1821 = vmatpush1.bf16.msra.mxu0 0
    %1822 = vmatprep.subr.bf16.mxu0 0
    %1823 = vmatpush1.bf16.msra.mxu0 0
    %1824 = vmatprep.subr.bf16.mxu0 0
    %1825 = vmatpush1.bf16.msra.mxu0 0
    %1826 = vmatprep.subr.bf16.mxu0 0
    %1827 = vmatpush1.bf16.msra.mxu0 0
    %1828 = vmatprep.subr.bf16.mxu0 0
    %1829 = vmatpush1.bf16.msra.mxu0 0
    %1830 = vmatprep.subr.bf16.mxu0 0
    %1831 = vmatpush1.bf16.msra.mxu0 0
    %1832 = vmatprep.subr.bf16.mxu0 0
    %1833 = vmatpush1.bf16.msra.mxu0 0
    %1834 = vmatprep.subr.bf16.mxu0 0
    %1835 = vmatpush1.bf16.msra.mxu0 0
    %1836 = vmatprep.subr.bf16.mxu0 0
    %1837 = vmatpush1.bf16.msra.mxu0 0
    %1838 = vmatprep.subr.bf16.mxu0 0
    %1839 = vmatpush1.bf16.msra.mxu0 0
    %1840 = vmatprep.mubr.bf16.mxu0 0
    %1841 = vmatmul.mubr.bf16.gmra.mrb[0].mxu0 %v1803
    %v1842 = vpop.f32.mrb[0].mxu0
    %v1843 = vadd.f32 0.0, %v1842
    %v1844 = vpop.f32.mrb[0].mxu0
    %v1845 = vpop.f32.mrb[0].mxu0
    %v1846 = vpop.f32.mrb[0].mxu0
    %1847 = vdwg.mxu0
    %v1849 = vsel %vm246, %v1622, 0
    %v1852 = vsel %vm498, %v1624, 0
    %1854 = vmatprep.subr.bf16.mxu0 0
    %1855 = vmatpush1.bf16.msra.mxu0 %v1852
    %1856 = vmatprep.subr.bf16.mxu0 0
    %1857 = vmatpush1.bf16.msra.mxu0 0
    %1858 = vmatprep.subr.bf16.mxu0 0
    %1859 = vmatpush1.bf16.msra.mxu0 0
    %1860 = vmatprep.subr.bf16.mxu0 0
    %1861 = vmatpush1.bf16.msra.mxu0 0
    %1862 = vmatprep.subr.bf16.mxu0 0
    %1863 = vmatpush1.bf16.msra.mxu0 0
    %1864 = vmatprep.subr.bf16.mxu0 0
    %1865 = vmatpush1.bf16.msra.mxu0 0
    %1866 = vmatprep.subr.bf16.mxu0 0
    %1867 = vmatpush1.bf16.msra.mxu0 0
    %1868 = vmatprep.subr.bf16.mxu0 0
    %1869 = vmatpush1.bf16.msra.mxu0 0
    %1870 = vmatprep.subr.bf16.mxu0 0
    %1871 = vmatpush1.bf16.msra.mxu0 0
    %1872 = vmatprep.subr.bf16.mxu0 0
    %1873 = vmatpush1.bf16.msra.mxu0 0
    %1874 = vmatprep.subr.bf16.mxu0 0
    %1875 = vmatpush1.bf16.msra.mxu0 0
    %1876 = vmatprep.subr.bf16.mxu0 0
    %1877 = vmatpush1.bf16.msra.mxu0 0
    %1878 = vmatprep.subr.bf16.mxu0 0
    %1879 = vmatpush1.bf16.msra.mxu0 0
    %1880 = vmatprep.subr.bf16.mxu0 0
    %1881 = vmatpush1.bf16.msra.mxu0 0
    %1882 = vmatprep.subr.bf16.mxu0 0
    %1883 = vmatpush1.bf16.msra.mxu0 0
    %1884 = vmatprep.subr.bf16.mxu0 0
    %1885 = vmatpush1.bf16.msra.mxu0 0
    %1886 = vmatprep.mubr.bf16.mxu0 0
    %1887 = vmatmul.mubr.bf16.gmra.mrb[0].mxu0 %v1849
    %v1888 = vpop.f32.mrb[0].mxu0
    %v1889 = vadd.f32 %v1794, %v1888
    %v1890 = vpop.f32.mrb[0].mxu0
    %v1891 = vpop.f32.mrb[0].mxu0
    %v1892 = vpop.f32.mrb[0].mxu0
    %1893 = vdwg.mxu0
    %v1895 = vsel %vm246, %v1623, 0
    %v1898 = vsel %vm498, %v1625, 0
    %1900 = vmatprep.subr.bf16.mxu0 0
    %1901 = vmatpush1.bf16.msra.mxu0 %v1898
    %1902 = vmatprep.subr.bf16.mxu0 0
    %1903 = vmatpush1.bf16.msra.mxu0 0
    %1904 = vmatprep.subr.bf16.mxu0 0
    %1905 = vmatpush1.bf16.msra.mxu0 0
    %1906 = vmatprep.subr.bf16.mxu0 0
    %1907 = vmatpush1.bf16.msra.mxu0 0
    %1908 = vmatprep.subr.bf16.mxu0 0
    %1909 = vmatpush1.bf16.msra.mxu0 0
    %1910 = vmatprep.subr.bf16.mxu0 0
    %1911 = vmatpush1.bf16.msra.mxu0 0
    %1912 = vmatprep.subr.bf16.mxu0 0
    %1913 = vmatpush1.bf16.msra.mxu0 0
    %1914 = vmatprep.subr.bf16.mxu0 0
    %1915 = vmatpush1.bf16.msra.mxu0 0
    %1916 = vmatprep.subr.bf16.mxu0 0
    %1917 = vmatpush1.bf16.msra.mxu0 0
    %1918 = vmatprep.subr.bf16.mxu0 0
    %1919 = vmatpush1.bf16.msra.mxu0 0
    %1920 = vmatprep.subr.bf16.mxu0 0
    %1921 = vmatpush1.bf16.msra.mxu0 0
    %1922 = vmatprep.subr.bf16.mxu0 0
    %1923 = vmatpush1.bf16.msra.mxu0 0
    %1924 = vmatprep.subr.bf16.mxu0 0
    %1925 = vmatpush1.bf16.msra.mxu0 0
    %1926 = vmatprep.subr.bf16.mxu0 0
    %1927 = vmatpush1.bf16.msra.mxu0 0
    %1928 = vmatprep.subr.bf16.mxu0 0
    %1929 = vmatpush1.bf16.msra.mxu0 0
    %1930 = vmatprep.subr.bf16.mxu0 0
    %1931 = vmatpush1.bf16.msra.mxu0 0
    %1932 = vmatprep.mubr.bf16.mxu0 0
    %1933 = vmatmul.mubr.bf16.gmra.mrb[0].mxu0 %v1895
    %v1934 = vpop.f32.mrb[0].mxu0
    %v1935 = vadd.f32 %v1843, %v1934
    %v1936 = vpop.f32.mrb[0].mxu0
    %v1937 = vpop.f32.mrb[0].mxu0
    %v1938 = vpop.f32.mrb[0].mxu0
    %1939 = vdwg.mxu0
    %1940 = vrot.lane.b32.xlu0 %v1500, 112
    %v1941 = vpop.permute.xlu0 %1940
    %1942 = vrot.lane.b32.xlu0 %v1500, 80
    %v1943 = vpop.permute.xlu0 %1942
    %v1945 = vsel %vm246, %v1941, 0
    %v1948 = vsel %vm246, %v1943, 0
    %1950 = vmatprep.subr.bf16.mxu0 0
    %1951 = vmatpush1.bf16.xpose.msra.mxu0 %v1948
    %1952 = vmatprep.subr.bf16.mxu0 0
    %1953 = vmatpush1.bf16.xpose.msra.mxu0 0
    %1954 = vmatprep.subr.bf16.mxu0 0
    %1955 = vmatpush1.bf16.xpose.msra.mxu0 0
    %1956 = vmatprep.subr.bf16.mxu0 0
    %1957 = vmatpush1.bf16.xpose.msra.mxu0 0
    %1958 = vmatprep.subr.bf16.mxu0 0
    %1959 = vmatpush1.bf16.xpose.msra.mxu0 0
    %1960 = vmatprep.subr.bf16.mxu0 0
    %1961 = vmatpush1.bf16.xpose.msra.mxu0 0
    %1962 = vmatprep.subr.bf16.mxu0 0
    %1963 = vmatpush1.bf16.xpose.msra.mxu0 0
    %1964 = vmatprep.subr.bf16.mxu0 0
    %1965 = vmatpush1.bf16.xpose.msra.mxu0 0
    %1966 = vmatprep.subr.bf16.mxu0 0
    %1967 = vmatpush1.bf16.xpose.msra.mxu0 0
    %1968 = vmatprep.subr.bf16.mxu0 0
    %1969 = vmatpush1.bf16.xpose.msra.mxu0 0
    %1970 = vmatprep.subr.bf16.mxu0 0
    %1971 = vmatpush1.bf16.xpose.msra.mxu0 0
    %1972 = vmatprep.subr.bf16.mxu0 0
    %1973 = vmatpush1.bf16.xpose.msra.mxu0 0
    %1974 = vmatprep.subr.bf16.mxu0 0
    %1975 = vmatpush1.bf16.xpose.msra.mxu0 0
    %1976 = vmatprep.subr.bf16.mxu0 0
    %1977 = vmatpush1.bf16.xpose.msra.mxu0 0
    %1978 = vmatprep.subr.bf16.mxu0 0
    %1979 = vmatpush1.bf16.xpose.msra.mxu0 0
    %1980 = vmatprep.subr.bf16.mxu0 0
    %1981 = vmatpush1.bf16.xpose.msra.mxu0 0
    %1982 = vmatprep.mubr.bf16.mxu0 0
    %1983 = vmatmul.mubr.bf16.gmra.mrb[0].mxu0 %v1945
    %v1984 = vpop.f32.mrb[0].mxu0
    %v1985 = vadd.f32 %v92, %v1984
    %v1986 = vpop.f32.mrb[0].mxu0
    %v1987 = vpop.f32.mrb[0].mxu0
    %v1988 = vpop.f32.mrb[0].mxu0
    %1989 = vdwg.mxu0
    %1990 = vrot.lane.b32.xlu0 %v1501, 112
    %v1991 = vpop.permute.xlu0 %1990
    %1992 = vrot.lane.b32.xlu0 %v1501, 80
    %v1993 = vpop.permute.xlu0 %1992
    %v1995 = vsel %vm246, %v1991, 0
    %v1998 = vsel %vm246, %v1993, 0
    %2000 = vmatprep.subr.bf16.mxu0 0
    %2001 = vmatpush1.bf16.xpose.msra.mxu0 %v1998
    %2002 = vmatprep.subr.bf16.mxu0 0
    %2003 = vmatpush1.bf16.xpose.msra.mxu0 0
    %2004 = vmatprep.subr.bf16.mxu0 0
    %2005 = vmatpush1.bf16.xpose.msra.mxu0 0
    %2006 = vmatprep.subr.bf16.mxu0 0
    %2007 = vmatpush1.bf16.xpose.msra.mxu0 0
    %2008 = vmatprep.subr.bf16.mxu0 0
    %2009 = vmatpush1.bf16.xpose.msra.mxu0 0
    %2010 = vmatprep.subr.bf16.mxu0 0
    %2011 = vmatpush1.bf16.xpose.msra.mxu0 0
    %2012 = vmatprep.subr.bf16.mxu0 0
    %2013 = vmatpush1.bf16.xpose.msra.mxu0 0
    %2014 = vmatprep.subr.bf16.mxu0 0
    %2015 = vmatpush1.bf16.xpose.msra.mxu0 0
    %2016 = vmatprep.subr.bf16.mxu0 0
    %2017 = vmatpush1.bf16.xpose.msra.mxu0 0
    %2018 = vmatprep.subr.bf16.mxu0 0
    %2019 = vmatpush1.bf16.xpose.msra.mxu0 0
    %2020 = vmatprep.subr.bf16.mxu0 0
    %2021 = vmatpush1.bf16.xpose.msra.mxu0 0
    %2022 = vmatprep.subr.bf16.mxu0 0
    %2023 = vmatpush1.bf16.xpose.msra.mxu0 0
    %2024 = vmatprep.subr.bf16.mxu0 0
    %2025 = vmatpush1.bf16.xpose.msra.mxu0 0
    %2026 = vmatprep.subr.bf16.mxu0 0
    %2027 = vmatpush1.bf16.xpose.msra.mxu0 0
    %2028 = vmatprep.subr.bf16.mxu0 0
    %2029 = vmatpush1.bf16.xpose.msra.mxu0 0
    %2030 = vmatprep.subr.bf16.mxu0 0
    %2031 = vmatpush1.bf16.xpose.msra.mxu0 0
    %2032 = vmatprep.mubr.bf16.mxu0 0
    %2033 = vmatmul.mubr.bf16.gmra.mrb[0].mxu0 %v1995
    %v2034 = vpop.f32.mrb[0].mxu0
    %v2035 = vadd.f32 %v96, %v2034
    %v2036 = vpop.f32.mrb[0].mxu0
    %v2037 = vpop.f32.mrb[0].mxu0
    %v2038 = vpop.f32.mrb[0].mxu0
    %2039 = vdwg.mxu0
    %v2040 = vsel %vm246, %v1985, -inf
    %2041 = vmax.xlane.f32.xlu0 %v2040
    %v2042 = vpop.xlane.xlu0 %2041
    %v2043 = vsel %vm246, %v2035, -inf
    %2044 = vmax.xlane.f32.xlu0 %v2043
    %v2045 = vpop.xlane.xlu0 %2044
    %v2046 = vsub.f32 %v1985, %v2042
    %v2047 = vsub.f32 %v2035, %v2045
    %v2048 = vmul.f32 %v2046, 1.442695
    %v2049 = vpow.pop %v2048
    %v2050 = vmul.f32 %v2047, 1.442695
    %v2051 = vpow.pop %v2050
    %v2052 = vsel %vm246, %v2049, 0.0
    %2053 = vadd.xlane.f32.xlu0 %v2052
    %v2054 = vpop.xlane.xlu0 %2053
    %v2055 = vsel %vm246, %v2051, 0.0
    %2056 = vadd.xlane.f32.xlu0 %v2055
    %v2057 = vpop.xlane.xlu0 %2056
    %v2058 = vrcp.pop %v2054
    %v2059 = vrcp.pop %v2057
    %v2060 = vmul.f32 %v2049, %v2058
    %v2061 = vmul.f32 %v2051, %v2059
    %v2062 = vpack.c.bf16 %v2060, %v2060
    %v2063 = vpack.c.bf16 %v2061, %v2061
    %2064 = vrot.lane.b32.xlu0 %v1624, 64
    %v2065 = vpop.permute.xlu0 %2064
    %v2067 = vsel %vm246, %v2062, 0
    %v2070 = vsel %vm498, %v2065, 0
    %2072 = vmatprep.subr.bf16.mxu0 0
    %2073 = vmatpush1.bf16.msra.mxu0 %v2070
    %2074 = vmatprep.subr.bf16.mxu0 0
    %2075 = vmatpush1.bf16.msra.mxu0 0
    %2076 = vmatprep.subr.bf16.mxu0 0
    %2077 = vmatpush1.bf16.msra.mxu0 0
    %2078 = vmatprep.subr.bf16.mxu0 0
    %2079 = vmatpush1.bf16.msra.mxu0 0
    %2080 = vmatprep.subr.bf16.mxu0 0
    %2081 = vmatpush1.bf16.msra.mxu0 0
    %2082 = vmatprep.subr.bf16.mxu0 0
    %2083 = vmatpush1.bf16.msra.mxu0 0
    %2084 = vmatprep.subr.bf16.mxu0 0
    %2085 = vmatpush1.bf16.msra.mxu0 0
    %2086 = vmatprep.subr.bf16.mxu0 0
    %2087 = vmatpush1.bf16.msra.mxu0 0
    %2088 = vmatprep.subr.bf16.mxu0 0
    %2089 = vmatpush1.bf16.msra.mxu0 0
    %2090 = vmatprep.subr.bf16.mxu0 0
    %2091 = vmatpush1.bf16.msra.mxu0 0
    %2092 = vmatprep.subr.bf16.mxu0 0
    %2093 = vmatpush1.bf16.msra.mxu0 0
    %2094 = vmatprep.subr.bf16.mxu0 0
    %2095 = vmatpush1.bf16.msra.mxu0 0
    %2096 = vmatprep.subr.bf16.mxu0 0
    %2097 = vmatpush1.bf16.msra.mxu0 0
    %2098 = vmatprep.subr.bf16.mxu0 0
    %2099 = vmatpush1.bf16.msra.mxu0 0
    %2100 = vmatprep.subr.bf16.mxu0 0
    %2101 = vmatpush1.bf16.msra.mxu0 0
    %2102 = vmatprep.subr.bf16.mxu0 0
    %2103 = vmatpush1.bf16.msra.mxu0 0
    %2104 = vmatprep.mubr.bf16.mxu0 0
    %2105 = vmatmul.mubr.bf16.gmra.mrb[0].mxu0 %v2067
    %v2106 = vpop.f32.mrb[0].mxu0
    %v2107 = vadd.f32 0.0, %v2106
    %v2108 = vpop.f32.mrb[0].mxu0
    %v2109 = vpop.f32.mrb[0].mxu0
    %v2110 = vpop.f32.mrb[0].mxu0
    %2111 = vdwg.mxu0
    %2112 = vrot.lane.b32.xlu0 %v1625, 64
    %v2113 = vpop.permute.xlu0 %2112
    %v2115 = vsel %vm246, %v2063, 0
    %v2118 = vsel %vm498, %v2113, 0
    %2120 = vmatprep.subr.bf16.mxu0 0
    %2121 = vmatpush1.bf16.msra.mxu0 %v2118
    %2122 = vmatprep.subr.bf16.mxu0 0
    %2123 = vmatpush1.bf16.msra.mxu0 0
    %2124 = vmatprep.subr.bf16.mxu0 0
    %2125 = vmatpush1.bf16.msra.mxu0 0
    %2126 = vmatprep.subr.bf16.mxu0 0
    %2127 = vmatpush1.bf16.msra.mxu0 0
    %2128 = vmatprep.subr.bf16.mxu0 0
    %2129 = vmatpush1.bf16.msra.mxu0 0
    %2130 = vmatprep.subr.bf16.mxu0 0
    %2131 = vmatpush1.bf16.msra.mxu0 0
    %2132 = vmatprep.subr.bf16.mxu0 0
    %2133 = vmatpush1.bf16.msra.mxu0 0
    %2134 = vmatprep.subr.bf16.mxu0 0
    %2135 = vmatpush1.bf16.msra.mxu0 0
    %2136 = vmatprep.subr.bf16.mxu0 0
    %2137 = vmatpush1.bf16.msra.mxu0 0
    %2138 = vmatprep.subr.bf16.mxu0 0
    %2139 = vmatpush1.bf16.msra.mxu0 0
    %2140 = vmatprep.subr.bf16.mxu0 0
    %2141 = vmatpush1.bf16.msra.mxu0 0
    %2142 = vmatprep.subr.bf16.mxu0 0
    %2143 = vmatpush1.bf16.msra.mxu0 0
    %2144 = vmatprep.subr.bf16.mxu0 0
    %2145 = vmatpush1.bf16.msra.mxu0 0
    %2146 = vmatprep.subr.bf16.mxu0 0
    %2147 = vmatpush1.bf16.msra.mxu0 0
    %2148 = vmatprep.subr.bf16.mxu0 0
    %2149 = vmatpush1.bf16.msra.mxu0 0
    %2150 = vmatprep.subr.bf16.mxu0 0
    %2151 = vmatpush1.bf16.msra.mxu0 0
    %2152 = vmatprep.mubr.bf16.mxu0 0
    %2153 = vmatmul.mubr.bf16.gmra.mrb[0].mxu0 %v2115
    %v2154 = vpop.f32.mrb[0].mxu0
    %v2155 = vadd.f32 0.0, %v2154
    %v2156 = vpop.f32.mrb[0].mxu0
    %v2157 = vpop.f32.mrb[0].mxu0
    %v2158 = vpop.f32.mrb[0].mxu0
    %2159 = vdwg.mxu0
    %v2160 = vadd.f32 %v1889, %v2107
    %v2161 = vadd.f32 %v1935, %v2155
    %2162 = vrot.lane.b32.xlu0 %v1500, 104
    %v2163 = vpop.permute.xlu0 %2162
    %2164 = vrot.lane.b32.xlu0 %v1500, 72
    %v2165 = vpop.permute.xlu0 %2164
    %v2167 = vsel %vm246, %v2163, 0
    %v2170 = vsel %vm246, %v2165, 0
    %2172 = vmatprep.subr.bf16.mxu0 0
    %2173 = vmatpush1.bf16.xpose.msra.mxu0 %v2170
    %2174 = vmatprep.subr.bf16.mxu0 0
    %2175 = vmatpush1.bf16.xpose.msra.mxu0 0
    %2176 = vmatprep.subr.bf16.mxu0 0
    %2177 = vmatpush1.bf16.xpose.msra.mxu0 0
    %2178 = vmatprep.subr.bf16.mxu0 0
    %2179 = vmatpush1.bf16.xpose.msra.mxu0 0
    %2180 = vmatprep.subr.bf16.mxu0 0
    %2181 = vmatpush1.bf16.xpose.msra.mxu0 0
    %2182 = vmatprep.subr.bf16.mxu0 0
    %2183 = vmatpush1.bf16.xpose.msra.mxu0 0
    %2184 = vmatprep.subr.bf16.mxu0 0
    %2185 = vmatpush1.bf16.xpose.msra.mxu0 0
    %2186 = vmatprep.subr.bf16.mxu0 0
    %2187 = vmatpush1.bf16.xpose.msra.mxu0 0
    %2188 = vmatprep.subr.bf16.mxu0 0
    %2189 = vmatpush1.bf16.xpose.msra.mxu0 0
    %2190 = vmatprep.subr.bf16.mxu0 0
    %2191 = vmatpush1.bf16.xpose.msra.mxu0 0
    %2192 = vmatprep.subr.bf16.mxu0 0
    %2193 = vmatpush1.bf16.xpose.msra.mxu0 0
    %2194 = vmatprep.subr.bf16.mxu0 0
    %2195 = vmatpush1.bf16.xpose.msra.mxu0 0
    %2196 = vmatprep.subr.bf16.mxu0 0
    %2197 = vmatpush1.bf16.xpose.msra.mxu0 0
    %2198 = vmatprep.subr.bf16.mxu0 0
    %2199 = vmatpush1.bf16.xpose.msra.mxu0 0
    %2200 = vmatprep.subr.bf16.mxu0 0
    %2201 = vmatpush1.bf16.xpose.msra.mxu0 0
    %2202 = vmatprep.subr.bf16.mxu0 0
    %2203 = vmatpush1.bf16.xpose.msra.mxu0 0
    %2204 = vmatprep.mubr.bf16.mxu0 0
    %2205 = vmatmul.mubr.bf16.gmra.mrb[0].mxu0 %v2167
    %v2206 = vpop.f32.mrb[0].mxu0
    %v2207 = vadd.f32 %v92, %v2206
    %v2208 = vpop.f32.mrb[0].mxu0
    %v2209 = vpop.f32.mrb[0].mxu0
    %v2210 = vpop.f32.mrb[0].mxu0
    %2211 = vdwg.mxu0
    %2212 = vrot.lane.b32.xlu0 %v1501, 104
    %v2213 = vpop.permute.xlu0 %2212
    %2214 = vrot.lane.b32.xlu0 %v1501, 72
    %v2215 = vpop.permute.xlu0 %2214
    %v2217 = vsel %vm246, %v2213, 0
    %v2220 = vsel %vm246, %v2215, 0
    %2222 = vmatprep.subr.bf16.mxu0 0
    %2223 = vmatpush1.bf16.xpose.msra.mxu0 %v2220
    %2224 = vmatprep.subr.bf16.mxu0 0
    %2225 = vmatpush1.bf16.xpose.msra.mxu0 0
    %2226 = vmatprep.subr.bf16.mxu0 0
    %2227 = vmatpush1.bf16.xpose.msra.mxu0 0
    %2228 = vmatprep.subr.bf16.mxu0 0
    %2229 = vmatpush1.bf16.xpose.msra.mxu0 0
    %2230 = vmatprep.subr.bf16.mxu0 0
    %2231 = vmatpush1.bf16.xpose.msra.mxu0 0
    %2232 = vmatprep.subr.bf16.mxu0 0
    %2233 = vmatpush1.bf16.xpose.msra.mxu0 0
    %2234 = vmatprep.subr.bf16.mxu0 0
    %2235 = vmatpush1.bf16.xpose.msra.mxu0 0
    %2236 = vmatprep.subr.bf16.mxu0 0
    %2237 = vmatpush1.bf16.xpose.msra.mxu0 0
    %2238 = vmatprep.subr.bf16.mxu0 0
    %2239 = vmatpush1.bf16.xpose.msra.mxu0 0
    %2240 = vmatprep.subr.bf16.mxu0 0
    %2241 = vmatpush1.bf16.xpose.msra.mxu0 0
    %2242 = vmatprep.subr.bf16.mxu0 0
    %2243 = vmatpush1.bf16.xpose.msra.mxu0 0
    %2244 = vmatprep.subr.bf16.mxu0 0
    %2245 = vmatpush1.bf16.xpose.msra.mxu0 0
    %2246 = vmatprep.subr.bf16.mxu0 0
    %2247 = vmatpush1.bf16.xpose.msra.mxu0 0
    %2248 = vmatprep.subr.bf16.mxu0 0
    %2249 = vmatpush1.bf16.xpose.msra.mxu0 0
    %2250 = vmatprep.subr.bf16.mxu0 0
    %2251 = vmatpush1.bf16.xpose.msra.mxu0 0
    %2252 = vmatprep.subr.bf16.mxu0 0
    %2253 = vmatpush1.bf16.xpose.msra.mxu0 0
    %2254 = vmatprep.mubr.bf16.mxu0 0
    %2255 = vmatmul.mubr.bf16.gmra.mrb[0].mxu0 %v2217
    %v2256 = vpop.f32.mrb[0].mxu0
    %v2257 = vadd.f32 %v96, %v2256
    %v2258 = vpop.f32.mrb[0].mxu0
    %v2259 = vpop.f32.mrb[0].mxu0
    %v2260 = vpop.f32.mrb[0].mxu0
    %2261 = vdwg.mxu0
    %v2262 = vsel %vm246, %v2207, -inf
    %2263 = vmax.xlane.f32.xlu0 %v2262
    %v2264 = vpop.xlane.xlu0 %2263
    %v2265 = vsel %vm246, %v2257, -inf
    %2266 = vmax.xlane.f32.xlu0 %v2265
    %v2267 = vpop.xlane.xlu0 %2266
    %v2268 = vsub.f32 %v2207, %v2264
    %v2269 = vsub.f32 %v2257, %v2267
    %v2270 = vmul.f32 %v2268, 1.442695
    %v2271 = vpow.pop %v2270
    %v2272 = vmul.f32 %v2269, 1.442695
    %v2273 = vpow.pop %v2272
    %v2274 = vsel %vm246, %v2271, 0.0
    %2275 = vadd.xlane.f32.xlu0 %v2274
    %v2276 = vpop.xlane.xlu0 %2275
    %v2277 = vsel %vm246, %v2273, 0.0
    %2278 = vadd.xlane.f32.xlu0 %v2277
    %v2279 = vpop.xlane.xlu0 %2278
    %v2280 = vrcp.pop %v2276
    %v2281 = vrcp.pop %v2279
    %v2282 = vmul.f32 %v2271, %v2280
    %v2283 = vmul.f32 %v2273, %v2281
    %v2284 = vpack.c.bf16 %v2282, %v2282
    %v2285 = vpack.c.bf16 %v2283, %v2283
    %2286 = vrot.lane.b32.xlu0 %v1624, 32
    %v2287 = vpop.permute.xlu0 %2286
    %v2289 = vsel %vm246, %v2284, 0
    %v2292 = vsel %vm498, %v2287, 0
    %2294 = vmatprep.subr.bf16.mxu0 0
    %2295 = vmatpush1.bf16.msra.mxu0 %v2292
    %2296 = vmatprep.subr.bf16.mxu0 0
    %2297 = vmatpush1.bf16.msra.mxu0 0
    %2298 = vmatprep.subr.bf16.mxu0 0
    %2299 = vmatpush1.bf16.msra.mxu0 0
    %2300 = vmatprep.subr.bf16.mxu0 0
    %2301 = vmatpush1.bf16.msra.mxu0 0
    %2302 = vmatprep.subr.bf16.mxu0 0
    %2303 = vmatpush1.bf16.msra.mxu0 0
    %2304 = vmatprep.subr.bf16.mxu0 0
    %2305 = vmatpush1.bf16.msra.mxu0 0
    %2306 = vmatprep.subr.bf16.mxu0 0
    %2307 = vmatpush1.bf16.msra.mxu0 0
    %2308 = vmatprep.subr.bf16.mxu0 0
    %2309 = vmatpush1.bf16.msra.mxu0 0
    %2310 = vmatprep.subr.bf16.mxu0 0
    %2311 = vmatpush1.bf16.msra.mxu0 0
    %2312 = vmatprep.subr.bf16.mxu0 0
    %2313 = vmatpush1.bf16.msra.mxu0 0
    %2314 = vmatprep.subr.bf16.mxu0 0
    %2315 = vmatpush1.bf16.msra.mxu0 0
    %2316 = vmatprep.subr.bf16.mxu0 0
    %2317 = vmatpush1.bf16.msra.mxu0 0
    %2318 = vmatprep.subr.bf16.mxu0 0
    %2319 = vmatpush1.bf16.msra.mxu0 0
    %2320 = vmatprep.subr.bf16.mxu0 0
    %2321 = vmatpush1.bf16.msra.mxu0 0
    %2322 = vmatprep.subr.bf16.mxu0 0
    %2323 = vmatpush1.bf16.msra.mxu0 0
    %2324 = vmatprep.subr.bf16.mxu0 0
    %2325 = vmatpush1.bf16.msra.mxu0 0
    %2326 = vmatprep.mubr.bf16.mxu0 0
    %2327 = vmatmul.mubr.bf16.gmra.mrb[0].mxu0 %v2289
    %v2328 = vpop.f32.mrb[0].mxu0
    %v2329 = vadd.f32 0.0, %v2328
    %v2330 = vpop.f32.mrb[0].mxu0
    %v2331 = vpop.f32.mrb[0].mxu0
    %v2332 = vpop.f32.mrb[0].mxu0
    %2333 = vdwg.mxu0
    %2334 = vrot.lane.b32.xlu0 %v1625, 32
    %v2335 = vpop.permute.xlu0 %2334
    %v2337 = vsel %vm246, %v2285, 0
    %v2340 = vsel %vm498, %v2335, 0
    %2342 = vmatprep.subr.bf16.mxu0 0
    %2343 = vmatpush1.bf16.msra.mxu0 %v2340
    %2344 = vmatprep.subr.bf16.mxu0 0
    %2345 = vmatpush1.bf16.msra.mxu0 0
    %2346 = vmatprep.subr.bf16.mxu0 0
    %2347 = vmatpush1.bf16.msra.mxu0 0
    %2348 = vmatprep.subr.bf16.mxu0 0
    %2349 = vmatpush1.bf16.msra.mxu0 0
    %2350 = vmatprep.subr.bf16.mxu0 0
    %2351 = vmatpush1.bf16.msra.mxu0 0
    %2352 = vmatprep.subr.bf16.mxu0 0
    %2353 = vmatpush1.bf16.msra.mxu0 0
    %2354 = vmatprep.subr.bf16.mxu0 0
    %2355 = vmatpush1.bf16.msra.mxu0 0
    %2356 = vmatprep.subr.bf16.mxu0 0
    %2357 = vmatpush1.bf16.msra.mxu0 0
    %2358 = vmatprep.subr.bf16.mxu0 0
    %2359 = vmatpush1.bf16.msra.mxu0 0
    %2360 = vmatprep.subr.bf16.mxu0 0
    %2361 = vmatpush1.bf16.msra.mxu0 0
    %2362 = vmatprep.subr.bf16.mxu0 0
    %2363 = vmatpush1.bf16.msra.mxu0 0
    %2364 = vmatprep.subr.bf16.mxu0 0
    %2365 = vmatpush1.bf16.msra.mxu0 0
    %2366 = vmatprep.subr.bf16.mxu0 0
    %2367 = vmatpush1.bf16.msra.mxu0 0
    %2368 = vmatprep.subr.bf16.mxu0 0
    %2369 = vmatpush1.bf16.msra.mxu0 0
    %2370 = vmatprep.subr.bf16.mxu0 0
    %2371 = vmatpush1.bf16.msra.mxu0 0
    %2372 = vmatprep.subr.bf16.mxu0 0
    %2373 = vmatpush1.bf16.msra.mxu0 0
    %2374 = vmatprep.mubr.bf16.mxu0 0
    %2375 = vmatmul.mubr.bf16.gmra.mrb[0].mxu0 %v2337
    %v2376 = vpop.f32.mrb[0].mxu0
    %v2377 = vadd.f32 0.0, %v2376
    %v2378 = vpop.f32.mrb[0].mxu0
    %v2379 = vpop.f32.mrb[0].mxu0
    %v2380 = vpop.f32.mrb[0].mxu0
    %2381 = vdwg.mxu0
    %v2382 = vadd.f32 %v2160, %v2329
    %v2383 = vadd.f32 %v2161, %v2377
    %v2384 = vlaneseq
    %v2385 = vshrl.u32 %v2384, 7
    %v2386 = vsub.s32 0, %v2385
    %v2387 = vrot.slane %v1379, %v2386
    %v2388 = vadd.f32 %v2382, %v2387
    %v2389 = vadd.f32 %v2383, %v2387
    %v2390 = vadd.f32 %v1356, %v2388
    %v2391 = vadd.f32 %v1357, %v2389
    %v2392 = vsel %vm23, %v2390, 0.0
    %2393 = vadd.xlane.f32.xlu0 %v2392
    %v2394 = vpop.xlane.xlu0 %2393
    %v2395 = vsel %vm23, %v2391, 0.0
    %2396 = vadd.xlane.f32.xlu0 %v2395
    %v2397 = vpop.xlane.xlu0 %2396
    %v2398 = vmul.f32 %v2394, %v30
    %v2399 = vmul.f32 %v2397, %v30
    %v2400 = vsub.f32 %v2390, %v2398
    %v2401 = vsub.f32 %v2391, %v2399
    %v2402 = vmul.f32 %v2400, %v2400
    %v2403 = vmul.f32 %v2401, %v2401
    %v2404 = vsel %vm23, %v2402, 0.0
    %2405 = vadd.xlane.f32.xlu0 %v2404
    %v2406 = vpop.xlane.xlu0 %2405
    %v2407 = vsel %vm23, %v2403, 0.0
    %2408 = vadd.xlane.f32.xlu0 %v2407
    %v2409 = vpop.xlane.xlu0 %2408
    %v2410 = vmul.f32 %v2406, %v30
    %v2411 = vmul.f32 %v2409, %v30
    %v2412 = vadd.f32 %v2410, 1e-12
    %v2413 = vadd.f32 %v2411, 1e-12
    %v2414 = vrsqrt.pop %v2412
    %v2415 = vrsqrt.pop %v2413
    %v2416 = vmul.f32 %v2400, %v2414
    %v2417 = vmul.f32 %v2401, %v2415
    %v2418 = vlaneseq
    %v2419 = vshrl.u32 %v2418, 7
    %v2420 = vsub.s32 0, %v2419
    %v2421 = vrot.slane %v1380, %v2420
    %v2422 = vmul.f32 %v2416, %v2421
    %v2423 = vmul.f32 %v2417, %v2421
    %v2424 = vlaneseq
    %v2425 = vshrl.u32 %v2424, 7
    %v2426 = vsub.s32 0, %v2425
    %v2427 = vrot.slane %v1381, %v2426
    %v2428 = vadd.f32 %v2422, %v2427
    %v2429 = vadd.f32 %v2423, %v2427
    %v2430 = vpack.c.bf16 %v2429, %v2428
    %v2431 = vlaneseq
    %v2432 = vshrl.u32 %v2431, 7
    %v2433 = vsub.s32 0, %v2432
    %v2434 = vrot.slane %v1382, %v2433
    %v2439 = vunpack.c.l.b16 %v1366
    %v2440 = vunpack.c.l.b16 %v1367
    %v2441 = vunpack.c.l.b16 %v1368
    %v2442 = vunpack.c.l.b16 %v1369
    %v2443 = vpack.c.b16 %v2440, %v2439
    %v2444 = vpack.c.b16 %v2442, %v2441
    %v2448 = vsel %vm23, %v2430, 0
    %2450 = vmatprep.subr.bf16.mxu0 0
    %2451 = vmatpush1.bf16.msra.mxu0 %v2443
    %2452 = vmatprep.subr.bf16.mxu0 0
    %2453 = vmatpush1.bf16.msra.mxu0 %v2444
    %2454 = vmatprep.subr.bf16.mxu0 0
    %2455 = vmatpush1.bf16.msra.mxu0 0
    %2456 = vmatprep.subr.bf16.mxu0 0
    %2457 = vmatpush1.bf16.msra.mxu0 0
    %2458 = vmatprep.subr.bf16.mxu0 0
    %2459 = vmatpush1.bf16.msra.mxu0 0
    %2460 = vmatprep.subr.bf16.mxu0 0
    %2461 = vmatpush1.bf16.msra.mxu0 0
    %2462 = vmatprep.subr.bf16.mxu0 0
    %2463 = vmatpush1.bf16.msra.mxu0 0
    %2464 = vmatprep.subr.bf16.mxu0 0
    %2465 = vmatpush1.bf16.msra.mxu0 0
    %2466 = vmatprep.subr.bf16.mxu0 0
    %2467 = vmatpush1.bf16.msra.mxu0 0
    %2468 = vmatprep.subr.bf16.mxu0 0
    %2469 = vmatpush1.bf16.msra.mxu0 0
    %2470 = vmatprep.subr.bf16.mxu0 0
    %2471 = vmatpush1.bf16.msra.mxu0 0
    %2472 = vmatprep.subr.bf16.mxu0 0
    %2473 = vmatpush1.bf16.msra.mxu0 0
    %2474 = vmatprep.subr.bf16.mxu0 0
    %2475 = vmatpush1.bf16.msra.mxu0 0
    %2476 = vmatprep.subr.bf16.mxu0 0
    %2477 = vmatpush1.bf16.msra.mxu0 0
    %2478 = vmatprep.subr.bf16.mxu0 0
    %2479 = vmatpush1.bf16.msra.mxu0 0
    %2480 = vmatprep.subr.bf16.mxu0 0
    %2481 = vmatpush1.bf16.msra.mxu0 0
    %2482 = vmatprep.mubr.bf16.mxu0 0
    %2483 = vmatmul.mubr.bf16.gmra.mrb[0].mxu0 %v2448
    %v2484 = vpop.f32.mrb[0].mxu0
    %v2485 = vadd.f32 %v2434, %v2484
    %v2486 = vpop.f32.mrb[0].mxu0
    %v2487 = vpop.f32.mrb[0].mxu0
    %v2488 = vadd.f32 %v2434, %v2487
    %v2489 = vpop.f32.mrb[0].mxu0
    %2490 = vdwg.mxu0
    %v2491 = vmul.f32 %v2485, 0.5
    %v2492 = vmul.f32 %v2488, 0.5
    %v2493 = vmul.f32 %v2485, 0.70710677
    %v2494 = vmul.f32 %v2488, 0.70710677
    %v2495 = verf.f32.pop %v2493
    %v2496 = verf.f32.pop %v2494
    %v2497 = vadd.f32 %v2495, 1.0
    %v2498 = vadd.f32 %v2496, 1.0
    %v2499 = vmul.f32 %v2491, %v2497
    %v2500 = vmul.f32 %v2492, %v2498
    %v2501 = vpack.c.bf16 %v2500, %v2499
    %v2502 = vlaneseq
    %v2503 = vshrl.u32 %v2502, 7
    %v2504 = vsub.s32 0, %v2503
    %v2505 = vrot.slane %v1383, %v2504
    %v2514 = vunpack.c.l.b16 %v1370
    %v2515 = vunpack.c.l.b16 %v1371
    %v2516 = vunpack.c.l.b16 %v1372
    %v2517 = vunpack.c.l.b16 %v1373
    %v2518 = vunpack.c.l.b16 %v1374
    %v2519 = vunpack.c.l.b16 %v1375
    %v2520 = vunpack.c.l.b16 %v1376
    %v2521 = vunpack.c.l.b16 %v1377
    %v2522 = vpack.c.b16 %v2515, %v2514
    %v2523 = vpack.c.b16 %v2517, %v2516
    %v2524 = vpack.c.b16 %v2519, %v2518
    %v2525 = vpack.c.b16 %v2521, %v2520
    %v2531 = vsel %vm1273, %v2501, 0
    %2533 = vmatprep.subr.bf16.mxu0 0
    %2534 = vmatpush1.bf16.msra.mxu0 %v2522
    %2535 = vmatprep.subr.bf16.mxu0 0
    %2536 = vmatpush1.bf16.msra.mxu0 %v2523
    %2537 = vmatprep.subr.bf16.mxu0 0
    %2538 = vmatpush1.bf16.msra.mxu0 %v2524
    %2539 = vmatprep.subr.bf16.mxu0 0
    %2540 = vmatpush1.bf16.msra.mxu0 %v2525
    %2541 = vmatprep.subr.bf16.mxu0 0
    %2542 = vmatpush1.bf16.msra.mxu0 0
    %2543 = vmatprep.subr.bf16.mxu0 0
    %2544 = vmatpush1.bf16.msra.mxu0 0
    %2545 = vmatprep.subr.bf16.mxu0 0
    %2546 = vmatpush1.bf16.msra.mxu0 0
    %2547 = vmatprep.subr.bf16.mxu0 0
    %2548 = vmatpush1.bf16.msra.mxu0 0
    %2549 = vmatprep.subr.bf16.mxu0 0
    %2550 = vmatpush1.bf16.msra.mxu0 0
    %2551 = vmatprep.subr.bf16.mxu0 0
    %2552 = vmatpush1.bf16.msra.mxu0 0
    %2553 = vmatprep.subr.bf16.mxu0 0
    %2554 = vmatpush1.bf16.msra.mxu0 0
    %2555 = vmatprep.subr.bf16.mxu0 0
    %2556 = vmatpush1.bf16.msra.mxu0 0
    %2557 = vmatprep.subr.bf16.mxu0 0
    %2558 = vmatpush1.bf16.msra.mxu0 0
    %2559 = vmatprep.subr.bf16.mxu0 0
    %2560 = vmatpush1.bf16.msra.mxu0 0
    %2561 = vmatprep.subr.bf16.mxu0 0
    %2562 = vmatpush1.bf16.msra.mxu0 0
    %2563 = vmatprep.subr.bf16.mxu0 0
    %2564 = vmatpush1.bf16.msra.mxu0 0
    %2565 = vmatprep.mubr.bf16.mxu0 0
    %2566 = vmatmul.mubr.bf16.gmra.mrb[0].mxu0 %v2531
    %v2567 = vpop.f32.mrb[0].mxu0
    %v2568 = vadd.f32 %v2505, %v2567
    %v2569 = vpop.f32.mrb[0].mxu0
    %v2570 = vpop.f32.mrb[0].mxu0
    %v2571 = vadd.f32 %v2505, %v2570
    %v2572 = vpop.f32.mrb[0].mxu0
    %2573 = vdwg.mxu0
    %v2574 = vadd.f32 %v2428, %v2568
    %v2575 = vadd.f32 %v2429, %v2571
    %v2576 = vsel %vm23, %v2574, 0.0
    %2577 = vadd.xlane.f32.xlu0 %v2576
    %v2578 = vpop.xlane.xlu0 %2577
    %v2579 = vsel %vm23, %v2575, 0.0
    %2580 = vadd.xlane.f32.xlu0 %v2579
    %v2581 = vpop.xlane.xlu0 %2580
    %v2582 = vmul.f32 %v2578, %v30
    %v2583 = vmul.f32 %v2581, %v30
    %v2584 = vsub.f32 %v2574, %v2582
    %v2585 = vsub.f32 %v2575, %v2583
    %v2586 = vmul.f32 %v2584, %v2584
    %v2587 = vmul.f32 %v2585, %v2585
    %v2588 = vsel %vm23, %v2586, 0.0
    %2589 = vadd.xlane.f32.xlu0 %v2588
    %v2590 = vpop.xlane.xlu0 %2589
    %v2591 = vsel %vm23, %v2587, 0.0
    %2592 = vadd.xlane.f32.xlu0 %v2591
    %v2593 = vpop.xlane.xlu0 %2592
    %v2594 = vmul.f32 %v2590, %v30
    %v2595 = vmul.f32 %v2593, %v30
    %v2596 = vadd.f32 %v2594, 1e-12
    %v2597 = vadd.f32 %v2595, 1e-12
    %v2598 = vrsqrt.pop %v2596
    %v2599 = vrsqrt.pop %v2597
    %v2600 = vmul.f32 %v2584, %v2598
    %v2601 = vmul.f32 %v2585, %v2599
    %v2602 = vlaneseq
    %v2603 = vshrl.u32 %v2602, 7
    %v2604 = vsub.s32 0, %v2603
    %v2605 = vrot.slane %v1384, %v2604
    %v2606 = vmul.f32 %v2600, %v2605
    %v2607 = vmul.f32 %v2601, %v2605
    %v2608 = vlaneseq
    %v2609 = vshrl.u32 %v2608, 7
    %v2610 = vsub.s32 0, %v2609
    %v2611 = vrot.slane %v1385, %v2610
    %v2612 = vadd.f32 %v2606, %v2611
    %v2613 = vadd.f32 %v2607, %v2611
    %v2614 = vld [vmem:[%s2 + $0xa0] sm:$0xf]
    %v2615 = vld [vmem:[%s2 + $0xa4] sm:$0xf]
    %v2616 = vld [vmem:[%s2 + $0xa8] sm:$0xf]
    %v2617 = vld [vmem:[%s2 + $0xac] sm:$0xf]
    %v2618 = vld [vmem:[%s2 + $0xb0] sm:$0xf]
    %v2619 = vld [vmem:[%s2 + $0xb4] sm:$0xf]
    %v2620 = vld [vmem:[%s2 + $0xb8] sm:$0xf]
    %v2621 = vld [vmem:[%s2 + $0xbc] sm:$0xf]
    %v2622 = vld [vmem:[%s3 + $0x12] sm:$0x1]
    %v2623 = vld [vmem:[%s3 + $0x13] sm:$0x1]
    %v2624 = vpack.c.bf16 %v2612, %v2612
    %v2625 = vpack.c.bf16 %v2613, %v2613
    %v2626 = vlaneseq
    %v2627 = vshrl.u32 %v2626, 7
    %v2628 = vsub.s32 0, %v2627
    %v2629 = vrot.slane %v2622, %v2628
    %v2632 = vunpack.c.l.b16 %v2624
    %v2633 = vunpack.c.l.b16 %v2625
    %v2634 = vrot.slane %v2633, 7
    %vm2635 = vcmask 1041409
    %v2636 = vsel %vm2635, %v2634, %v2632
    %v2637 = vpack.c.b16 %v2636, %v2636
    %v2642 = vunpack.c.l.b16 %v2614
    %v2643 = vunpack.c.l.b16 %v2615
    %v2644 = vunpack.c.l.b16 %v2616
    %v2645 = vunpack.c.l.b16 %v2617
    %v2646 = vpack.c.b16 %v2643, %v2642
    %v2647 = vpack.c.b16 %v2645, %v2644
    %v2651 = vsel %vm23, %v2637, 0
    %2653 = vmatprep.subr.bf16.mxu0 0
    %2654 = vmatpush1.bf16.msra.mxu0 %v2646
    %2655 = vmatprep.subr.bf16.mxu0 0
    %2656 = vmatpush1.bf16.msra.mxu0 %v2647
    %2657 = vmatprep.subr.bf16.mxu0 0
    %2658 = vmatpush1.bf16.msra.mxu0 0
    %2659 = vmatprep.subr.bf16.mxu0 0
    %2660 = vmatpush1.bf16.msra.mxu0 0
    %2661 = vmatprep.subr.bf16.mxu0 0
    %2662 = vmatpush1.bf16.msra.mxu0 0
    %2663 = vmatprep.subr.bf16.mxu0 0
    %2664 = vmatpush1.bf16.msra.mxu0 0
    %2665 = vmatprep.subr.bf16.mxu0 0
    %2666 = vmatpush1.bf16.msra.mxu0 0
    %2667 = vmatprep.subr.bf16.mxu0 0
    %2668 = vmatpush1.bf16.msra.mxu0 0
    %2669 = vmatprep.subr.bf16.mxu0 0
    %2670 = vmatpush1.bf16.msra.mxu0 0
    %2671 = vmatprep.subr.bf16.mxu0 0
    %2672 = vmatpush1.bf16.msra.mxu0 0
    %2673 = vmatprep.subr.bf16.mxu0 0
    %2674 = vmatpush1.bf16.msra.mxu0 0
    %2675 = vmatprep.subr.bf16.mxu0 0
    %2676 = vmatpush1.bf16.msra.mxu0 0
    %2677 = vmatprep.subr.bf16.mxu0 0
    %2678 = vmatpush1.bf16.msra.mxu0 0
    %2679 = vmatprep.subr.bf16.mxu0 0
    %2680 = vmatpush1.bf16.msra.mxu0 0
    %2681 = vmatprep.subr.bf16.mxu0 0
    %2682 = vmatpush1.bf16.msra.mxu0 0
    %2683 = vmatprep.subr.bf16.mxu0 0
    %2684 = vmatpush1.bf16.msra.mxu0 0
    %2685 = vmatprep.mubr.bf16.mxu0 0
    %2686 = vmatmul.mubr.bf16.gmra.mrb[0].mxu0 %v2651
    %v2687 = vpop.f32.mrb[0].mxu0
    %v2688 = vadd.f32 %v2629, %v2687
    %v2689 = vpop.f32.mrb[0].mxu0
    %v2690 = vpop.f32.mrb[0].mxu0
    %v2691 = vpop.f32.mrb[0].mxu0
    %2692 = vdwg.mxu0
    %v2693 = vtanh.pop %v2688
    %v2694 = vpack.c.bf16 %v2693, %v2693
    %v2695 = vlaneseq
    %v2696 = vshrl.u32 %v2695, 7
    %v2697 = vsub.s32 0, %v2696
    %v2698 = vrot.slane %v2623, %v2697
    %v2703 = vunpack.c.l.b16 %v2618
    %v2704 = vunpack.c.l.b16 %v2619
    %v2705 = vunpack.c.l.b16 %v2620
    %v2706 = vunpack.c.l.b16 %v2621
    %v2707 = vpack.c.b16 %v2704, %v2703
    %v2708 = vpack.c.b16 %v2706, %v2705
    %v2712 = vsel %vm23, %v2694, 0
    %2714 = vmatprep.subr.bf16.mxu0 0
    %2715 = vmatpush1.bf16.msra.mxu0 %v2707
    %2716 = vmatprep.subr.bf16.mxu0 0
    %2717 = vmatpush1.bf16.msra.mxu0 %v2708
    %2718 = vmatprep.subr.bf16.mxu0 0
    %2719 = vmatpush1.bf16.msra.mxu0 0
    %2720 = vmatprep.subr.bf16.mxu0 0
    %2721 = vmatpush1.bf16.msra.mxu0 0
    %2722 = vmatprep.subr.bf16.mxu0 0
    %2723 = vmatpush1.bf16.msra.mxu0 0
    %2724 = vmatprep.subr.bf16.mxu0 0
    %2725 = vmatpush1.bf16.msra.mxu0 0
    %2726 = vmatprep.subr.bf16.mxu0 0
    %2727 = vmatpush1.bf16.msra.mxu0 0
    %2728 = vmatprep.subr.bf16.mxu0 0
    %2729 = vmatpush1.bf16.msra.mxu0 0
    %2730 = vmatprep.subr.bf16.mxu0 0
    %2731 = vmatpush1.bf16.msra.mxu0 0
    %2732 = vmatprep.subr.bf16.mxu0 0
    %2733 = vmatpush1.bf16.msra.mxu0 0
    %2734 = vmatprep.subr.bf16.mxu0 0
    %2735 = vmatpush1.bf16.msra.mxu0 0
    %2736 = vmatprep.subr.bf16.mxu0 0
    %2737 = vmatpush1.bf16.msra.mxu0 0
    %2738 = vmatprep.subr.bf16.mxu0 0
    %2739 = vmatpush1.bf16.msra.mxu0 0
    %2740 = vmatprep.subr.bf16.mxu0 0
    %2741 = vmatpush1.bf16.msra.mxu0 0
    %2742 = vmatprep.subr.bf16.mxu0 0
    %2743 = vmatpush1.bf16.msra.mxu0 0
    %2744 = vmatprep.subr.bf16.mxu0 0
    %2745 = vmatpush1.bf16.msra.mxu0 0
    %2746 = vmatprep.mubr.bf16.mxu0 0
    %2747 = vmatmul.mubr.bf16.gmra.mrb[0].mxu0 %v2712
    %v2748 = vpop.f32.mrb[0].mxu0
    %v2749 = vadd.f32 %v2698, %v2748
    %v2750 = vpop.f32.mrb[0].mxu0
    %v2751 = vpop.f32.mrb[0].mxu0
    %v2752 = vpop.f32.mrb[0].mxu0
    %2753 = vdwg.mxu0
    %2754 = vst [vmem:[#allocation2] sm:$0x3] %v2749
    // Predicated region
    $region18: #{_lambda_.1} parent=1 // pred_check
      _
    $region19: #{_lambda_.1} parent=1 // pred_check_branch
      %2756 = sbr.rel (0) target = $region21
    $region20: #{_lambda_.1} parent=1 // pred_region
      %s2758 = ssub.s32 32, 32
      %2759 = vsyncadd [#allocation3], %s2758
      %s2761 = sshll.u32 [#allocation2], 4
      %s2762 = int_to_ptr.vmem [resolvable:$true] %s2761
      %2764 = dma.vmem_to_hbm [thread:$0]  %s2762, 32, %s4, [#allocation3]
    $region21: #{_lambda_.1} parent=1 // pred_fallthru
      _
    // Predicated region
    $region22: #{_lambda_.1} parent=1 // pred_check
      _
    $region23: #{_lambda_.1} parent=1 // pred_check_branch
      %2766 = sbr.rel (0) target = $region25
    $region24: #{_lambda_.1} parent=1 // pred_region
      %2767 = dma.done [#allocation3], 32
    $region25: #{_lambda_.1} parent=1 // pred_fallthru
      _
    %2768 = vsyncpa [#allocation3], 1

</llo_original>
